<compile_context>
chip_gen: v7x
topology: tpu7x:2x2x1
jax: 0.10.0
libtpu: 0.0.40
codegen_flags: <defaults>
</compile_context>

<pallas_src>
import functools
import math

import jax
import jax.numpy as jnp
from jax import lax
from jax.experimental import pallas as pl
from jax.experimental.pallas import tpu as pltpu

LN_EPS = 1e-5


def _round_up(x, m):
    return ((x + m - 1) // m) * m


def _vmem_limit_bytes(kernel_bytes):
    # Generation-aware budget: ~3/4 of physical VMEM (96 MiB on v5e/v6e, 48 MiB on v7x),
    # but never request less than 32 MiB or more than needed (2x for double-buffering).
    try:
        cap = int(pltpu.get_tpu_info().vmem_capacity_bytes)
    except Exception:  # pragma: no cover - conservative fallback
        cap = 64 << 20
    budget = (cap * 3) // 4
    want = 2 * int(kernel_bytes) + (4 << 20)
    return int(min(max(want, 32 << 20), budget))


def _gelu_exact(x):
    # nn.GELU() default = exact erf-based GELU.
    return 0.5 * x * (1.0 + lax.erf(x * (1.0 / math.sqrt(2.0))))


def _layernorm_f32(x, g, b):
    mu = jnp.mean(x, axis=-1, keepdims=True)
    xc = x - mu
    var = jnp.mean(xc * xc, axis=-1, keepdims=True)
    return (xc * lax.rsqrt(var + LN_EPS)) * g + b


# ---------------------------------------------------------------------------
# Kernels
# ---------------------------------------------------------------------------
def _ln_linear_kernel(x_ref, g_ref, bln_ref, w_ref, b_ref, o_ref):
    # Fused LayerNorm + linear projection: o = LN(x) @ W + b   (bf16 matmul, f32 acc)
    x = x_ref[...].astype(jnp.float32)
    xn = _layernorm_f32(x, g_ref[...].astype(jnp.float32),
                        bln_ref[...].astype(jnp.float32))
    o = jnp.dot(xn.astype(w_ref.dtype), w_ref[...],
                preferred_element_type=jnp.float32)
    o_ref[...] = (o + b_ref[...].astype(jnp.float32)).astype(o_ref.dtype)


def _attn_outproj_kernel(qkv_ref, wo_ref, bo_ref, resid_ref, o_ref, *,
                         num_heads, scale):
    # One batch per grid step. qkv_ref: (N, 3C) bf16, lane-dense.  Heads are looped
    # in-kernel over dh-wide VMEM slices; out-projection + bias + residual are fused.
    # TODO(synk): flash-style KV-tiled online softmax before scaling N past ~2k (v7x VMEM).
    c = wo_ref.shape[0]
    dh = c // num_heads
    qkv = qkv_ref[...]                                   # (N, 3C) bf16
    wo = wo_ref[...]                                     # (C, C)  bf16
    acc = resid_ref[...].astype(jnp.float32) + bo_ref[...].astype(jnp.float32)
    for h in range(num_heads):
        q = qkv[:, h * dh:(h + 1) * dh]
        k = qkv[:, c + h * dh:c + (h + 1) * dh]
        v = qkv[:, 2 * c + h * dh:2 * c + (h + 1) * dh]
        # fold 1/sqrt(dh) into q (cheap: N*dh instead of N*N)
        qs = (q.astype(jnp.float32) * scale).astype(qkv.dtype)
        s = lax.dot_general(qs, k, (((1,), (1,)), ((), ())),
                            preferred_element_type=jnp.float32)     # (N, N) f32
        m = jnp.max(s, axis=-1, keepdims=True)
        p = jnp.exp(s - m)
        l = jnp.sum(p, axis=-1, keepdims=True)
        pv = jnp.dot(p.astype(qkv.dtype), v,
                     preferred_element_type=jnp.float32)             # (N, dh)
        attn_h = pv * pl.reciprocal(l, approx=True)
        # attention dropout: identity (eval mode)
        acc = acc + jnp.dot(attn_h.astype(wo.dtype), wo[h * dh:(h + 1) * dh, :],
                            preferred_element_type=jnp.float32)
    # block dropout on attention path: identity (eval mode)
    o_ref[...] = acc.astype(o_ref.dtype)


def _ln_mlp_residual_kernel(x_ref, g_ref, bln_ref, w1_ref, b1_ref, w2_ref,
                            b2_ref, o_ref, xn_ref):
    # LN2 + fc1 -> GELU -> fc2 (hidden dim tiled over grid axis 1) + residual.
    # LN is computed once per token tile (j==0) into a bf16 VMEM scratch; fc2 partial
    # sums accumulate directly into the resident f32 output block.
    j = pl.program_id(1)

    @pl.when(j == 0)
    def _():
        x = x_ref[...].astype(jnp.float32)
        xn = _layernorm_f32(x, g_ref[...].astype(jnp.float32),
                            bln_ref[...].astype(jnp.float32))
        xn_ref[...] = xn.astype(xn_ref.dtype)
        # init output with residual + fc2 bias (added exactly once)
        o_ref[...] = (x + b2_ref[...].astype(jnp.float32)).astype(o_ref.dtype)

    h = jnp.dot(xn_ref[...], w1_ref[...], preferred_element_type=jnp.float32)
    h = _gelu_exact(h + b1_ref[...].astype(jnp.float32))
    # drop1 / drop2 / block dropout: identity (eval mode)
    o_ref[...] += jnp.dot(h.astype(w2_ref.dtype), w2_ref[...],
                          preferred_element_type=jnp.float32).astype(o_ref.dtype)


# ---------------------------------------------------------------------------
# pallas_call wrappers
# ---------------------------------------------------------------------------
def ln_qkv_proj(x2d, g, bln, w, b, *, tm):
    m, c = x2d.shape
    n_out = w.shape[1]
    wbytes = w.dtype.itemsize
    kernel_bytes = (4 * tm * c + wbytes * c * n_out + 4 * n_out
                    + 2 * tm * n_out + 4 * tm * n_out + 8 * c)
    ce = pl.CostEstimate(flops=2 * m * c * n_out + 10 * m * c,
                         transcendentals=m,
                         bytes_accessed=4 * m * c + wbytes * c * n_out
                         + 2 * m * n_out)
    return pl.pallas_call(
        _ln_linear_kernel,
        out_shape=jax.ShapeDtypeStruct((m, n_out), jnp.bfloat16),
        grid_spec=pltpu.PrefetchScalarGridSpec(
            num_scalar_prefetch=0,
            grid=(pl.cdiv(m, tm),),
            in_specs=[
                pl.BlockSpec((tm, c), lambda i: (i, 0)),      # x tile
                pl.BlockSpec((1, c), lambda i: (0, 0)),       # ln gamma
                pl.BlockSpec((1, c), lambda i: (0, 0)),       # ln beta
                pl.BlockSpec((c, n_out), lambda i: (0, 0)),   # W (resident, bf16)
                pl.BlockSpec((1, n_out), lambda i: (0, 0)),   # bias
            ],
            out_specs=pl.BlockSpec((tm, n_out), lambda i: (i, 0)),
        ),
        compiler_params=pltpu.CompilerParams(
            dimension_semantics=("parallel",),
            vmem_limit_bytes=_vmem_limit_bytes(kernel_bytes)),
        cost_estimate=ce,
    )(x2d, g, bln, w, b)


def attention_outproj_residual(qkv3, resid3, wo, bo, *, num_heads, scale):
    batch, n, c3 = qkv3.shape
    c = c3 // 3
    dh = c // num_heads
    qb = qkv3.dtype.itemsize
    wb = wo.dtype.itemsize
    kernel_bytes = (qb * n * c3 + 4 * n * c * 2 + wb * c * c + 4 * c
                    + 4 * n * n + 4 * n * c)
    ce = pl.CostEstimate(
        flops=batch * (4 * num_heads * n * n * dh + 2 * n * c * c),
        transcendentals=batch * num_heads * n * n,
        bytes_accessed=qb * batch * n * c3 + 4 * batch * n * c * 2 + wb * c * c)
    return pl.pallas_call(
        functools.partial(_attn_outproj_kernel, num_heads=num_heads, scale=scale),
        out_shape=jax.ShapeDtypeStruct((batch, n, c), resid3.dtype),
        grid_spec=pltpu.PrefetchScalarGridSpec(
            num_scalar_prefetch=0,
            grid=(batch,),
            in_specs=[
                pl.BlockSpec((None, n, c3), lambda bi: (bi, 0, 0)),  # qkv (lane-dense)
                pl.BlockSpec((c, c), lambda bi: (0, 0)),             # Wo (resident)
                pl.BlockSpec((1, c), lambda bi: (0, 0)),             # bo
                pl.BlockSpec((None, n, c), lambda bi: (bi, 0, 0)),   # residual xp
            ],
            out_specs=pl.BlockSpec((None, n, c), lambda bi: (bi, 0, 0)),
        ),
        compiler_params=pltpu.CompilerParams(
            dimension_semantics=("parallel",),
            vmem_limit_bytes=_vmem_limit_bytes(kernel_bytes)),
        cost_estimate=ce,
    )(qkv3, wo, bo, resid3)


def ln_mlp_residual(x2d, g, bln, w1, b1, w2, b2, *, tm, th):
    m, c = x2d.shape
    hd = w1.shape[1]
    hp = _round_up(hd, th)
    if hp != hd:  # zero-pad hidden dim so th tiles evenly (padded units contribute 0)
        w1 = jnp.pad(w1, ((0, 0), (0, hp - hd)))
        b1 = jnp.pad(b1, ((0, 0), (0, hp - hd)))
        w2 = jnp.pad(w2, ((0, hp - hd), (0, 0)))
    wb = w1.dtype.itemsize
    kernel_bytes = (4 * tm * c * 2 + 2 * tm * c + wb * (c * th + th * c)
                    + 4 * th + 12 * c + 4 * tm * th)
    ce = pl.CostEstimate(flops=4 * m * c * hp + 20 * m * c,
                         transcendentals=m * hp + m,
                         bytes_accessed=8 * m * c + wb * 2 * c * hp)
    return pl.pallas_call(
        _ln_mlp_residual_kernel,
        out_shape=jax.ShapeDtypeStruct((m, c), x2d.dtype),
        grid_spec=pltpu.PrefetchScalarGridSpec(
            num_scalar_prefetch=0,
            grid=(pl.cdiv(m, tm), hp // th),
            in_specs=[
                pl.BlockSpec((tm, c), lambda i, j: (i, 0)),   # x tile (also residual)
                pl.BlockSpec((1, c), lambda i, j: (0, 0)),    # ln gamma
                pl.BlockSpec((1, c), lambda i, j: (0, 0)),    # ln beta
                pl.BlockSpec((c, th), lambda i, j: (0, j)),   # W1 hidden block
                pl.BlockSpec((1, th), lambda i, j: (0, j)),   # b1 hidden block
                pl.BlockSpec((th, c), lambda i, j: (j, 0)),   # W2 hidden block
                pl.BlockSpec((1, c), lambda i, j: (0, 0)),    # b2
            ],
            out_specs=pl.BlockSpec((tm, c), lambda i, j: (i, 0)),
            scratch_shapes=[pltpu.VMEM((tm, c), jnp.bfloat16)],   # cached LN(x)
        ),
        compiler_params=pltpu.CompilerParams(
            dimension_semantics=("parallel", "arbitrary"),
            vmem_limit_bytes=_vmem_limit_bytes(kernel_bytes)),
        cost_estimate=ce,
    )(x2d, g, bln, w1, b1, w2, b2)


# ---------------------------------------------------------------------------
# Full block forward
# ---------------------------------------------------------------------------
@functools.partial(jax.jit, static_argnames=("num_heads", "tm", "th"))
def global_attention_block(x, params, *, num_heads=8, tm=512, th=512):
    """x: (B, C, D, H, W) -> (B, C, D, H, W). Eval-mode forward."""
    b, c, d, h, w = x.shape
    assert c % num_heads == 0
    n = d * h * w
    m = b * n
    dh = c // num_heads

    # NCDHW -> (B*N, C) tokens with lane-dense last dim C (module-mandated layout).
    xp = jnp.transpose(x, (0, 2, 3, 4, 1)).reshape(m, c)

    tm_eff = max(16, min(tm, _round_up(m, 16)))
    th_eff = min(th, params["w1"].shape[1])

    # LN1 fused with the QKV projection; qkv kept bf16 + (q|k|v) column layout so the
    # attention kernel can slice heads directly (no XLA split/transpose round trips).
    qkv = ln_qkv_proj(xp, params["ln1_g"], params["ln1_b"],
                      params["w_qkv"], params["b_qkv"], tm=tm_eff)

    # Per-batch attention with in-kernel head loop, fused out-proj + bias + residual.
    xp2 = attention_outproj_residual(
        qkv.reshape(b, n, 3 * c), xp.reshape(b, n, c),
        params["w_o"], params["b_o"],
        num_heads=num_heads, scale=1.0 / math.sqrt(dh)).reshape(m, c)

    # LN2 + MLP (fc1 -> GELU -> fc2) + residual, hidden dim tiled.
    out2d = ln_mlp_residual(xp2, params["ln2_g"], params["ln2_b"],
                            params["w1"], params["b1"],
                            params["w2"], params["b2"],
                            tm=tm_eff, th=th_eff)

    # tokens -> NCDHW
    return out2d.reshape(b, d, h, w, c).transpose(0, 4, 1, 2, 3)


# ---------------------------------------------------------------------------
# Params + pure-JAX reference
# ---------------------------------------------------------------------------
def init_params(key, dim, num_heads=8, expansion=4):
    hidden = int(dim * expansion)
    ks = jax.random.split(key, 12)
    bd = 1.0 / math.sqrt(dim)
    bh = 1.0 / math.sqrt(hidden)
    u = jax.random.uniform
    f32, bf16 = jnp.float32, jnp.bfloat16
    return dict(
        ln1_g=1.0 + 0.1 * jax.random.normal(ks[0], (1, dim), f32),
        ln1_b=0.1 * jax.random.normal(ks[1], (1, dim), f32),
        # projection weights stored (in, out) and in bf16 (MXU-native fast path).
        w_qkv=u(ks[2], (dim, 3 * dim), f32, -bd, bd).astype(bf16),
        b_qkv=u(ks[3], (1, 3 * dim), f32, -bd, bd),
        w_o=u(ks[4], (dim, dim), f32, -bd, bd).astype(bf16),
        b_o=u(ks[5], (1, dim), f32, -bd, bd),
        ln2_g=1.0 + 0.1 * jax.random.normal(ks[6], (1, dim), f32),
        ln2_b=0.1 * jax.random.normal(ks[7], (1, dim), f32),
        w1=u(ks[8], (dim, hidden), f32, -bd, bd).astype(bf16),
        b1=u(ks[9], (1, hidden), f32, -bd, bd),
        w2=u(ks[10], (hidden, dim), f32, -bh, bh).astype(bf16),
        b2=u(ks[11], (1, dim), f32, -bh, bh),
    )


def reference_forward(x, params, num_heads=8):
    f32 = jnp.float32
    w_qkv = params["w_qkv"].astype(f32)
    w_o = params["w_o"].astype(f32)
    w1 = params["w1"].astype(f32)
    w2 = params["w2"].astype(f32)

    b, c, d, h, w = x.shape
    n = d * h * w
    dh = c // num_heads
    xp = jnp.transpose(x, (0, 2, 3, 4, 1)).reshape(b, n, c)

    def ln(t, g, bias):
        mu = jnp.mean(t, -1, keepdims=True)
        var = jnp.mean((t - mu) ** 2, -1, keepdims=True)
        return (t - mu) / jnp.sqrt(var + LN_EPS) * g + bias

    x_ln = ln(xp, params["ln1_g"], params["ln1_b"])
    qkv = x_ln @ w_qkv + params["b_qkv"]
    q, k, v = jnp.split(qkv, 3, axis=-1)

    def heads(t):
        return t.reshape(b, n, num_heads, dh).transpose(0, 2, 1, 3)

    q, k, v = heads(q), heads(k), heads(v)
    s = jnp.einsum("bhqd,bhkd->bhqk", q, k) / math.sqrt(dh)
    p = jax.nn.softmax(s, axis=-1)
    a = jnp.einsum("bhqk,bhkd->bhqd", p, v).transpose(0, 2, 1, 3).reshape(b, n, c)
    xp = xp + (a @ w_o + params["b_o"])

    x_ln2 = ln(xp, params["ln2_g"], params["ln2_b"])
    h1 = x_ln2 @ w1 + params["b1"]
    h1 = 0.5 * h1 * (1.0 + lax.erf(h1 / math.sqrt(2.0)))
    xp = xp + (h1 @ w2 + params["b2"])
    return xp.reshape(b, d, h, w, c).transpose(0, 4, 1, 2, 3)


if __name__ == "__main__":
    key = jax.random.PRNGKey(0)
    kx, kp = jax.random.split(key)

    # Small but lane-dense test shape: C = dim = 128, spatial 2x4x8 -> N = 64 tokens.
    batch, dim, num_heads = 2, 128, 8
    dd, hh, ww = 2, 4, 8
    x = jax.random.normal(kx, (batch, dim, dd, hh, ww), jnp.float32)
    params = init_params(kp, dim, num_heads=num_heads, expansion=4)

    out = global_attention_block(x, params, num_heads=num_heads)
    out = jax.block_until_ready(out)

    ref = reference_forward(x, params, num_heads=num_heads)
    assert out.shape == x.shape
    # bf16 matmul operands (f32 stats/accumulators) -> tolerance loosened vs pure-f32.
    assert jnp.allclose(out, ref, atol=5e-2, rtol=5e-2), "mismatch vs reference"

    print("KERNEL_OK")
</pallas_src>

<mosaic_0001>
module attributes {stable_mosaic.version = 11 : i64} {
  func.func @_ln_mlp_residual_kernel(%arg0: i32, %arg1: i32, %arg2: memref<128x128xf32, #tpu.memory_space<vmem>>, %arg3: memref<1x128xf32, #tpu.memory_space<vmem>>, %arg4: memref<1x128xf32, #tpu.memory_space<vmem>>, %arg5: memref<128x512xbf16, #tpu.memory_space<vmem>>, %arg6: memref<1x512xf32, #tpu.memory_space<vmem>>, %arg7: memref<512x128xbf16, #tpu.memory_space<vmem>>, %arg8: memref<1x128xf32, #tpu.memory_space<vmem>>, %arg9: memref<128x128xf32, #tpu.memory_space<vmem>>, %arg10: memref<128x128xbf16, #tpu.memory_space<vmem>>) attributes {dimension_semantics = [#tpu.dimension_semantics<parallel>, #tpu.dimension_semantics<arbitrary>], iteration_bounds = array<i64: 1, 1>, scalar_prefetch = 0 : i64, scratch_operands = 1 : i64, tpu.core_type = #tpu.core_type<tc>, window_params = [{transform_indices = @transform_0, window_bounds = array<i64: 128, 128>}, {pipeline_mode = #tpu.pipeline_mode<synchronous>, transform_indices = @transform_1, window_bounds = array<i64: 1, 128>}, {pipeline_mode = #tpu.pipeline_mode<synchronous>, transform_indices = @transform_2, window_bounds = array<i64: 1, 128>}, {transform_indices = @transform_3, window_bounds = array<i64: 128, 512>}, {transform_indices = @transform_4, window_bounds = array<i64: 1, 512>}, {transform_indices = @transform_5, window_bounds = array<i64: 512, 128>}, {pipeline_mode = #tpu.pipeline_mode<synchronous>, transform_indices = @transform_6, window_bounds = array<i64: 1, 128>}, {transform_indices = @transform_7, window_bounds = array<i64: 128, 128>}]} {
    %c0_i32 = arith.constant 0 : i32
    %0 = arith.cmpi eq, %arg1, %c0_i32 : i32
    %1 = arith.extui %0 : i1 to i32
    %c0_i32_0 = arith.constant 0 : i32
    %2 = arith.cmpi ne, %1, %c0_i32_0 : i32
    scf.if %2 {
      %c0_16 = arith.constant 0 : index
      %c0_17 = arith.constant 0 : index
      %23 = vector.load %arg2[%c0_16, %c0_17] : memref<128x128xf32, #tpu.memory_space<vmem>>, vector<128x128xf32>
      %c0_18 = arith.constant 0 : index
      %c0_19 = arith.constant 0 : index
      %24 = vector.load %arg3[%c0_18, %c0_19] : memref<1x128xf32, #tpu.memory_space<vmem>>, vector<1x128xf32>
      %c0_20 = arith.constant 0 : index
      %c0_21 = arith.constant 0 : index
      %25 = vector.load %arg4[%c0_20, %c0_21] : memref<1x128xf32, #tpu.memory_space<vmem>>, vector<1x128xf32>
      %cst_22 = arith.constant dense<0.000000e+00> : vector<128xf32>
      %26 = vector.multi_reduction <add>, %23, %cst_22 [1] : vector<128x128xf32> to vector<128xf32>
      %27 = vector.shape_cast %26 : vector<128xf32> to vector<128x1xf32>
      %cst_23 = arith.constant 1.280000e+02 : f32
      %28 = vector.broadcast %cst_23 : f32 to vector<128x1xf32>
      %29 = arith.divf %27, %28 : vector<128x1xf32>
      %30 = vector.broadcast %29 : vector<128x1xf32> to vector<128x128xf32>
      %31 = arith.subf %23, %30 : vector<128x128xf32>
      %32 = arith.mulf %31, %31 : vector<128x128xf32>
      %cst_24 = arith.constant dense<0.000000e+00> : vector<128xf32>
      %33 = vector.multi_reduction <add>, %32, %cst_24 [1] : vector<128x128xf32> to vector<128xf32>
      %34 = vector.shape_cast %33 : vector<128xf32> to vector<128x1xf32>
      %cst_25 = arith.constant 1.280000e+02 : f32
      %35 = vector.broadcast %cst_25 : f32 to vector<128x1xf32>
      %36 = arith.divf %34, %35 : vector<128x1xf32>
      %cst_26 = arith.constant 9.99999974E-6 : f32
      %37 = vector.broadcast %cst_26 : f32 to vector<128x1xf32>
      %38 = arith.addf %36, %37 : vector<128x1xf32>
      %39 = math.rsqrt %38 : vector<128x1xf32>
      %40 = vector.broadcast %39 : vector<128x1xf32> to vector<128x128xf32>
      %41 = arith.mulf %31, %40 : vector<128x128xf32>
      %42 = vector.broadcast %24 : vector<1x128xf32> to vector<128x128xf32>
      %43 = arith.mulf %41, %42 : vector<128x128xf32>
      %44 = vector.broadcast %25 : vector<1x128xf32> to vector<128x128xf32>
      %45 = arith.addf %43, %44 : vector<128x128xf32>
      %46 = arith.truncf %45 : vector<128x128xf32> to vector<128x128xbf16>
      %c0_27 = arith.constant 0 : index
      %c0_28 = arith.constant 0 : index
      %47 = vector.load %arg10[%c0_27, %c0_28] : memref<128x128xbf16, #tpu.memory_space<vmem>>, vector<128x128xbf16>
      tpu.vector_store %arg10[%c0_27, %c0_28], %46 {strides = array<i32>} : memref<128x128xbf16, #tpu.memory_space<vmem>>, vector<128x128xbf16>,
      %c0_29 = arith.constant 0 : index
      %c0_30 = arith.constant 0 : index
      %48 = vector.load %arg8[%c0_29, %c0_30] : memref<1x128xf32, #tpu.memory_space<vmem>>, vector<1x128xf32>
      %49 = vector.broadcast %48 : vector<1x128xf32> to vector<128x128xf32>
      %50 = arith.addf %23, %49 : vector<128x128xf32>
      %c0_31 = arith.constant 0 : index
      %c0_32 = arith.constant 0 : index
      %51 = vector.load %arg9[%c0_31, %c0_32] : memref<128x128xf32, #tpu.memory_space<vmem>>, vector<128x128xf32>
      tpu.vector_store %arg9[%c0_31, %c0_32], %50 {strides = array<i32>} : memref<128x128xf32, #tpu.memory_space<vmem>>, vector<128x128xf32>,
    } else {
    }
    %c0 = arith.constant 0 : index
    %c0_1 = arith.constant 0 : index
    %3 = vector.load %arg10[%c0, %c0_1] : memref<128x128xbf16, #tpu.memory_space<vmem>>, vector<128x128xbf16>
    %c0_2 = arith.constant 0 : index
    %c0_3 = arith.constant 0 : index
    %4 = vector.load %arg5[%c0_2, %c0_3] : memref<128x512xbf16, #tpu.memory_space<vmem>>, vector<128x512xbf16>
    %cst = arith.constant dense<0.000000e+00> : vector<128x512xf32>
    %5 = tpu.matmul %3, %4, %cst {dimension_numbers = #tpu.dot_dimension_numbers<[1], [0], [0], [1], [0, 0, 1, 1], [], []>} : vector<128x128xbf16>, vector<128x512xbf16>, vector<128x512xf32> -> vector<128x512xf32>
    %c0_4 = arith.constant 0 : index
    %c0_5 = arith.constant 0 : index
    %6 = vector.load %arg6[%c0_4, %c0_5] : memref<1x512xf32, #tpu.memory_space<vmem>>, vector<1x512xf32>
    %7 = vector.broadcast %6 : vector<1x512xf32> to vector<128x512xf32>
    %8 = arith.addf %5, %7 : vector<128x512xf32>
    %cst_6 = arith.constant 5.000000e-01 : f32
    %9 = vector.broadcast %cst_6 : f32 to vector<128x512xf32>
    %10 = arith.mulf %9, %8 : vector<128x512xf32>
    %cst_7 = arith.constant 0.707106769 : f32
    %11 = vector.broadcast %cst_7 : f32 to vector<128x512xf32>
    %12 = arith.mulf %8, %11 : vector<128x512xf32>
    %13 = math.erf %12 : vector<128x512xf32>
    %cst_8 = arith.constant 1.000000e+00 : f32
    %14 = vector.broadcast %cst_8 : f32 to vector<128x512xf32>
    %15 = arith.addf %14, %13 : vector<128x512xf32>
    %16 = arith.mulf %10, %15 : vector<128x512xf32>
    %c0_9 = arith.constant 0 : index
    %c0_10 = arith.constant 0 : index
    %17 = vector.load %arg9[%c0_9, %c0_10] : memref<128x128xf32, #tpu.memory_space<vmem>>, vector<128x128xf32>
    %18 = arith.truncf %16 : vector<128x512xf32> to vector<128x512xbf16>
    %c0_11 = arith.constant 0 : index
    %c0_12 = arith.constant 0 : index
    %19 = vector.load %arg7[%c0_11, %c0_12] : memref<512x128xbf16, #tpu.memory_space<vmem>>, vector<512x128xbf16>
    %cst_13 = arith.constant dense<0.000000e+00> : vector<128x128xf32>
    %20 = tpu.matmul %18, %19, %cst_13 {dimension_numbers = #tpu.dot_dimension_numbers<[1], [0], [0], [1], [0, 0, 1, 1], [], []>} : vector<128x512xbf16>, vector<512x128xbf16>, vector<128x128xf32> -> vector<128x128xf32>
    %21 = arith.addf %17, %20 : vector<128x128xf32>
    %c0_14 = arith.constant 0 : index
    %c0_15 = arith.constant 0 : index
    %22 = vector.load %arg9[%c0_14, %c0_15] : memref<128x128xf32, #tpu.memory_space<vmem>>, vector<128x128xf32>
    tpu.vector_store %arg9[%c0_14, %c0_15], %21 {strides = array<i32>} : memref<128x128xf32, #tpu.memory_space<vmem>>, vector<128x128xf32>,
    return
  }
  func.func @transform_0(%arg0: i32, %arg1: i32) -> (i32, i32) {
    %c0_i32 = arith.constant 0 : i32
    %c0_i32_0 = arith.constant 0 : i32
    return %arg0, %c0_i32 : i32, i32
  }
  func.func @transform_1(%arg0: i32, %arg1: i32) -> (i32, i32) {
    %c0_i32 = arith.constant 0 : i32
    %c0_i32_0 = arith.constant 0 : i32
    %c0_i32_1 = arith.constant 0 : i32
    return %c0_i32, %c0_i32_0 : i32, i32
  }
  func.func @transform_2(%arg0: i32, %arg1: i32) -> (i32, i32) {
    %c0_i32 = arith.constant 0 : i32
    %c0_i32_0 = arith.constant 0 : i32
    %c0_i32_1 = arith.constant 0 : i32
    return %c0_i32, %c0_i32_0 : i32, i32
  }
  func.func @transform_3(%arg0: i32, %arg1: i32) -> (i32, i32) {
    %c0_i32 = arith.constant 0 : i32
    %c0_i32_0 = arith.constant 0 : i32
    return %c0_i32, %arg1 : i32, i32
  }
  func.func @transform_4(%arg0: i32, %arg1: i32) -> (i32, i32) {
    %c0_i32 = arith.constant 0 : i32
    %c0_i32_0 = arith.constant 0 : i32
    return %c0_i32, %arg1 : i32, i32
  }
  func.func @transform_5(%arg0: i32, %arg1: i32) -> (i32, i32) {
    %c0_i32 = arith.constant 0 : i32
    %c0_i32_0 = arith.constant 0 : i32
    return %arg1, %c0_i32 : i32, i32
  }
  func.func @transform_6(%arg0: i32, %arg1: i32) -> (i32, i32) {
    %c0_i32 = arith.constant 0 : i32
    %c0_i32_0 = arith.constant 0 : i32
    %c0_i32_1 = arith.constant 0 : i32
    return %c0_i32, %c0_i32_0 : i32, i32
  }
  func.func @transform_7(%arg0: i32, %arg1: i32) -> (i32, i32) {
    %c0_i32 = arith.constant 0 : i32
    %c0_i32_0 = arith.constant 0 : i32
    return %arg0, %c0_i32 : i32, i32
  }
}

module attributes {stable_mosaic.version = 11 : i64} {
  func.func @_ln_linear_kernel(%arg0: i32, %arg1: memref<128x128xf32, #tpu.memory_space<vmem>>, %arg2: memref<1x128xf32, #tpu.memory_space<vmem>>, %arg3: memref<1x128xf32, #tpu.memory_space<vmem>>, %arg4: memref<128x384xbf16, #tpu.memory_space<vmem>>, %arg5: memref<1x384xf32, #tpu.memory_space<vmem>>, %arg6: memref<128x384xbf16, #tpu.memory_space<vmem>>) attributes {dimension_semantics = [#tpu.dimension_semantics<parallel>], iteration_bounds = array<i64: 1>, scalar_prefetch = 0 : i64, scratch_operands = 0 : i64, tpu.core_type = #tpu.core_type<tc>, window_params = [{transform_indices = @transform_0, window_bounds = array<i64: 128, 128>}, {pipeline_mode = #tpu.pipeline_mode<synchronous>, transform_indices = @transform_1, window_bounds = array<i64: 1, 128>}, {pipeline_mode = #tpu.pipeline_mode<synchronous>, transform_indices = @transform_2, window_bounds = array<i64: 1, 128>}, {pipeline_mode = #tpu.pipeline_mode<synchronous>, transform_indices = @transform_3, window_bounds = array<i64: 128, 384>}, {pipeline_mode = #tpu.pipeline_mode<synchronous>, transform_indices = @transform_4, window_bounds = array<i64: 1, 384>}, {transform_indices = @transform_5, window_bounds = array<i64: 128, 384>}]} {
    %c0 = arith.constant 0 : index
    %c0_0 = arith.constant 0 : index
    %0 = vector.load %arg1[%c0, %c0_0] : memref<128x128xf32, #tpu.memory_space<vmem>>, vector<128x128xf32>
    %c0_1 = arith.constant 0 : index
    %c0_2 = arith.constant 0 : index
    %1 = vector.load %arg2[%c0_1, %c0_2] : memref<1x128xf32, #tpu.memory_space<vmem>>, vector<1x128xf32>
    %c0_3 = arith.constant 0 : index
    %c0_4 = arith.constant 0 : index
    %2 = vector.load %arg3[%c0_3, %c0_4] : memref<1x128xf32, #tpu.memory_space<vmem>>, vector<1x128xf32>
    %cst = arith.constant dense<0.000000e+00> : vector<128xf32>
    %3 = vector.multi_reduction <add>, %0, %cst [1] : vector<128x128xf32> to vector<128xf32>
    %4 = vector.shape_cast %3 : vector<128xf32> to vector<128x1xf32>
    %cst_5 = arith.constant 1.280000e+02 : f32
    %5 = vector.broadcast %cst_5 : f32 to vector<128x1xf32>
    %6 = arith.divf %4, %5 : vector<128x1xf32>
    %7 = vector.broadcast %6 : vector<128x1xf32> to vector<128x128xf32>
    %8 = arith.subf %0, %7 : vector<128x128xf32>
    %9 = arith.mulf %8, %8 : vector<128x128xf32>
    %cst_6 = arith.constant dense<0.000000e+00> : vector<128xf32>
    %10 = vector.multi_reduction <add>, %9, %cst_6 [1] : vector<128x128xf32> to vector<128xf32>
    %11 = vector.shape_cast %10 : vector<128xf32> to vector<128x1xf32>
    %cst_7 = arith.constant 1.280000e+02 : f32
    %12 = vector.broadcast %cst_7 : f32 to vector<128x1xf32>
    %13 = arith.divf %11, %12 : vector<128x1xf32>
    %cst_8 = arith.constant 9.99999974E-6 : f32
    %14 = vector.broadcast %cst_8 : f32 to vector<128x1xf32>
    %15 = arith.addf %13, %14 : vector<128x1xf32>
    %16 = math.rsqrt %15 : vector<128x1xf32>
    %17 = vector.broadcast %16 : vector<128x1xf32> to vector<128x128xf32>
    %18 = arith.mulf %8, %17 : vector<128x128xf32>
    %19 = vector.broadcast %1 : vector<1x128xf32> to vector<128x128xf32>
    %20 = arith.mulf %18, %19 : vector<128x128xf32>
    %21 = vector.broadcast %2 : vector<1x128xf32> to vector<128x128xf32>
    %22 = arith.addf %20, %21 : vector<128x128xf32>
    %23 = arith.truncf %22 : vector<128x128xf32> to vector<128x128xbf16>
    %c0_9 = arith.constant 0 : index
    %c0_10 = arith.constant 0 : index
    %24 = vector.load %arg4[%c0_9, %c0_10] : memref<128x384xbf16, #tpu.memory_space<vmem>>, vector<128x384xbf16>
    %cst_11 = arith.constant dense<0.000000e+00> : vector<128x384xf32>
    %25 = tpu.matmul %23, %24, %cst_11 {dimension_numbers = #tpu.dot_dimension_numbers<[1], [0], [0], [1], [0, 0, 1, 1], [], []>} : vector<128x128xbf16>, vector<128x384xbf16>, vector<128x384xf32> -> vector<128x384xf32>
    %c0_12 = arith.constant 0 : index
    %c0_13 = arith.constant 0 : index
    %26 = vector.load %arg5[%c0_12, %c0_13] : memref<1x384xf32, #tpu.memory_space<vmem>>, vector<1x384xf32>
    %27 = vector.broadcast %26 : vector<1x384xf32> to vector<128x384xf32>
    %28 = arith.addf %25, %27 : vector<128x384xf32>
    %29 = arith.truncf %28 : vector<128x384xf32> to vector<128x384xbf16>
    %c0_14 = arith.constant 0 : index
    %c0_15 = arith.constant 0 : index
    %30 = vector.load %arg6[%c0_14, %c0_15] : memref<128x384xbf16, #tpu.memory_space<vmem>>, vector<128x384xbf16>
    tpu.vector_store %arg6[%c0_14, %c0_15], %29 {strides = array<i32>} : memref<128x384xbf16, #tpu.memory_space<vmem>>, vector<128x384xbf16>,
    return
  }
  func.func @transform_0(%arg0: i32) -> (i32, i32) {
    %c0_i32 = arith.constant 0 : i32
    %c0_i32_0 = arith.constant 0 : i32
    return %arg0, %c0_i32 : i32, i32
  }
  func.func @transform_1(%arg0: i32) -> (i32, i32) {
    %c0_i32 = arith.constant 0 : i32
    %c0_i32_0 = arith.constant 0 : i32
    %c0_i32_1 = arith.constant 0 : i32
    return %c0_i32, %c0_i32_0 : i32, i32
  }
  func.func @transform_2(%arg0: i32) -> (i32, i32) {
    %c0_i32 = arith.constant 0 : i32
    %c0_i32_0 = arith.constant 0 : i32
    %c0_i32_1 = arith.constant 0 : i32
    return %c0_i32, %c0_i32_0 : i32, i32
  }
  func.func @transform_3(%arg0: i32) -> (i32, i32) {
    %c0_i32 = arith.constant 0 : i32
    %c0_i32_0 = arith.constant 0 : i32
    %c0_i32_1 = arith.constant 0 : i32
    return %c0_i32, %c0_i32_0 : i32, i32
  }
  func.func @transform_4(%arg0: i32) -> (i32, i32) {
    %c0_i32 = arith.constant 0 : i32
    %c0_i32_0 = arith.constant 0 : i32
    %c0_i32_1 = arith.constant 0 : i32
    return %c0_i32, %c0_i32_0 : i32, i32
  }
  func.func @transform_5(%arg0: i32) -> (i32, i32) {
    %c0_i32 = arith.constant 0 : i32
    %c0_i32_0 = arith.constant 0 : i32
    return %arg0, %c0_i32 : i32, i32
  }
}

module attributes {stable_mosaic.version = 11 : i64} {
  func.func @_attn_outproj_kernel(%arg0: i32, %arg1: memref<1x64x384xbf16, #tpu.memory_space<vmem>>, %arg2: memref<128x128xbf16, #tpu.memory_space<vmem>>, %arg3: memref<1x128xf32, #tpu.memory_space<vmem>>, %arg4: memref<1x64x128xf32, #tpu.memory_space<vmem>>, %arg5: memref<1x64x128xf32, #tpu.memory_space<vmem>>) attributes {dimension_semantics = [#tpu.dimension_semantics<parallel>], iteration_bounds = array<i64: 2>, scalar_prefetch = 0 : i64, scratch_operands = 0 : i64, tpu.core_type = #tpu.core_type<tc>, window_params = [{transform_indices = @transform_0, window_bounds = array<i64: 1, 64, 384>}, {pipeline_mode = #tpu.pipeline_mode<synchronous>, transform_indices = @transform_1, window_bounds = array<i64: 128, 128>}, {pipeline_mode = #tpu.pipeline_mode<synchronous>, transform_indices = @transform_2, window_bounds = array<i64: 1, 128>}, {transform_indices = @transform_3, window_bounds = array<i64: 1, 64, 128>}, {transform_indices = @transform_4, window_bounds = array<i64: 1, 64, 128>}]} {
    %c0 = arith.constant 0 : index
    %c0_0 = arith.constant 0 : index
    %c0_1 = arith.constant 0 : index
    %0 = vector.load %arg1[%c0, %c0_0, %c0_1] : memref<1x64x384xbf16, #tpu.memory_space<vmem>>, vector<1x64x384xbf16>
    %1 = vector.shape_cast %0 : vector<1x64x384xbf16> to vector<64x384xbf16>
    %c0_2 = arith.constant 0 : index
    %c0_3 = arith.constant 0 : index
    %2 = vector.load %arg2[%c0_2, %c0_3] : memref<128x128xbf16, #tpu.memory_space<vmem>>, vector<128x128xbf16>
    %c0_4 = arith.constant 0 : index
    %c0_5 = arith.constant 0 : index
    %c0_6 = arith.constant 0 : index
    %3 = vector.load %arg4[%c0_4, %c0_5, %c0_6] : memref<1x64x128xf32, #tpu.memory_space<vmem>>, vector<1x64x128xf32>
    %4 = vector.shape_cast %3 : vector<1x64x128xf32> to vector<64x128xf32>
    %c0_7 = arith.constant 0 : index
    %c0_8 = arith.constant 0 : index
    %5 = vector.load %arg3[%c0_7, %c0_8] : memref<1x128xf32, #tpu.memory_space<vmem>>, vector<1x128xf32>
    %6 = vector.broadcast %5 : vector<1x128xf32> to vector<64x128xf32>
    %7 = arith.addf %4, %6 : vector<64x128xf32>
    %8 = vector.extract_strided_slice %1 {offsets = [0, 0], sizes = [64, 16], strides = [1, 1]} : vector<64x384xbf16> to vector<64x16xbf16>
    %9 = vector.extract_strided_slice %1 {offsets = [0, 128], sizes = [64, 16], strides = [1, 1]} : vector<64x384xbf16> to vector<64x16xbf16>
    %10 = vector.extract_strided_slice %1 {offsets = [0, 256], sizes = [64, 16], strides = [1, 1]} : vector<64x384xbf16> to vector<64x16xbf16>
    %11 = arith.extf %8 : vector<64x16xbf16> to vector<64x16xf32>
    %cst = arith.constant 2.500000e-01 : f32
    %12 = vector.broadcast %cst : f32 to vector<64x16xf32>
    %13 = arith.mulf %11, %12 : vector<64x16xf32>
    %14 = arith.truncf %13 : vector<64x16xf32> to vector<64x16xbf16>
    %cst_9 = arith.constant dense<0.000000e+00> : vector<64x64xf32>
    %15 = tpu.matmul %14, %9, %cst_9 {dimension_numbers = #tpu.dot_dimension_numbers<[1], [1], [0], [0], [0, 0, 1, 0], [], []>} : vector<64x16xbf16>, vector<64x16xbf16>, vector<64x64xf32> -> vector<64x64xf32>
    %cst_10 = arith.constant dense<0xFF800000> : vector<64xf32>
    %16 = vector.multi_reduction <maximumf>, %15, %cst_10 [1] : vector<64x64xf32> to vector<64xf32>
    %17 = vector.shape_cast %16 : vector<64xf32> to vector<64x1xf32>
    %18 = vector.broadcast %17 : vector<64x1xf32> to vector<64x64xf32>
    %19 = arith.subf %15, %18 : vector<64x64xf32>
    %20 = math.exp %19 : vector<64x64xf32>
    %cst_11 = arith.constant dense<0.000000e+00> : vector<64xf32>
    %21 = vector.multi_reduction <add>, %20, %cst_11 [1] : vector<64x64xf32> to vector<64xf32>
    %22 = vector.shape_cast %21 : vector<64xf32> to vector<64x1xf32>
    %23 = arith.truncf %20 : vector<64x64xf32> to vector<64x64xbf16>
    %cst_12 = arith.constant dense<0.000000e+00> : vector<64x16xf32>
    %24 = tpu.matmul %23, %10, %cst_12 {dimension_numbers = #tpu.dot_dimension_numbers<[1], [0], [0], [1], [0, 0, 1, 1], [], []>} : vector<64x64xbf16>, vector<64x16xbf16>, vector<64x16xf32> -> vector<64x16xf32>
    %25 = tpu.reciprocal %22 {approx = true} : vector<64x1xf32> -> vector<64x1xf32>
    %26 = vector.broadcast %25 : vector<64x1xf32> to vector<64x16xf32>
    %27 = arith.mulf %24, %26 : vector<64x16xf32>
    %28 = arith.truncf %27 : vector<64x16xf32> to vector<64x16xbf16>
    %29 = vector.extract_strided_slice %2 {offsets = [0, 0], sizes = [16, 128], strides = [1, 1]} : vector<128x128xbf16> to vector<16x128xbf16>
    %cst_13 = arith.constant dense<0.000000e+00> : vector<64x128xf32>
    %30 = tpu.matmul %28, %29, %cst_13 {dimension_numbers = #tpu.dot_dimension_numbers<[1], [0], [0], [1], [0, 0, 1, 1], [], []>} : vector<64x16xbf16>, vector<16x128xbf16>, vector<64x128xf32> -> vector<64x128xf32>
    %31 = arith.addf %7, %30 : vector<64x128xf32>
    %32 = vector.extract_strided_slice %1 {offsets = [0, 16], sizes = [64, 16], strides = [1, 1]} : vector<64x384xbf16> to vector<64x16xbf16>
    %33 = vector.extract_strided_slice %1 {offsets = [0, 144], sizes = [64, 16], strides = [1, 1]} : vector<64x384xbf16> to vector<64x16xbf16>
    %34 = vector.extract_strided_slice %1 {offsets = [0, 272], sizes = [64, 16], strides = [1, 1]} : vector<64x384xbf16> to vector<64x16xbf16>
    %35 = arith.extf %32 : vector<64x16xbf16> to vector<64x16xf32>
    %cst_14 = arith.constant 2.500000e-01 : f32
    %36 = vector.broadcast %cst_14 : f32 to vector<64x16xf32>
    %37 = arith.mulf %35, %36 : vector<64x16xf32>
    %38 = arith.truncf %37 : vector<64x16xf32> to vector<64x16xbf16>
    %cst_15 = arith.constant dense<0.000000e+00> : vector<64x64xf32>
    %39 = tpu.matmul %38, %33, %cst_15 {dimension_numbers = #tpu.dot_dimension_numbers<[1], [1], [0], [0], [0, 0, 1, 0], [], []>} : vector<64x16xbf16>, vector<64x16xbf16>, vector<64x64xf32> -> vector<64x64xf32>
    %cst_16 = arith.constant dense<0xFF800000> : vector<64xf32>
    %40 = vector.multi_reduction <maximumf>, %39, %cst_16 [1] : vector<64x64xf32> to vector<64xf32>
    %41 = vector.shape_cast %40 : vector<64xf32> to vector<64x1xf32>
    %42 = vector.broadcast %41 : vector<64x1xf32> to vector<64x64xf32>
    %43 = arith.subf %39, %42 : vector<64x64xf32>
    %44 = math.exp %43 : vector<64x64xf32>
    %cst_17 = arith.constant dense<0.000000e+00> : vector<64xf32>
    %45 = vector.multi_reduction <add>, %44, %cst_17 [1] : vector<64x64xf32> to vector<64xf32>
    %46 = vector.shape_cast %45 : vector<64xf32> to vector<64x1xf32>
    %47 = arith.truncf %44 : vector<64x64xf32> to vector<64x64xbf16>
    %cst_18 = arith.constant dense<0.000000e+00> : vector<64x16xf32>
    %48 = tpu.matmul %47, %34, %cst_18 {dimension_numbers = #tpu.dot_dimension_numbers<[1], [0], [0], [1], [0, 0, 1, 1], [], []>} : vector<64x64xbf16>, vector<64x16xbf16>, vector<64x16xf32> -> vector<64x16xf32>
    %49 = tpu.reciprocal %46 {approx = true} : vector<64x1xf32> -> vector<64x1xf32>
    %50 = vector.broadcast %49 : vector<64x1xf32> to vector<64x16xf32>
    %51 = arith.mulf %48, %50 : vector<64x16xf32>
    %52 = arith.truncf %51 : vector<64x16xf32> to vector<64x16xbf16>
    %53 = vector.extract_strided_slice %2 {offsets = [16, 0], sizes = [16, 128], strides = [1, 1]} : vector<128x128xbf16> to vector<16x128xbf16>
    %cst_19 = arith.constant dense<0.000000e+00> : vector<64x128xf32>
    %54 = tpu.matmul %52, %53, %cst_19 {dimension_numbers = #tpu.dot_dimension_numbers<[1], [0], [0], [1], [0, 0, 1, 1], [], []>} : vector<64x16xbf16>, vector<16x128xbf16>, vector<64x128xf32> -> vector<64x128xf32>
    %55 = arith.addf %31, %54 : vector<64x128xf32>
    %56 = vector.extract_strided_slice %1 {offsets = [0, 32], sizes = [64, 16], strides = [1, 1]} : vector<64x384xbf16> to vector<64x16xbf16>
    %57 = vector.extract_strided_slice %1 {offsets = [0, 160], sizes = [64, 16], strides = [1, 1]} : vector<64x384xbf16> to vector<64x16xbf16>
    %58 = vector.extract_strided_slice %1 {offsets = [0, 288], sizes = [64, 16], strides = [1, 1]} : vector<64x384xbf16> to vector<64x16xbf16>
    %59 = arith.extf %56 : vector<64x16xbf16> to vector<64x16xf32>
    %cst_20 = arith.constant 2.500000e-01 : f32
    %60 = vector.broadcast %cst_20 : f32 to vector<64x16xf32>
    %61 = arith.mulf %59, %60 : vector<64x16xf32>
    %62 = arith.truncf %61 : vector<64x16xf32> to vector<64x16xbf16>
    %cst_21 = arith.constant dense<0.000000e+00> : vector<64x64xf32>
    %63 = tpu.matmul %62, %57, %cst_21 {dimension_numbers = #tpu.dot_dimension_numbers<[1], [1], [0], [0], [0, 0, 1, 0], [], []>} : vector<64x16xbf16>, vector<64x16xbf16>, vector<64x64xf32> -> vector<64x64xf32>
    %cst_22 = arith.constant dense<0xFF800000> : vector<64xf32>
    %64 = vector.multi_reduction <maximumf>, %63, %cst_22 [1] : vector<64x64xf32> to vector<64xf32>
    %65 = vector.shape_cast %64 : vector<64xf32> to vector<64x1xf32>
    %66 = vector.broadcast %65 : vector<64x1xf32> to vector<64x64xf32>
    %67 = arith.subf %63, %66 : vector<64x64xf32>
    %68 = math.exp %67 : vector<64x64xf32>
    %cst_23 = arith.constant dense<0.000000e+00> : vector<64xf32>
    %69 = vector.multi_reduction <add>, %68, %cst_23 [1] : vector<64x64xf32> to vector<64xf32>
    %70 = vector.shape_cast %69 : vector<64xf32> to vector<64x1xf32>
    %71 = arith.truncf %68 : vector<64x64xf32> to vector<64x64xbf16>
    %cst_24 = arith.constant dense<0.000000e+00> : vector<64x16xf32>
    %72 = tpu.matmul %71, %58, %cst_24 {dimension_numbers = #tpu.dot_dimension_numbers<[1], [0], [0], [1], [0, 0, 1, 1], [], []>} : vector<64x64xbf16>, vector<64x16xbf16>, vector<64x16xf32> -> vector<64x16xf32>
    %73 = tpu.reciprocal %70 {approx = true} : vector<64x1xf32> -> vector<64x1xf32>
    %74 = vector.broadcast %73 : vector<64x1xf32> to vector<64x16xf32>
    %75 = arith.mulf %72, %74 : vector<64x16xf32>
    %76 = arith.truncf %75 : vector<64x16xf32> to vector<64x16xbf16>
    %77 = vector.extract_strided_slice %2 {offsets = [32, 0], sizes = [16, 128], strides = [1, 1]} : vector<128x128xbf16> to vector<16x128xbf16>
    %cst_25 = arith.constant dense<0.000000e+00> : vector<64x128xf32>
    %78 = tpu.matmul %76, %77, %cst_25 {dimension_numbers = #tpu.dot_dimension_numbers<[1], [0], [0], [1], [0, 0, 1, 1], [], []>} : vector<64x16xbf16>, vector<16x128xbf16>, vector<64x128xf32> -> vector<64x128xf32>
    %79 = arith.addf %55, %78 : vector<64x128xf32>
    %80 = vector.extract_strided_slice %1 {offsets = [0, 48], sizes = [64, 16], strides = [1, 1]} : vector<64x384xbf16> to vector<64x16xbf16>
    %81 = vector.extract_strided_slice %1 {offsets = [0, 176], sizes = [64, 16], strides = [1, 1]} : vector<64x384xbf16> to vector<64x16xbf16>
    %82 = vector.extract_strided_slice %1 {offsets = [0, 304], sizes = [64, 16], strides = [1, 1]} : vector<64x384xbf16> to vector<64x16xbf16>
    %83 = arith.extf %80 : vector<64x16xbf16> to vector<64x16xf32>
    %cst_26 = arith.constant 2.500000e-01 : f32
    %84 = vector.broadcast %cst_26 : f32 to vector<64x16xf32>
    %85 = arith.mulf %83, %84 : vector<64x16xf32>
    %86 = arith.truncf %85 : vector<64x16xf32> to vector<64x16xbf16>
    %cst_27 = arith.constant dense<0.000000e+00> : vector<64x64xf32>
    %87 = tpu.matmul %86, %81, %cst_27 {dimension_numbers = #tpu.dot_dimension_numbers<[1], [1], [0], [0], [0, 0, 1, 0], [], []>} : vector<64x16xbf16>, vector<64x16xbf16>, vector<64x64xf32> -> vector<64x64xf32>
    %cst_28 = arith.constant dense<0xFF800000> : vector<64xf32>
    %88 = vector.multi_reduction <maximumf>, %87, %cst_28 [1] : vector<64x64xf32> to vector<64xf32>
    %89 = vector.shape_cast %88 : vector<64xf32> to vector<64x1xf32>
    %90 = vector.broadcast %89 : vector<64x1xf32> to vector<64x64xf32>
    %91 = arith.subf %87, %90 : vector<64x64xf32>
    %92 = math.exp %91 : vector<64x64xf32>
    %cst_29 = arith.constant dense<0.000000e+00> : vector<64xf32>
    %93 = vector.multi_reduction <add>, %92, %cst_29 [1] : vector<64x64xf32> to vector<64xf32>
    %94 = vector.shape_cast %93 : vector<64xf32> to vector<64x1xf32>
    %95 = arith.truncf %92 : vector<64x64xf32> to vector<64x64xbf16>
    %cst_30 = arith.constant dense<0.000000e+00> : vector<64x16xf32>
    %96 = tpu.matmul %95, %82, %cst_30 {dimension_numbers = #tpu.dot_dimension_numbers<[1], [0], [0], [1], [0, 0, 1, 1], [], []>} : vector<64x64xbf16>, vector<64x16xbf16>, vector<64x16xf32> -> vector<64x16xf32>
    %97 = tpu.reciprocal %94 {approx = true} : vector<64x1xf32> -> vector<64x1xf32>
    %98 = vector.broadcast %97 : vector<64x1xf32> to vector<64x16xf32>
    %99 = arith.mulf %96, %98 : vector<64x16xf32>
    %100 = arith.truncf %99 : vector<64x16xf32> to vector<64x16xbf16>
    %101 = vector.extract_strided_slice %2 {offsets = [48, 0], sizes = [16, 128], strides = [1, 1]} : vector<128x128xbf16> to vector<16x128xbf16>
    %cst_31 = arith.constant dense<0.000000e+00> : vector<64x128xf32>
    %102 = tpu.matmul %100, %101, %cst_31 {dimension_numbers = #tpu.dot_dimension_numbers<[1], [0], [0], [1], [0, 0, 1, 1], [], []>} : vector<64x16xbf16>, vector<16x128xbf16>, vector<64x128xf32> -> vector<64x128xf32>
    %103 = arith.addf %79, %102 : vector<64x128xf32>
    %104 = vector.extract_strided_slice %1 {offsets = [0, 64], sizes = [64, 16], strides = [1, 1]} : vector<64x384xbf16> to vector<64x16xbf16>
    %105 = vector.extract_strided_slice %1 {offsets = [0, 192], sizes = [64, 16], strides = [1, 1]} : vector<64x384xbf16> to vector<64x16xbf16>
    %106 = vector.extract_strided_slice %1 {offsets = [0, 320], sizes = [64, 16], strides = [1, 1]} : vector<64x384xbf16> to vector<64x16xbf16>
    %107 = arith.extf %104 : vector<64x16xbf16> to vector<64x16xf32>
    %cst_32 = arith.constant 2.500000e-01 : f32
    %108 = vector.broadcast %cst_32 : f32 to vector<64x16xf32>
    %109 = arith.mulf %107, %108 : vector<64x16xf32>
    %110 = arith.truncf %109 : vector<64x16xf32> to vector<64x16xbf16>
    %cst_33 = arith.constant dense<0.000000e+00> : vector<64x64xf32>
    %111 = tpu.matmul %110, %105, %cst_33 {dimension_numbers = #tpu.dot_dimension_numbers<[1], [1], [0], [0], [0, 0, 1, 0], [], []>} : vector<64x16xbf16>, vector<64x16xbf16>, vector<64x64xf32> -> vector<64x64xf32>
    %cst_34 = arith.constant dense<0xFF800000> : vector<64xf32>
    %112 = vector.multi_reduction <maximumf>, %111, %cst_34 [1] : vector<64x64xf32> to vector<64xf32>
    %113 = vector.shape_cast %112 : vector<64xf32> to vector<64x1xf32>
    %114 = vector.broadcast %113 : vector<64x1xf32> to vector<64x64xf32>
    %115 = arith.subf %111, %114 : vector<64x64xf32>
    %116 = math.exp %115 : vector<64x64xf32>
    %cst_35 = arith.constant dense<0.000000e+00> : vector<64xf32>
    %117 = vector.multi_reduction <add>, %116, %cst_35 [1] : vector<64x64xf32> to vector<64xf32>
    %118 = vector.shape_cast %117 : vector<64xf32> to vector<64x1xf32>
    %119 = arith.truncf %116 : vector<64x64xf32> to vector<64x64xbf16>
    %cst_36 = arith.constant dense<0.000000e+00> : vector<64x16xf32>
    %120 = tpu.matmul %119, %106, %cst_36 {dimension_numbers = #tpu.dot_dimension_numbers<[1], [0], [0], [1], [0, 0, 1, 1], [], []>} : vector<64x64xbf16>, vector<64x16xbf16>, vector<64x16xf32> -> vector<64x16xf32>
    %121 = tpu.reciprocal %118 {approx = true} : vector<64x1xf32> -> vector<64x1xf32>
    %122 = vector.broadcast %121 : vector<64x1xf32> to vector<64x16xf32>
    %123 = arith.mulf %120, %122 : vector<64x16xf32>
    %124 = arith.truncf %123 : vector<64x16xf32> to vector<64x16xbf16>
    %125 = vector.extract_strided_slice %2 {offsets = [64, 0], sizes = [16, 128], strides = [1, 1]} : vector<128x128xbf16> to vector<16x128xbf16>
    %cst_37 = arith.constant dense<0.000000e+00> : vector<64x128xf32>
    %126 = tpu.matmul %124, %125, %cst_37 {dimension_numbers = #tpu.dot_dimension_numbers<[1], [0], [0], [1], [0, 0, 1, 1], [], []>} : vector<64x16xbf16>, vector<16x128xbf16>, vector<64x128xf32> -> vector<64x128xf32>
    %127 = arith.addf %103, %126 : vector<64x128xf32>
    %128 = vector.extract_strided_slice %1 {offsets = [0, 80], sizes = [64, 16], strides = [1, 1]} : vector<64x384xbf16> to vector<64x16xbf16>
    %129 = vector.extract_strided_slice %1 {offsets = [0, 208], sizes = [64, 16], strides = [1, 1]} : vector<64x384xbf16> to vector<64x16xbf16>
    %130 = vector.extract_strided_slice %1 {offsets = [0, 336], sizes = [64, 16], strides = [1, 1]} : vector<64x384xbf16> to vector<64x16xbf16>
    %131 = arith.extf %128 : vector<64x16xbf16> to vector<64x16xf32>
    %cst_38 = arith.constant 2.500000e-01 : f32
    %132 = vector.broadcast %cst_38 : f32 to vector<64x16xf32>
    %133 = arith.mulf %131, %132 : vector<64x16xf32>
    %134 = arith.truncf %133 : vector<64x16xf32> to vector<64x16xbf16>
    %cst_39 = arith.constant dense<0.000000e+00> : vector<64x64xf32>
    %135 = tpu.matmul %134, %129, %cst_39 {dimension_numbers = #tpu.dot_dimension_numbers<[1], [1], [0], [0], [0, 0, 1, 0], [], []>} : vector<64x16xbf16>, vector<64x16xbf16>, vector<64x64xf32> -> vector<64x64xf32>
    %cst_40 = arith.constant dense<0xFF800000> : vector<64xf32>
    %136 = vector.multi_reduction <maximumf>, %135, %cst_40 [1] : vector<64x64xf32> to vector<64xf32>
    %137 = vector.shape_cast %136 : vector<64xf32> to vector<64x1xf32>
    %138 = vector.broadcast %137 : vector<64x1xf32> to vector<64x64xf32>
    %139 = arith.subf %135, %138 : vector<64x64xf32>
    %140 = math.exp %139 : vector<64x64xf32>
    %cst_41 = arith.constant dense<0.000000e+00> : vector<64xf32>
    %141 = vector.multi_reduction <add>, %140, %cst_41 [1] : vector<64x64xf32> to vector<64xf32>
    %142 = vector.shape_cast %141 : vector<64xf32> to vector<64x1xf32>
    %143 = arith.truncf %140 : vector<64x64xf32> to vector<64x64xbf16>
    %cst_42 = arith.constant dense<0.000000e+00> : vector<64x16xf32>
    %144 = tpu.matmul %143, %130, %cst_42 {dimension_numbers = #tpu.dot_dimension_numbers<[1], [0], [0], [1], [0, 0, 1, 1], [], []>} : vector<64x64xbf16>, vector<64x16xbf16>, vector<64x16xf32> -> vector<64x16xf32>
    %145 = tpu.reciprocal %142 {approx = true} : vector<64x1xf32> -> vector<64x1xf32>
    %146 = vector.broadcast %145 : vector<64x1xf32> to vector<64x16xf32>
    %147 = arith.mulf %144, %146 : vector<64x16xf32>
    %148 = arith.truncf %147 : vector<64x16xf32> to vector<64x16xbf16>
    %149 = vector.extract_strided_slice %2 {offsets = [80, 0], sizes = [16, 128], strides = [1, 1]} : vector<128x128xbf16> to vector<16x128xbf16>
    %cst_43 = arith.constant dense<0.000000e+00> : vector<64x128xf32>
    %150 = tpu.matmul %148, %149, %cst_43 {dimension_numbers = #tpu.dot_dimension_numbers<[1], [0], [0], [1], [0, 0, 1, 1], [], []>} : vector<64x16xbf16>, vector<16x128xbf16>, vector<64x128xf32> -> vector<64x128xf32>
    %151 = arith.addf %127, %150 : vector<64x128xf32>
    %152 = vector.extract_strided_slice %1 {offsets = [0, 96], sizes = [64, 16], strides = [1, 1]} : vector<64x384xbf16> to vector<64x16xbf16>
    %153 = vector.extract_strided_slice %1 {offsets = [0, 224], sizes = [64, 16], strides = [1, 1]} : vector<64x384xbf16> to vector<64x16xbf16>
    %154 = vector.extract_strided_slice %1 {offsets = [0, 352], sizes = [64, 16], strides = [1, 1]} : vector<64x384xbf16> to vector<64x16xbf16>
    %155 = arith.extf %152 : vector<64x16xbf16> to vector<64x16xf32>
    %cst_44 = arith.constant 2.500000e-01 : f32
    %156 = vector.broadcast %cst_44 : f32 to vector<64x16xf32>
    %157 = arith.mulf %155, %156 : vector<64x16xf32>
    %158 = arith.truncf %157 : vector<64x16xf32> to vector<64x16xbf16>
    %cst_45 = arith.constant dense<0.000000e+00> : vector<64x64xf32>
    %159 = tpu.matmul %158, %153, %cst_45 {dimension_numbers = #tpu.dot_dimension_numbers<[1], [1], [0], [0], [0, 0, 1, 0], [], []>} : vector<64x16xbf16>, vector<64x16xbf16>, vector<64x64xf32> -> vector<64x64xf32>
    %cst_46 = arith.constant dense<0xFF800000> : vector<64xf32>
    %160 = vector.multi_reduction <maximumf>, %159, %cst_46 [1] : vector<64x64xf32> to vector<64xf32>
    %161 = vector.shape_cast %160 : vector<64xf32> to vector<64x1xf32>
    %162 = vector.broadcast %161 : vector<64x1xf32> to vector<64x64xf32>
    %163 = arith.subf %159, %162 : vector<64x64xf32>
    %164 = math.exp %163 : vector<64x64xf32>
    %cst_47 = arith.constant dense<0.000000e+00> : vector<64xf32>
    %165 = vector.multi_reduction <add>, %164, %cst_47 [1] : vector<64x64xf32> to vector<64xf32>
    %166 = vector.shape_cast %165 : vector<64xf32> to vector<64x1xf32>
    %167 = arith.truncf %164 : vector<64x64xf32> to vector<64x64xbf16>
    %cst_48 = arith.constant dense<0.000000e+00> : vector<64x16xf32>
    %168 = tpu.matmul %167, %154, %cst_48 {dimension_numbers = #tpu.dot_dimension_numbers<[1], [0], [0], [1], [0, 0, 1, 1], [], []>} : vector<64x64xbf16>, vector<64x16xbf16>, vector<64x16xf32> -> vector<64x16xf32>
    %169 = tpu.reciprocal %166 {approx = true} : vector<64x1xf32> -> vector<64x1xf32>
    %170 = vector.broadcast %169 : vector<64x1xf32> to vector<64x16xf32>
    %171 = arith.mulf %168, %170 : vector<64x16xf32>
    %172 = arith.truncf %171 : vector<64x16xf32> to vector<64x16xbf16>
    %173 = vector.extract_strided_slice %2 {offsets = [96, 0], sizes = [16, 128], strides = [1, 1]} : vector<128x128xbf16> to vector<16x128xbf16>
    %cst_49 = arith.constant dense<0.000000e+00> : vector<64x128xf32>
    %174 = tpu.matmul %172, %173, %cst_49 {dimension_numbers = #tpu.dot_dimension_numbers<[1], [0], [0], [1], [0, 0, 1, 1], [], []>} : vector<64x16xbf16>, vector<16x128xbf16>, vector<64x128xf32> -> vector<64x128xf32>
    %175 = arith.addf %151, %174 : vector<64x128xf32>
    %176 = vector.extract_strided_slice %1 {offsets = [0, 112], sizes = [64, 16], strides = [1, 1]} : vector<64x384xbf16> to vector<64x16xbf16>
    %177 = vector.extract_strided_slice %1 {offsets = [0, 240], sizes = [64, 16], strides = [1, 1]} : vector<64x384xbf16> to vector<64x16xbf16>
    %178 = vector.extract_strided_slice %1 {offsets = [0, 368], sizes = [64, 16], strides = [1, 1]} : vector<64x384xbf16> to vector<64x16xbf16>
    %179 = arith.extf %176 : vector<64x16xbf16> to vector<64x16xf32>
    %cst_50 = arith.constant 2.500000e-01 : f32
    %180 = vector.broadcast %cst_50 : f32 to vector<64x16xf32>
    %181 = arith.mulf %179, %180 : vector<64x16xf32>
    %182 = arith.truncf %181 : vector<64x16xf32> to vector<64x16xbf16>
    %cst_51 = arith.constant dense<0.000000e+00> : vector<64x64xf32>
    %183 = tpu.matmul %182, %177, %cst_51 {dimension_numbers = #tpu.dot_dimension_numbers<[1], [1], [0], [0], [0, 0, 1, 0], [], []>} : vector<64x16xbf16>, vector<64x16xbf16>, vector<64x64xf32> -> vector<64x64xf32>
    %cst_52 = arith.constant dense<0xFF800000> : vector<64xf32>
    %184 = vector.multi_reduction <maximumf>, %183, %cst_52 [1] : vector<64x64xf32> to vector<64xf32>
    %185 = vector.shape_cast %184 : vector<64xf32> to vector<64x1xf32>
    %186 = vector.broadcast %185 : vector<64x1xf32> to vector<64x64xf32>
    %187 = arith.subf %183, %186 : vector<64x64xf32>
    %188 = math.exp %187 : vector<64x64xf32>
    %cst_53 = arith.constant dense<0.000000e+00> : vector<64xf32>
    %189 = vector.multi_reduction <add>, %188, %cst_53 [1] : vector<64x64xf32> to vector<64xf32>
    %190 = vector.shape_cast %189 : vector<64xf32> to vector<64x1xf32>
    %191 = arith.truncf %188 : vector<64x64xf32> to vector<64x64xbf16>
    %cst_54 = arith.constant dense<0.000000e+00> : vector<64x16xf32>
    %192 = tpu.matmul %191, %178, %cst_54 {dimension_numbers = #tpu.dot_dimension_numbers<[1], [0], [0], [1], [0, 0, 1, 1], [], []>} : vector<64x64xbf16>, vector<64x16xbf16>, vector<64x16xf32> -> vector<64x16xf32>
    %193 = tpu.reciprocal %190 {approx = true} : vector<64x1xf32> -> vector<64x1xf32>
    %194 = vector.broadcast %193 : vector<64x1xf32> to vector<64x16xf32>
    %195 = arith.mulf %192, %194 : vector<64x16xf32>
    %196 = arith.truncf %195 : vector<64x16xf32> to vector<64x16xbf16>
    %197 = vector.extract_strided_slice %2 {offsets = [112, 0], sizes = [16, 128], strides = [1, 1]} : vector<128x128xbf16> to vector<16x128xbf16>
    %cst_55 = arith.constant dense<0.000000e+00> : vector<64x128xf32>
    %198 = tpu.matmul %196, %197, %cst_55 {dimension_numbers = #tpu.dot_dimension_numbers<[1], [0], [0], [1], [0, 0, 1, 1], [], []>} : vector<64x16xbf16>, vector<16x128xbf16>, vector<64x128xf32> -> vector<64x128xf32>
    %199 = arith.addf %175, %198 : vector<64x128xf32>
    %c0_56 = arith.constant 0 : index
    %c0_57 = arith.constant 0 : index
    %c0_58 = arith.constant 0 : index
    %200 = vector.load %arg5[%c0_56, %c0_57, %c0_58] : memref<1x64x128xf32, #tpu.memory_space<vmem>>, vector<1x64x128xf32>
    %201 = vector.shape_cast %200 : vector<1x64x128xf32> to vector<64x128xf32>
    %202 = vector.shape_cast %199 : vector<64x128xf32> to vector<1x64x128xf32>
    tpu.vector_store %arg5[%c0_56, %c0_57, %c0_58], %202 {strides = array<i32>} : memref<1x64x128xf32, #tpu.memory_space<vmem>>, vector<1x64x128xf32>,
    return
  }
  func.func @transform_0(%arg0: i32) -> (i32, i32, i32) {
    %c0_i32 = arith.constant 0 : i32
    %c0_i32_0 = arith.constant 0 : i32
    %c0_i32_1 = arith.constant 0 : i32
    return %arg0, %c0_i32, %c0_i32_0 : i32, i32, i32
  }
  func.func @transform_1(%arg0: i32) -> (i32, i32) {
    %c0_i32 = arith.constant 0 : i32
    %c0_i32_0 = arith.constant 0 : i32
    %c0_i32_1 = arith.constant 0 : i32
    return %c0_i32, %c0_i32_0 : i32, i32
  }
  func.func @transform_2(%arg0: i32) -> (i32, i32) {
    %c0_i32 = arith.constant 0 : i32
    %c0_i32_0 = arith.constant 0 : i32
    %c0_i32_1 = arith.constant 0 : i32
    return %c0_i32, %c0_i32_0 : i32, i32
  }
  func.func @transform_3(%arg0: i32) -> (i32, i32, i32) {
    %c0_i32 = arith.constant 0 : i32
    %c0_i32_0 = arith.constant 0 : i32
    %c0_i32_1 = arith.constant 0 : i32
    return %arg0, %c0_i32, %c0_i32_0 : i32, i32, i32
  }
  func.func @transform_4(%arg0: i32) -> (i32, i32, i32) {
    %c0_i32 = arith.constant 0 : i32
    %c0_i32_0 = arith.constant 0 : i32
    %c0_i32_1 = arith.constant 0 : i32
    return %arg0, %c0_i32, %c0_i32_0 : i32, i32, i32
  }
}

</mosaic_0001>

<llo_original>
// kernel: global_attention_block.3
$region0: #{global_attention_block.3}
  #allocation0 [shape = 'u32[]', space=smem, size = 0x4, offset = 0x4, fixed_abs, tag = 'smem constant byte address 0x4 - core index']
  #allocation1 [shape = 'u32[144,128]{1,0:T(1,128)}', space=vmem, size = 0x12000, scoped, tag = 'internal scratch']
  %s0 = inlined_call_operand.hbm [shape: f32[128,128], index: 0, kind: input, shape index: {}]
  %s1 = inlined_call_operand.vmem [shape: f32[1,128], index: 1, kind: input, shape index: {}]
  %s2 = inlined_call_operand.vmem [shape: f32[1,128], index: 2, kind: input, shape index: {}]
  %s3 = inlined_call_operand.hbm [shape: bf16[128,384], index: 3, kind: input, shape index: {}]
  %s4 = inlined_call_operand.vmem [shape: f32[1,384], index: 4, kind: input, shape index: {}]
  %s5 = inlined_call_operand.vmem [shape: bf16[128,384], index: 5, kind: output, shape index: {}]
  %s6 = sld [smem:[#allocation0]]
  $region38: #{global_attention_block.3} parent=0
    _
  %s8 = ssub.s32 1, %s6
  %s9 = scalar_select 0, %s8, %s6
  $region1: #{global_attention_block.3} parent=0
    #allocation2 [shape = 'u8[65536]{0}', space=vmem, size = 0x10000, scoped, tag = 'input window, operand 0, single buffered']
    #allocation3 [shape = 's32[1]{0}', space=sflag, size = 0x4, scoped, tag = 'scoped memory for global_attention_block.3']
    #allocation4 [shape = 'u8[98304]{0}', space=vmem, size = 0x18000, scoped, tag = 'input window, operand 3, single buffered']
    #allocation5 [shape = 's32[1]{0}', space=sflag, size = 0x4, scoped, tag = 'scoped memory for global_attention_block.3']
    %10 = vsyncpa [#allocation3], 0
    %11 = vsyncpa [#allocation5], 0
    // Predicated region
    $region2: #{global_attention_block.3} parent=1 // pred_check
      _
    $region3: #{global_attention_block.3} parent=1 // pred_check_branch
      %13 = sbr.rel (0) target = $region5
    $region4: #{global_attention_block.3} parent=1 // pred_region
      %s15 = ssub.s32 2048, 2048
      %16 = vsyncadd [#allocation3], %s15
      %s17 = sshll.u32 [#allocation2], 4
      %s18 = int_to_ptr.vmem [resolvable:$true] %s17
      %23 = dma.hbm_to_vmem [thread:$0]  %s0, 2048, %s18, [#allocation3], 128, 128, 8
    $region5: #{global_attention_block.3} parent=1 // pred_fallthru
      _
    // Predicated region
    $region6: #{global_attention_block.3} parent=1 // pred_check
      _
    $region7: #{global_attention_block.3} parent=1 // pred_check_branch
      %25 = sbr.rel (0) target = $region9
    $region8: #{global_attention_block.3} parent=1 // pred_region
      _
    $region9: #{global_attention_block.3} parent=1 // pred_fallthru
      _
    // Predicated region
    $region10: #{global_attention_block.3} parent=1 // pred_check
      _
    $region11: #{global_attention_block.3} parent=1 // pred_check_branch
      %27 = sbr.rel (0) target = $region13
    $region12: #{global_attention_block.3} parent=1 // pred_region
      _
    $region13: #{global_attention_block.3} parent=1 // pred_fallthru
      _
    // Predicated region
    $region14: #{global_attention_block.3} parent=1 // pred_check
      _
    $region15: #{global_attention_block.3} parent=1 // pred_check_branch
      %29 = sbr.rel (0) target = $region17
    $region16: #{global_attention_block.3} parent=1 // pred_region
      %s31 = ssub.s32 3072, 3072
      %32 = vsyncadd [#allocation5], %s31
      %s33 = sshll.u32 [#allocation4], 4
      %s34 = int_to_ptr.vmem [resolvable:$true] %s33
      %39 = dma.hbm_to_vmem [thread:$0]  %s3, 3072, %s34, [#allocation5], 192, 192, 12
    $region17: #{global_attention_block.3} parent=1 // pred_fallthru
      _
    // Predicated region
    $region18: #{global_attention_block.3} parent=1 // pred_check
      _
    $region19: #{global_attention_block.3} parent=1 // pred_check_branch
      %41 = sbr.rel (0) target = $region21
    $region20: #{global_attention_block.3} parent=1 // pred_region
      _
    $region21: #{global_attention_block.3} parent=1 // pred_fallthru
      _
    // Predicated region
    $region22: #{global_attention_block.3} parent=1 // pred_check
      _
    $region23: #{global_attention_block.3} parent=1 // pred_check_branch
      %43 = sbr.rel (0) target = $region25
    $region24: #{global_attention_block.3} parent=1 // pred_region
      %44 = dma.done [#allocation3], 2048
    $region25: #{global_attention_block.3} parent=1 // pred_fallthru
      _
    // Predicated region
    $region26: #{global_attention_block.3} parent=1 // pred_check
      _
    $region27: #{global_attention_block.3} parent=1 // pred_check_branch
      %46 = sbr.rel (0) target = $region29
    $region28: #{global_attention_block.3} parent=1 // pred_region
      %47 = dma.done [#allocation5], 3072
    $region29: #{global_attention_block.3} parent=1 // pred_fallthru
      _
    %v49 = vld [vmem:[#allocation2] sm:$0xff]
    %v50 = vld [vmem:[#allocation2 + $0x8] sm:$0xff]
    %v51 = vld [vmem:[#allocation2 + $0x10] sm:$0xff]
    %v52 = vld [vmem:[#allocation2 + $0x18] sm:$0xff]
    %v53 = vld [vmem:[#allocation2 + $0x20] sm:$0xff]
    %v54 = vld [vmem:[#allocation2 + $0x28] sm:$0xff]
    %v55 = vld [vmem:[#allocation2 + $0x30] sm:$0xff]
    %v56 = vld [vmem:[#allocation2 + $0x38] sm:$0xff]
    %v57 = vld [vmem:[#allocation2 + $0x40] sm:$0xff]
    %v58 = vld [vmem:[#allocation2 + $0x48] sm:$0xff]
    %v59 = vld [vmem:[#allocation2 + $0x50] sm:$0xff]
    %v60 = vld [vmem:[#allocation2 + $0x58] sm:$0xff]
    %v61 = vld [vmem:[#allocation2 + $0x60] sm:$0xff]
    %v62 = vld [vmem:[#allocation2 + $0x68] sm:$0xff]
    %v63 = vld [vmem:[#allocation2 + $0x70] sm:$0xff]
    %v64 = vld [vmem:[#allocation2 + $0x78] sm:$0xff]
    %v65 = vld [vmem:[%s1] sm:$0x1]
    %v66 = vld [vmem:[%s2] sm:$0x1]
    %67 = vadd.xlane.f32.xlu0 %v49
    %v68 = vpop.xlane.xlu0 %67
    %69 = vadd.xlane.f32.xlu0 %v50
    %v70 = vpop.xlane.xlu0 %69
    %71 = vadd.xlane.f32.xlu0 %v51
    %v72 = vpop.xlane.xlu0 %71
    %73 = vadd.xlane.f32.xlu0 %v52
    %v74 = vpop.xlane.xlu0 %73
    %75 = vadd.xlane.f32.xlu0 %v53
    %v76 = vpop.xlane.xlu0 %75
    %77 = vadd.xlane.f32.xlu0 %v54
    %v78 = vpop.xlane.xlu0 %77
    %79 = vadd.xlane.f32.xlu0 %v55
    %v80 = vpop.xlane.xlu0 %79
    %81 = vadd.xlane.f32.xlu0 %v56
    %v82 = vpop.xlane.xlu0 %81
    %83 = vadd.xlane.f32.xlu0 %v57
    %v84 = vpop.xlane.xlu0 %83
    %85 = vadd.xlane.f32.xlu0 %v58
    %v86 = vpop.xlane.xlu0 %85
    %87 = vadd.xlane.f32.xlu0 %v59
    %v88 = vpop.xlane.xlu0 %87
    %89 = vadd.xlane.f32.xlu0 %v60
    %v90 = vpop.xlane.xlu0 %89
    %91 = vadd.xlane.f32.xlu0 %v61
    %v92 = vpop.xlane.xlu0 %91
    %93 = vadd.xlane.f32.xlu0 %v62
    %v94 = vpop.xlane.xlu0 %93
    %95 = vadd.xlane.f32.xlu0 %v63
    %v96 = vpop.xlane.xlu0 %95
    %97 = vadd.xlane.f32.xlu0 %v64
    %v98 = vpop.xlane.xlu0 %97
    %v99 = vrcp.pop 128.0
    %v100 = vmul.f32 %v68, %v99
    %v101 = vmul.f32 %v70, %v99
    %v102 = vmul.f32 %v72, %v99
    %v103 = vmul.f32 %v74, %v99
    %v104 = vmul.f32 %v76, %v99
    %v105 = vmul.f32 %v78, %v99
    %v106 = vmul.f32 %v80, %v99
    %v107 = vmul.f32 %v82, %v99
    %v108 = vmul.f32 %v84, %v99
    %v109 = vmul.f32 %v86, %v99
    %v110 = vmul.f32 %v88, %v99
    %v111 = vmul.f32 %v90, %v99
    %v112 = vmul.f32 %v92, %v99
    %v113 = vmul.f32 %v94, %v99
    %v114 = vmul.f32 %v96, %v99
    %v115 = vmul.f32 %v98, %v99
    %v116 = vsub.f32 %v49, %v100
    %v117 = vsub.f32 %v50, %v101
    %v118 = vsub.f32 %v51, %v102
    %v119 = vsub.f32 %v52, %v103
    %v120 = vsub.f32 %v53, %v104
    %v121 = vsub.f32 %v54, %v105
    %v122 = vsub.f32 %v55, %v106
    %v123 = vsub.f32 %v56, %v107
    %v124 = vsub.f32 %v57, %v108
    %v125 = vsub.f32 %v58, %v109
    %v126 = vsub.f32 %v59, %v110
    %v127 = vsub.f32 %v60, %v111
    %v128 = vsub.f32 %v61, %v112
    %v129 = vsub.f32 %v62, %v113
    %v130 = vsub.f32 %v63, %v114
    %v131 = vsub.f32 %v64, %v115
    %v132 = vmul.f32 %v116, %v116
    %v133 = vmul.f32 %v117, %v117
    %v134 = vmul.f32 %v118, %v118
    %v135 = vmul.f32 %v119, %v119
    %v136 = vmul.f32 %v120, %v120
    %v137 = vmul.f32 %v121, %v121
    %v138 = vmul.f32 %v122, %v122
    %v139 = vmul.f32 %v123, %v123
    %v140 = vmul.f32 %v124, %v124
    %v141 = vmul.f32 %v125, %v125
    %v142 = vmul.f32 %v126, %v126
    %v143 = vmul.f32 %v127, %v127
    %v144 = vmul.f32 %v128, %v128
    %v145 = vmul.f32 %v129, %v129
    %v146 = vmul.f32 %v130, %v130
    %v147 = vmul.f32 %v131, %v131
    %148 = vadd.xlane.f32.xlu0 %v132
    %v149 = vpop.xlane.xlu0 %148
    %150 = vadd.xlane.f32.xlu0 %v133
    %v151 = vpop.xlane.xlu0 %150
    %152 = vadd.xlane.f32.xlu0 %v134
    %v153 = vpop.xlane.xlu0 %152
    %154 = vadd.xlane.f32.xlu0 %v135
    %v155 = vpop.xlane.xlu0 %154
    %156 = vadd.xlane.f32.xlu0 %v136
    %v157 = vpop.xlane.xlu0 %156
    %158 = vadd.xlane.f32.xlu0 %v137
    %v159 = vpop.xlane.xlu0 %158
    %160 = vadd.xlane.f32.xlu0 %v138
    %v161 = vpop.xlane.xlu0 %160
    %162 = vadd.xlane.f32.xlu0 %v139
    %v163 = vpop.xlane.xlu0 %162
    %164 = vadd.xlane.f32.xlu0 %v140
    %v165 = vpop.xlane.xlu0 %164
    %166 = vadd.xlane.f32.xlu0 %v141
    %v167 = vpop.xlane.xlu0 %166
    %168 = vadd.xlane.f32.xlu0 %v142
    %v169 = vpop.xlane.xlu0 %168
    %170 = vadd.xlane.f32.xlu0 %v143
    %v171 = vpop.xlane.xlu0 %170
    %172 = vadd.xlane.f32.xlu0 %v144
    %v173 = vpop.xlane.xlu0 %172
    %174 = vadd.xlane.f32.xlu0 %v145
    %v175 = vpop.xlane.xlu0 %174
    %176 = vadd.xlane.f32.xlu0 %v146
    %v177 = vpop.xlane.xlu0 %176
    %178 = vadd.xlane.f32.xlu0 %v147
    %v179 = vpop.xlane.xlu0 %178
    %v180 = vmul.f32 %v149, %v99
    %v181 = vmul.f32 %v151, %v99
    %v182 = vmul.f32 %v153, %v99
    %v183 = vmul.f32 %v155, %v99
    %v184 = vmul.f32 %v157, %v99
    %v185 = vmul.f32 %v159, %v99
    %v186 = vmul.f32 %v161, %v99
    %v187 = vmul.f32 %v163, %v99
    %v188 = vmul.f32 %v165, %v99
    %v189 = vmul.f32 %v167, %v99
    %v190 = vmul.f32 %v169, %v99
    %v191 = vmul.f32 %v171, %v99
    %v192 = vmul.f32 %v173, %v99
    %v193 = vmul.f32 %v175, %v99
    %v194 = vmul.f32 %v177, %v99
    %v195 = vmul.f32 %v179, %v99
    %v196 = vadd.f32 %v180, 1e-05
    %v197 = vadd.f32 %v181, 1e-05
    %v198 = vadd.f32 %v182, 1e-05
    %v199 = vadd.f32 %v183, 1e-05
    %v200 = vadd.f32 %v184, 1e-05
    %v201 = vadd.f32 %v185, 1e-05
    %v202 = vadd.f32 %v186, 1e-05
    %v203 = vadd.f32 %v187, 1e-05
    %v204 = vadd.f32 %v188, 1e-05
    %v205 = vadd.f32 %v189, 1e-05
    %v206 = vadd.f32 %v190, 1e-05
    %v207 = vadd.f32 %v191, 1e-05
    %v208 = vadd.f32 %v192, 1e-05
    %v209 = vadd.f32 %v193, 1e-05
    %v210 = vadd.f32 %v194, 1e-05
    %v211 = vadd.f32 %v195, 1e-05
    %v212 = vrsqrt.pop %v196
    %v213 = vrsqrt.pop %v197
    %v214 = vrsqrt.pop %v198
    %v215 = vrsqrt.pop %v199
    %v216 = vrsqrt.pop %v200
    %v217 = vrsqrt.pop %v201
    %v218 = vrsqrt.pop %v202
    %v219 = vrsqrt.pop %v203
    %v220 = vrsqrt.pop %v204
    %v221 = vrsqrt.pop %v205
    %v222 = vrsqrt.pop %v206
    %v223 = vrsqrt.pop %v207
    %v224 = vrsqrt.pop %v208
    %v225 = vrsqrt.pop %v209
    %v226 = vrsqrt.pop %v210
    %v227 = vrsqrt.pop %v211
    %v228 = vmul.f32 %v116, %v212
    %v229 = vmul.f32 %v117, %v213
    %v230 = vmul.f32 %v118, %v214
    %v231 = vmul.f32 %v119, %v215
    %v232 = vmul.f32 %v120, %v216
    %v233 = vmul.f32 %v121, %v217
    %v234 = vmul.f32 %v122, %v218
    %v235 = vmul.f32 %v123, %v219
    %v236 = vmul.f32 %v124, %v220
    %v237 = vmul.f32 %v125, %v221
    %v238 = vmul.f32 %v126, %v222
    %v239 = vmul.f32 %v127, %v223
    %v240 = vmul.f32 %v128, %v224
    %v241 = vmul.f32 %v129, %v225
    %v242 = vmul.f32 %v130, %v226
    %v243 = vmul.f32 %v131, %v227
    %v245 = vlaneseq
    %v246 = vshrl.u32 %v245, 7
    %v247 = vsub.s32 0, %v246
    %v248 = vrot.slane %v65, %v247
    %v250 = vmul.f32 %v228, %v248
    %v251 = vmul.f32 %v229, %v248
    %v252 = vmul.f32 %v230, %v248
    %v253 = vmul.f32 %v231, %v248
    %v254 = vmul.f32 %v232, %v248
    %v255 = vmul.f32 %v233, %v248
    %v256 = vmul.f32 %v234, %v248
    %v257 = vmul.f32 %v235, %v248
    %v258 = vmul.f32 %v236, %v248
    %v259 = vmul.f32 %v237, %v248
    %v260 = vmul.f32 %v238, %v248
    %v261 = vmul.f32 %v239, %v248
    %v262 = vmul.f32 %v240, %v248
    %v263 = vmul.f32 %v241, %v248
    %v264 = vmul.f32 %v242, %v248
    %v265 = vmul.f32 %v243, %v248
    %v267 = vlaneseq
    %v268 = vshrl.u32 %v267, 7
    %v269 = vsub.s32 0, %v268
    %v270 = vrot.slane %v66, %v269
    %v272 = vadd.f32 %v250, %v270
    %v273 = vadd.f32 %v251, %v270
    %v274 = vadd.f32 %v252, %v270
    %v275 = vadd.f32 %v253, %v270
    %v276 = vadd.f32 %v254, %v270
    %v277 = vadd.f32 %v255, %v270
    %v278 = vadd.f32 %v256, %v270
    %v279 = vadd.f32 %v257, %v270
    %v280 = vadd.f32 %v258, %v270
    %v281 = vadd.f32 %v259, %v270
    %v282 = vadd.f32 %v260, %v270
    %v283 = vadd.f32 %v261, %v270
    %v284 = vadd.f32 %v262, %v270
    %v285 = vadd.f32 %v263, %v270
    %v286 = vadd.f32 %v264, %v270
    %v287 = vadd.f32 %v265, %v270
    %v288 = vpack.c.bf16 %v273, %v272
    %v289 = vpack.c.bf16 %v275, %v274
    %v290 = vpack.c.bf16 %v277, %v276
    %v291 = vpack.c.bf16 %v279, %v278
    %v292 = vpack.c.bf16 %v281, %v280
    %v293 = vpack.c.bf16 %v283, %v282
    %v294 = vpack.c.bf16 %v285, %v284
    %v295 = vpack.c.bf16 %v287, %v286
    %v296 = vld [vmem:[#allocation4] sm:$0xff]
    %v297 = vld [vmem:[#allocation4 + $0x8] sm:$0xf]
    %v298 = vld [vmem:[#allocation4 + $0xc] sm:$0xff]
    %v299 = vld [vmem:[#allocation4 + $0x14] sm:$0xf]
    %v300 = vld [vmem:[#allocation4 + $0x18] sm:$0xff]
    %v301 = vld [vmem:[#allocation4 + $0x20] sm:$0xf]
    %v302 = vld [vmem:[#allocation4 + $0x24] sm:$0xff]
    %v303 = vld [vmem:[#allocation4 + $0x2c] sm:$0xf]
    %v304 = vld [vmem:[#allocation4 + $0x30] sm:$0xff]
    %v305 = vld [vmem:[#allocation4 + $0x38] sm:$0xf]
    %v306 = vld [vmem:[#allocation4 + $0x3c] sm:$0xff]
    %v307 = vld [vmem:[#allocation4 + $0x44] sm:$0xf]
    %v308 = vld [vmem:[#allocation4 + $0x48] sm:$0xff]
    %v309 = vld [vmem:[#allocation4 + $0x50] sm:$0xf]
    %v310 = vld [vmem:[#allocation4 + $0x54] sm:$0xff]
    %v311 = vld [vmem:[#allocation4 + $0x5c] sm:$0xf]
    %v312 = vld [vmem:[#allocation4 + $0x60] sm:$0xff]
    %v313 = vld [vmem:[#allocation4 + $0x68] sm:$0xf]
    %v314 = vld [vmem:[#allocation4 + $0x6c] sm:$0xff]
    %v315 = vld [vmem:[#allocation4 + $0x74] sm:$0xf]
    %v316 = vld [vmem:[#allocation4 + $0x78] sm:$0xff]
    %v317 = vld [vmem:[#allocation4 + $0x80] sm:$0xf]
    %v318 = vld [vmem:[#allocation4 + $0x84] sm:$0xff]
    %v319 = vld [vmem:[#allocation4 + $0x8c] sm:$0xf]
    %v320 = vld [vmem:[#allocation4 + $0x90] sm:$0xff]
    %v321 = vld [vmem:[#allocation4 + $0x98] sm:$0xf]
    %v322 = vld [vmem:[#allocation4 + $0x9c] sm:$0xff]
    %v323 = vld [vmem:[#allocation4 + $0xa4] sm:$0xf]
    %v324 = vld [vmem:[#allocation4 + $0xa8] sm:$0xff]
    %v325 = vld [vmem:[#allocation4 + $0xb0] sm:$0xf]
    %v326 = vld [vmem:[#allocation4 + $0xb4] sm:$0xff]
    %v327 = vld [vmem:[#allocation4 + $0xbc] sm:$0xf]
    %v328 = vld [vmem:[%s4] sm:$0x7]
    %v330 = vlaneseq
    %v331 = vshrl.u32 %v330, 7
    %v332 = vsub.s32 0, %v331
    %v333 = vrot.slane %v328, %v332
    %v334 = vlaneseq
    %v335 = vshrl.u32 %v334, 7
    %v336 = vsub.s32 1, %v335
    %v337 = vrot.slane %v328, %v336
    %v338 = vlaneseq
    %v339 = vshrl.u32 %v338, 7
    %v340 = vsub.s32 2, %v339
    %v341 = vrot.slane %v328, %v340
    %v377 = vunpack.c.l.b16 %v296
    %v378 = vunpack.c.h.b16 %v296
    %v379 = vunpack.c.l.b16 %v297
    %v380 = vunpack.c.l.b16 %v298
    %v381 = vunpack.c.h.b16 %v298
    %v382 = vunpack.c.l.b16 %v299
    %v383 = vunpack.c.l.b16 %v300
    %v384 = vunpack.c.h.b16 %v300
    %v385 = vunpack.c.l.b16 %v301
    %v386 = vunpack.c.l.b16 %v302
    %v387 = vunpack.c.h.b16 %v302
    %v388 = vunpack.c.l.b16 %v303
    %v389 = vunpack.c.l.b16 %v304
    %v390 = vunpack.c.h.b16 %v304
    %v391 = vunpack.c.l.b16 %v305
    %v392 = vunpack.c.l.b16 %v306
    %v393 = vunpack.c.h.b16 %v306
    %v394 = vunpack.c.l.b16 %v307
    %v395 = vunpack.c.l.b16 %v308
    %v396 = vunpack.c.h.b16 %v308
    %v397 = vunpack.c.l.b16 %v309
    %v398 = vunpack.c.l.b16 %v310
    %v399 = vunpack.c.h.b16 %v310
    %v400 = vunpack.c.l.b16 %v311
    %v401 = vunpack.c.l.b16 %v312
    %v402 = vunpack.c.h.b16 %v312
    %v403 = vunpack.c.l.b16 %v313
    %v404 = vunpack.c.l.b16 %v314
    %v405 = vunpack.c.h.b16 %v314
    %v406 = vunpack.c.l.b16 %v315
    %v407 = vunpack.c.l.b16 %v316
    %v408 = vunpack.c.h.b16 %v316
    %v409 = vunpack.c.l.b16 %v317
    %v410 = vunpack.c.l.b16 %v318
    %v411 = vunpack.c.h.b16 %v318
    %v412 = vunpack.c.l.b16 %v319
    %v413 = vunpack.c.l.b16 %v320
    %v414 = vunpack.c.h.b16 %v320
    %v415 = vunpack.c.l.b16 %v321
    %v416 = vunpack.c.l.b16 %v322
    %v417 = vunpack.c.h.b16 %v322
    %v418 = vunpack.c.l.b16 %v323
    %v419 = vunpack.c.l.b16 %v324
    %v420 = vunpack.c.h.b16 %v324
    %v421 = vunpack.c.l.b16 %v325
    %v422 = vunpack.c.l.b16 %v326
    %v423 = vunpack.c.h.b16 %v326
    %v424 = vunpack.c.l.b16 %v327
    %v425 = vpack.c.b16 %v380, %v377
    %v426 = vpack.c.b16 %v381, %v378
    %v427 = vpack.c.b16 %v382, %v379
    %v428 = vpack.c.b16 %v386, %v383
    %v429 = vpack.c.b16 %v387, %v384
    %v430 = vpack.c.b16 %v388, %v385
    %v431 = vpack.c.b16 %v392, %v389
    %v432 = vpack.c.b16 %v393, %v390
    %v433 = vpack.c.b16 %v394, %v391
    %v434 = vpack.c.b16 %v398, %v395
    %v435 = vpack.c.b16 %v399, %v396
    %v436 = vpack.c.b16 %v400, %v397
    %v437 = vpack.c.b16 %v404, %v401
    %v438 = vpack.c.b16 %v405, %v402
    %v439 = vpack.c.b16 %v406, %v403
    %v440 = vpack.c.b16 %v410, %v407
    %v441 = vpack.c.b16 %v411, %v408
    %v442 = vpack.c.b16 %v412, %v409
    %v443 = vpack.c.b16 %v416, %v413
    %v444 = vpack.c.b16 %v417, %v414
    %v445 = vpack.c.b16 %v418, %v415
    %v446 = vpack.c.b16 %v422, %v419
    %v447 = vpack.c.b16 %v423, %v420
    %v448 = vpack.c.b16 %v424, %v421
    %473 = vmatprep.subr.bf16.mxu0 %v426
    %474 = vmatpush1.bf16.msra.mxu0 %v425
    %475 = vmatprep.subr.bf16.mxu0 %v429
    %476 = vmatpush1.bf16.msra.mxu0 %v428
    %477 = vmatprep.subr.bf16.mxu0 %v432
    %478 = vmatpush1.bf16.msra.mxu0 %v431
    %479 = vmatprep.subr.bf16.mxu0 %v435
    %480 = vmatpush1.bf16.msra.mxu0 %v434
    %481 = vmatprep.subr.bf16.mxu0 %v438
    %482 = vmatpush1.bf16.msra.mxu0 %v437
    %483 = vmatprep.subr.bf16.mxu0 %v441
    %484 = vmatpush1.bf16.msra.mxu0 %v440
    %485 = vmatprep.subr.bf16.mxu0 %v444
    %486 = vmatpush1.bf16.msra.mxu0 %v443
    %487 = vmatprep.subr.bf16.mxu0 %v447
    %488 = vmatpush1.bf16.msra.mxu0 %v446
    %489 = vmatprep.subr.bf16.mxu0 0
    %490 = vmatpush1.bf16.msra.mxu0 0
    %491 = vmatprep.subr.bf16.mxu0 0
    %492 = vmatpush1.bf16.msra.mxu0 0
    %493 = vmatprep.subr.bf16.mxu0 0
    %494 = vmatpush1.bf16.msra.mxu0 0
    %495 = vmatprep.subr.bf16.mxu0 0
    %496 = vmatpush1.bf16.msra.mxu0 0
    %497 = vmatprep.subr.bf16.mxu0 0
    %498 = vmatpush1.bf16.msra.mxu0 0
    %499 = vmatprep.subr.bf16.mxu0 0
    %500 = vmatpush1.bf16.msra.mxu0 0
    %501 = vmatprep.subr.bf16.mxu0 0
    %502 = vmatpush1.bf16.msra.mxu0 0
    %503 = vmatprep.subr.bf16.mxu0 0
    %504 = vmatpush1.bf16.msra.mxu0 0
    %505 = vmatprep.mubr.bf16.mxu0 0
    %506 = vmatmul.mubr.bf16.gmra.mrb[0].mxu0 %v288
    %v507 = vpop.f32.mrb[0].mxu0
    %v508 = vadd.f32 %v333, %v507
    %v509 = vpop.f32.mrb[0].mxu0
    %v510 = vadd.f32 %v337, %v509
    %v511 = vpop.f32.mrb[0].mxu0
    %v512 = vadd.f32 %v333, %v511
    %v513 = vpop.f32.mrb[0].mxu0
    %v514 = vadd.f32 %v337, %v513
    %515 = vmatprep.mubr.bf16.mxu0 0
    %516 = vmatmul.mubr.bf16.gmra.mrb[0].mxu0 %v289
    %v517 = vpop.f32.mrb[0].mxu0
    %v518 = vadd.f32 %v333, %v517
    %v519 = vpop.f32.mrb[0].mxu0
    %v520 = vadd.f32 %v337, %v519
    %v521 = vpop.f32.mrb[0].mxu0
    %v522 = vadd.f32 %v333, %v521
    %v523 = vpop.f32.mrb[0].mxu0
    %v524 = vadd.f32 %v337, %v523
    %525 = vmatprep.mubr.bf16.mxu0 0
    %526 = vmatmul.mubr.bf16.gmra.mrb[0].mxu0 %v290
    %v527 = vpop.f32.mrb[0].mxu0
    %v528 = vadd.f32 %v333, %v527
    %v529 = vpop.f32.mrb[0].mxu0
    %v530 = vadd.f32 %v337, %v529
    %v531 = vpop.f32.mrb[0].mxu0
    %v532 = vadd.f32 %v333, %v531
    %v533 = vpop.f32.mrb[0].mxu0
    %v534 = vadd.f32 %v337, %v533
    %535 = vmatprep.mubr.bf16.mxu0 0
    %536 = vmatmul.mubr.bf16.gmra.mrb[0].mxu0 %v291
    %v537 = vpop.f32.mrb[0].mxu0
    %v538 = vadd.f32 %v333, %v537
    %v539 = vpop.f32.mrb[0].mxu0
    %v540 = vadd.f32 %v337, %v539
    %v541 = vpop.f32.mrb[0].mxu0
    %v542 = vadd.f32 %v333, %v541
    %v543 = vpop.f32.mrb[0].mxu0
    %v544 = vadd.f32 %v337, %v543
    %545 = vmatprep.mubr.bf16.mxu0 0
    %546 = vmatmul.mubr.bf16.gmra.mrb[0].mxu0 %v292
    %v547 = vpop.f32.mrb[0].mxu0
    %v548 = vadd.f32 %v333, %v547
    %v549 = vpop.f32.mrb[0].mxu0
    %v550 = vadd.f32 %v337, %v549
    %v551 = vpop.f32.mrb[0].mxu0
    %v552 = vadd.f32 %v333, %v551
    %v553 = vpop.f32.mrb[0].mxu0
    %v554 = vadd.f32 %v337, %v553
    %555 = vmatprep.mubr.bf16.mxu0 0
    %556 = vmatmul.mubr.bf16.gmra.mrb[0].mxu0 %v293
    %v557 = vpop.f32.mrb[0].mxu0
    %v558 = vadd.f32 %v333, %v557
    %v559 = vpop.f32.mrb[0].mxu0
    %v560 = vadd.f32 %v337, %v559
    %v561 = vpop.f32.mrb[0].mxu0
    %v562 = vadd.f32 %v333, %v561
    %v563 = vpop.f32.mrb[0].mxu0
    %v564 = vadd.f32 %v337, %v563
    %565 = vmatprep.mubr.bf16.mxu0 0
    %566 = vmatmul.mubr.bf16.gmra.mrb[0].mxu0 %v294
    %v567 = vpop.f32.mrb[0].mxu0
    %v568 = vadd.f32 %v333, %v567
    %v569 = vpop.f32.mrb[0].mxu0
    %v570 = vadd.f32 %v337, %v569
    %v571 = vpop.f32.mrb[0].mxu0
    %v572 = vadd.f32 %v333, %v571
    %v573 = vpop.f32.mrb[0].mxu0
    %v574 = vadd.f32 %v337, %v573
    %575 = vmatprep.mubr.bf16.mxu0 0
    %576 = vmatmul.mubr.bf16.gmra.mrb[0].mxu0 %v295
    %v577 = vpop.f32.mrb[0].mxu0
    %v578 = vadd.f32 %v333, %v577
    %v579 = vpop.f32.mrb[0].mxu0
    %v580 = vadd.f32 %v337, %v579
    %v581 = vpop.f32.mrb[0].mxu0
    %v582 = vadd.f32 %v333, %v581
    %v583 = vpop.f32.mrb[0].mxu0
    %v584 = vadd.f32 %v337, %v583
    %585 = vdwg.mxu0
    %586 = vmatprep.subr.bf16.mxu0 0
    %587 = vmatpush1.bf16.msra.mxu0 %v427
    %588 = vmatprep.subr.bf16.mxu0 0
    %589 = vmatpush1.bf16.msra.mxu0 %v430
    %590 = vmatprep.subr.bf16.mxu0 0
    %591 = vmatpush1.bf16.msra.mxu0 %v433
    %592 = vmatprep.subr.bf16.mxu0 0
    %593 = vmatpush1.bf16.msra.mxu0 %v436
    %594 = vmatprep.subr.bf16.mxu0 0
    %595 = vmatpush1.bf16.msra.mxu0 %v439
    %596 = vmatprep.subr.bf16.mxu0 0
    %597 = vmatpush1.bf16.msra.mxu0 %v442
    %598 = vmatprep.subr.bf16.mxu0 0
    %599 = vmatpush1.bf16.msra.mxu0 %v445
    %600 = vmatprep.subr.bf16.mxu0 0
    %601 = vmatpush1.bf16.msra.mxu0 %v448
    %602 = vmatprep.subr.bf16.mxu0 0
    %603 = vmatpush1.bf16.msra.mxu0 0
    %604 = vmatprep.subr.bf16.mxu0 0
    %605 = vmatpush1.bf16.msra.mxu0 0
    %606 = vmatprep.subr.bf16.mxu0 0
    %607 = vmatpush1.bf16.msra.mxu0 0
    %608 = vmatprep.subr.bf16.mxu0 0
    %609 = vmatpush1.bf16.msra.mxu0 0
    %610 = vmatprep.subr.bf16.mxu0 0
    %611 = vmatpush1.bf16.msra.mxu0 0
    %612 = vmatprep.subr.bf16.mxu0 0
    %613 = vmatpush1.bf16.msra.mxu0 0
    %614 = vmatprep.subr.bf16.mxu0 0
    %615 = vmatpush1.bf16.msra.mxu0 0
    %616 = vmatprep.subr.bf16.mxu0 0
    %617 = vmatpush1.bf16.msra.mxu0 0
    %618 = vmatprep.mubr.bf16.mxu0 0
    %619 = vmatmul.mubr.bf16.gmra.mrb[0].mxu0 %v288
    %v620 = vpop.f32.mrb[0].mxu0
    %v621 = vadd.f32 %v341, %v620
    %v622 = vpop.f32.mrb[0].mxu0
    %v623 = vpop.f32.mrb[0].mxu0
    %v624 = vadd.f32 %v341, %v623
    %v625 = vpop.f32.mrb[0].mxu0
    %626 = vmatprep.mubr.bf16.mxu0 0
    %627 = vmatmul.mubr.bf16.gmra.mrb[0].mxu0 %v289
    %v628 = vpop.f32.mrb[0].mxu0
    %v629 = vadd.f32 %v341, %v628
    %v630 = vpop.f32.mrb[0].mxu0
    %v631 = vpop.f32.mrb[0].mxu0
    %v632 = vadd.f32 %v341, %v631
    %v633 = vpop.f32.mrb[0].mxu0
    %634 = vmatprep.mubr.bf16.mxu0 0
    %635 = vmatmul.mubr.bf16.gmra.mrb[0].mxu0 %v290
    %v636 = vpop.f32.mrb[0].mxu0
    %v637 = vadd.f32 %v341, %v636
    %v638 = vpop.f32.mrb[0].mxu0
    %v639 = vpop.f32.mrb[0].mxu0
    %v640 = vadd.f32 %v341, %v639
    %v641 = vpop.f32.mrb[0].mxu0
    %642 = vmatprep.mubr.bf16.mxu0 0
    %643 = vmatmul.mubr.bf16.gmra.mrb[0].mxu0 %v291
    %v644 = vpop.f32.mrb[0].mxu0
    %v645 = vadd.f32 %v341, %v644
    %v646 = vpop.f32.mrb[0].mxu0
    %v647 = vpop.f32.mrb[0].mxu0
    %v648 = vadd.f32 %v341, %v647
    %v649 = vpop.f32.mrb[0].mxu0
    %650 = vmatprep.mubr.bf16.mxu0 0
    %651 = vmatmul.mubr.bf16.gmra.mrb[0].mxu0 %v292
    %v652 = vpop.f32.mrb[0].mxu0
    %v653 = vadd.f32 %v341, %v652
    %v654 = vpop.f32.mrb[0].mxu0
    %v655 = vpop.f32.mrb[0].mxu0
    %v656 = vadd.f32 %v341, %v655
    %v657 = vpop.f32.mrb[0].mxu0
    %658 = vmatprep.mubr.bf16.mxu0 0
    %659 = vmatmul.mubr.bf16.gmra.mrb[0].mxu0 %v293
    %v660 = vpop.f32.mrb[0].mxu0
    %v661 = vadd.f32 %v341, %v660
    %v662 = vpop.f32.mrb[0].mxu0
    %v663 = vpop.f32.mrb[0].mxu0
    %v664 = vadd.f32 %v341, %v663
    %v665 = vpop.f32.mrb[0].mxu0
    %666 = vmatprep.mubr.bf16.mxu0 0
    %667 = vmatmul.mubr.bf16.gmra.mrb[0].mxu0 %v294
    %v668 = vpop.f32.mrb[0].mxu0
    %v669 = vadd.f32 %v341, %v668
    %v670 = vpop.f32.mrb[0].mxu0
    %v671 = vpop.f32.mrb[0].mxu0
    %v672 = vadd.f32 %v341, %v671
    %v673 = vpop.f32.mrb[0].mxu0
    %674 = vmatprep.mubr.bf16.mxu0 0
    %675 = vmatmul.mubr.bf16.gmra.mrb[0].mxu0 %v295
    %v676 = vpop.f32.mrb[0].mxu0
    %v677 = vadd.f32 %v341, %v676
    %v678 = vpop.f32.mrb[0].mxu0
    %v679 = vpop.f32.mrb[0].mxu0
    %v680 = vadd.f32 %v341, %v679
    %v681 = vpop.f32.mrb[0].mxu0
    %682 = vdwg.mxu0
    %v683 = vpack.c.bf16 %v512, %v508
    %v684 = vpack.c.bf16 %v514, %v510
    %v685 = vpack.c.bf16 %v624, %v621
    %v686 = vpack.c.bf16 %v522, %v518
    %v687 = vpack.c.bf16 %v524, %v520
    %v688 = vpack.c.bf16 %v632, %v629
    %v689 = vpack.c.bf16 %v532, %v528
    %v690 = vpack.c.bf16 %v534, %v530
    %v691 = vpack.c.bf16 %v640, %v637
    %v692 = vpack.c.bf16 %v542, %v538
    %v693 = vpack.c.bf16 %v544, %v540
    %v694 = vpack.c.bf16 %v648, %v645
    %v695 = vpack.c.bf16 %v552, %v548
    %v696 = vpack.c.bf16 %v554, %v550
    %v697 = vpack.c.bf16 %v656, %v653
    %v698 = vpack.c.bf16 %v562, %v558
    %v699 = vpack.c.bf16 %v564, %v560
    %v700 = vpack.c.bf16 %v664, %v661
    %v701 = vpack.c.bf16 %v572, %v568
    %v702 = vpack.c.bf16 %v574, %v570
    %v703 = vpack.c.bf16 %v672, %v669
    %v704 = vpack.c.bf16 %v582, %v578
    %v705 = vpack.c.bf16 %v584, %v580
    %v706 = vpack.c.bf16 %v680, %v677
    %v731 = vunpack.c.l.b16 %v683
    %v732 = vunpack.c.l.b16 %v684
    %v733 = vunpack.c.l.b16 %v685
    %v734 = vunpack.c.h.b16 %v683
    %v735 = vunpack.c.h.b16 %v684
    %v736 = vunpack.c.h.b16 %v685
    %v737 = vunpack.c.l.b16 %v686
    %v738 = vunpack.c.l.b16 %v687
    %v739 = vunpack.c.l.b16 %v688
    %v740 = vunpack.c.h.b16 %v686
    %v741 = vunpack.c.h.b16 %v687
    %v742 = vunpack.c.h.b16 %v688
    %v743 = vunpack.c.l.b16 %v689
    %v744 = vunpack.c.l.b16 %v690
    %v745 = vunpack.c.l.b16 %v691
    %v746 = vunpack.c.h.b16 %v689
    %v747 = vunpack.c.h.b16 %v690
    %v748 = vunpack.c.h.b16 %v691
    %v749 = vunpack.c.l.b16 %v692
    %v750 = vunpack.c.l.b16 %v693
    %v751 = vunpack.c.l.b16 %v694
    %v752 = vunpack.c.h.b16 %v692
    %v753 = vunpack.c.h.b16 %v693
    %v754 = vunpack.c.h.b16 %v694
    %v755 = vunpack.c.l.b16 %v695
    %v756 = vunpack.c.l.b16 %v696
    %v757 = vunpack.c.l.b16 %v697
    %v758 = vunpack.c.h.b16 %v695
    %v759 = vunpack.c.h.b16 %v696
    %v760 = vunpack.c.h.b16 %v697
    %v761 = vunpack.c.l.b16 %v698
    %v762 = vunpack.c.l.b16 %v699
    %v763 = vunpack.c.l.b16 %v700
    %v764 = vunpack.c.h.b16 %v698
    %v765 = vunpack.c.h.b16 %v699
    %v766 = vunpack.c.h.b16 %v700
    %v767 = vunpack.c.l.b16 %v701
    %v768 = vunpack.c.l.b16 %v702
    %v769 = vunpack.c.l.b16 %v703
    %v770 = vunpack.c.h.b16 %v701
    %v771 = vunpack.c.h.b16 %v702
    %v772 = vunpack.c.h.b16 %v703
    %v773 = vunpack.c.l.b16 %v704
    %v774 = vunpack.c.l.b16 %v705
    %v775 = vunpack.c.l.b16 %v706
    %v776 = vunpack.c.h.b16 %v704
    %v777 = vunpack.c.h.b16 %v705
    %v778 = vunpack.c.h.b16 %v706
    %v779 = vpack.c.b16 %v732, %v731
    %v780 = vpack.c.b16 %v733, %v733
    %v781 = vpack.c.b16 %v735, %v734
    %v782 = vpack.c.b16 %v736, %v736
    %v783 = vpack.c.b16 %v738, %v737
    %v784 = vpack.c.b16 %v739, %v739
    %v785 = vpack.c.b16 %v741, %v740
    %v786 = vpack.c.b16 %v742, %v742
    %v787 = vpack.c.b16 %v744, %v743
    %v788 = vpack.c.b16 %v745, %v745
    %v789 = vpack.c.b16 %v747, %v746
    %v790 = vpack.c.b16 %v748, %v748
    %v791 = vpack.c.b16 %v750, %v749
    %v792 = vpack.c.b16 %v751, %v751
    %v793 = vpack.c.b16 %v753, %v752
    %v794 = vpack.c.b16 %v754, %v754
    %v795 = vpack.c.b16 %v756, %v755
    %v796 = vpack.c.b16 %v757, %v757
    %v797 = vpack.c.b16 %v759, %v758
    %v798 = vpack.c.b16 %v760, %v760
    %v799 = vpack.c.b16 %v762, %v761
    %v800 = vpack.c.b16 %v763, %v763
    %v801 = vpack.c.b16 %v765, %v764
    %v802 = vpack.c.b16 %v766, %v766
    %v803 = vpack.c.b16 %v768, %v767
    %v804 = vpack.c.b16 %v769, %v769
    %v805 = vpack.c.b16 %v771, %v770
    %v806 = vpack.c.b16 %v772, %v772
    %v807 = vpack.c.b16 %v774, %v773
    %v808 = vpack.c.b16 %v775, %v775
    %v809 = vpack.c.b16 %v777, %v776
    %v810 = vpack.c.b16 %v778, %v778
    %843 = vst [vmem:[%s5] sm:$0xff] %v779
    %844 = vst [vmem:[%s5 + $0x8] sm:$0xf] %v780
    %845 = vst [vmem:[%s5 + $0xc] sm:$0xff] %v781
    %846 = vst [vmem:[%s5 + $0x14] sm:$0xf] %v782
    %847 = vst [vmem:[%s5 + $0x18] sm:$0xff] %v783
    %848 = vst [vmem:[%s5 + $0x20] sm:$0xf] %v784
    %849 = vst [vmem:[%s5 + $0x24] sm:$0xff] %v785
    %850 = vst [vmem:[%s5 + $0x2c] sm:$0xf] %v786
    %851 = vst [vmem:[%s5 + $0x30] sm:$0xff] %v787
    %852 = vst [vmem:[%s5 + $0x38] sm:$0xf] %v788
    %853 = vst [vmem:[%s5 + $0x3c] sm:$0xff] %v789
    %854 = vst [vmem:[%s5 + $0x44] sm:$0xf] %v790
    %855 = vst [vmem:[%s5 + $0x48] sm:$0xff] %v791
    %856 = vst [vmem:[%s5 + $0x50] sm:$0xf] %v792
    %857 = vst [vmem:[%s5 + $0x54] sm:$0xff] %v793
    %858 = vst [vmem:[%s5 + $0x5c] sm:$0xf] %v794
    %859 = vst [vmem:[%s5 + $0x60] sm:$0xff] %v795
    %860 = vst [vmem:[%s5 + $0x68] sm:$0xf] %v796
    %861 = vst [vmem:[%s5 + $0x6c] sm:$0xff] %v797
    %862 = vst [vmem:[%s5 + $0x74] sm:$0xf] %v798
    %863 = vst [vmem:[%s5 + $0x78] sm:$0xff] %v799
    %864 = vst [vmem:[%s5 + $0x80] sm:$0xf] %v800
    %865 = vst [vmem:[%s5 + $0x84] sm:$0xff] %v801
    %866 = vst [vmem:[%s5 + $0x8c] sm:$0xf] %v802
    %867 = vst [vmem:[%s5 + $0x90] sm:$0xff] %v803
    %868 = vst [vmem:[%s5 + $0x98] sm:$0xf] %v804
    %869 = vst [vmem:[%s5 + $0x9c] sm:$0xff] %v805
    %870 = vst [vmem:[%s5 + $0xa4] sm:$0xf] %v806
    %871 = vst [vmem:[%s5 + $0xa8] sm:$0xff] %v807
    %872 = vst [vmem:[%s5 + $0xb0] sm:$0xf] %v808
    %873 = vst [vmem:[%s5 + $0xb4] sm:$0xff] %v809
    %874 = vst [vmem:[%s5 + $0xbc] sm:$0xf] %v810
    // Predicated region
    $region30: #{global_attention_block.3} parent=1 // pred_check
      _
    $region31: #{global_attention_block.3} parent=1 // pred_check_branch
      %876 = sbr.rel (0) target = $region33
    $region32: #{global_attention_block.3} parent=1 // pred_region
      _
    $region33: #{global_attention_block.3} parent=1 // pred_fallthru
      _
    // Predicated region
    $region34: #{global_attention_block.3} parent=1 // pred_check
      _
    $region35: #{global_attention_block.3} parent=1 // pred_check_branch
      %878 = sbr.rel (0) target = $region37
    $region36: #{global_attention_block.3} parent=1 // pred_region
      _
    $region37: #{global_attention_block.3} parent=1 // pred_fallthru
      _
    %879 = vsyncpa [#allocation3], 1
    %880 = vsyncpa [#allocation5], 1

// kernel: global_attention_block.5
$region0: #{global_attention_block.5}
  #allocation0 [shape = 'u32[]', space=smem, size = 0x4, offset = 0x4, fixed_abs, tag = 'smem constant byte address 0x4 - core index']
  #allocation1 [shape = 'u32[144,128]{1,0:T(1,128)}', space=vmem, size = 0x12000, scoped, tag = 'internal scratch']
  #allocation2 [shape = 'bf16[128,128]{1,0:T(16,128)(2,1)}', space=vmem, size = 0x8000, scoped, tag = 'scratch operand']
  %s0 = inlined_call_operand.vmem [shape: f32[128,128], index: 0, kind: input, shape index: {}]
  %s1 = inlined_call_operand.vmem [shape: f32[1,128], index: 1, kind: input, shape index: {}]
  %s2 = inlined_call_operand.vmem [shape: f32[1,128], index: 2, kind: input, shape index: {}]
  %s3 = inlined_call_operand.vmem [shape: bf16[128,512], index: 3, kind: input, shape index: {}]
  %s4 = inlined_call_operand.vmem [shape: f32[1,512], index: 4, kind: input, shape index: {}]
  %s5 = inlined_call_operand.vmem [shape: bf16[512,128], index: 5, kind: input, shape index: {}]
  %s6 = inlined_call_operand.vmem [shape: f32[1,128], index: 6, kind: input, shape index: {}]
  %s7 = inlined_call_operand.hbm [shape: f32[128,128], index: 7, kind: output, shape index: {}]
  %s8 = sld [smem:[#allocation0]]
  $region42: #{global_attention_block.5} parent=0
    _
  %s10 = ssub.s32 1, %s8
  %s11 = scalar_select 0, %s10, %s8
  $region1: #{global_attention_block.5} parent=0
    #allocation3 [shape = 'u8[65536]{0}', space=vmem, size = 0x10000, scoped, tag = 'output window, operand 0, single buffered']
    #allocation4 [shape = 's32[1]{0}', space=sflag, size = 0x4, scoped, tag = 'scoped memory for global_attention_block.5']
    %12 = vsyncpa [#allocation4], 0
    // Predicated region
    $region2: #{global_attention_block.5} parent=1 // pred_check
      _
    $region3: #{global_attention_block.5} parent=1 // pred_check_branch
      %14 = sbr.rel (0) target = $region5
    $region4: #{global_attention_block.5} parent=1 // pred_region
      _
    $region5: #{global_attention_block.5} parent=1 // pred_fallthru
      _
    // Predicated region
    $region6: #{global_attention_block.5} parent=1 // pred_check
      _
    $region7: #{global_attention_block.5} parent=1 // pred_check_branch
      %16 = sbr.rel (0) target = $region9
    $region8: #{global_attention_block.5} parent=1 // pred_region
      _
    $region9: #{global_attention_block.5} parent=1 // pred_fallthru
      _
    // Predicated region
    $region10: #{global_attention_block.5} parent=1 // pred_check
      _
    $region11: #{global_attention_block.5} parent=1 // pred_check_branch
      %18 = sbr.rel (0) target = $region13
    $region12: #{global_attention_block.5} parent=1 // pred_region
      _
    $region13: #{global_attention_block.5} parent=1 // pred_fallthru
      _
    // Predicated region
    $region14: #{global_attention_block.5} parent=1 // pred_check
      _
    $region15: #{global_attention_block.5} parent=1 // pred_check_branch
      %20 = sbr.rel (0) target = $region17
    $region16: #{global_attention_block.5} parent=1 // pred_region
      _
    $region17: #{global_attention_block.5} parent=1 // pred_fallthru
      _
    // Predicated region
    $region18: #{global_attention_block.5} parent=1 // pred_check
      _
    $region19: #{global_attention_block.5} parent=1 // pred_check_branch
      %22 = sbr.rel (0) target = $region21
    $region20: #{global_attention_block.5} parent=1 // pred_region
      _
    $region21: #{global_attention_block.5} parent=1 // pred_fallthru
      _
    // Predicated region
    $region22: #{global_attention_block.5} parent=1 // pred_check
      _
    $region23: #{global_attention_block.5} parent=1 // pred_check_branch
      %24 = sbr.rel (0) target = $region25
    $region24: #{global_attention_block.5} parent=1 // pred_region
      _
    $region25: #{global_attention_block.5} parent=1 // pred_fallthru
      _
    // Predicated region
    $region26: #{global_attention_block.5} parent=1 // pred_check
      _
    $region27: #{global_attention_block.5} parent=1 // pred_check_branch
      %26 = sbr.rel (0) target = $region29
    $region28: #{global_attention_block.5} parent=1 // pred_region
      _
    $region29: #{global_attention_block.5} parent=1 // pred_fallthru
      _
    %p28 = scmp.eq.s32.totalorder 0, 0
    // Predicated region
    $region30: #{global_attention_block.5} parent=1 // pred_check
      %p29 = pneg %p28
    $region31: #{global_attention_block.5} parent=1 // pred_check_branch
      %31 = sbr.rel (%p29) target = $region33
    $region32: #{global_attention_block.5} parent=1 // pred_region
      %v32 = vld [vmem:[%s0] sm:$0xff]
      %v33 = vld [vmem:[%s0 + $0x8] sm:$0xff]
      %v34 = vld [vmem:[%s0 + $0x10] sm:$0xff]
      %v35 = vld [vmem:[%s0 + $0x18] sm:$0xff]
      %v36 = vld [vmem:[%s0 + $0x20] sm:$0xff]
      %v37 = vld [vmem:[%s0 + $0x28] sm:$0xff]
      %v38 = vld [vmem:[%s0 + $0x30] sm:$0xff]
      %v39 = vld [vmem:[%s0 + $0x38] sm:$0xff]
      %v40 = vld [vmem:[%s0 + $0x40] sm:$0xff]
      %v41 = vld [vmem:[%s0 + $0x48] sm:$0xff]
      %v42 = vld [vmem:[%s0 + $0x50] sm:$0xff]
      %v43 = vld [vmem:[%s0 + $0x58] sm:$0xff]
      %v44 = vld [vmem:[%s0 + $0x60] sm:$0xff]
      %v45 = vld [vmem:[%s0 + $0x68] sm:$0xff]
      %v46 = vld [vmem:[%s0 + $0x70] sm:$0xff]
      %v47 = vld [vmem:[%s0 + $0x78] sm:$0xff]
      %v48 = vld [vmem:[%s1] sm:$0x1]
      %v49 = vld [vmem:[%s2] sm:$0x1]
      %50 = vadd.xlane.f32.xlu0 %v32
      %v51 = vpop.xlane.xlu0 %50
      %52 = vadd.xlane.f32.xlu0 %v33
      %v53 = vpop.xlane.xlu0 %52
      %54 = vadd.xlane.f32.xlu0 %v34
      %v55 = vpop.xlane.xlu0 %54
      %56 = vadd.xlane.f32.xlu0 %v35
      %v57 = vpop.xlane.xlu0 %56
      %58 = vadd.xlane.f32.xlu0 %v36
      %v59 = vpop.xlane.xlu0 %58
      %60 = vadd.xlane.f32.xlu0 %v37
      %v61 = vpop.xlane.xlu0 %60
      %62 = vadd.xlane.f32.xlu0 %v38
      %v63 = vpop.xlane.xlu0 %62
      %64 = vadd.xlane.f32.xlu0 %v39
      %v65 = vpop.xlane.xlu0 %64
      %66 = vadd.xlane.f32.xlu0 %v40
      %v67 = vpop.xlane.xlu0 %66
      %68 = vadd.xlane.f32.xlu0 %v41
      %v69 = vpop.xlane.xlu0 %68
      %70 = vadd.xlane.f32.xlu0 %v42
      %v71 = vpop.xlane.xlu0 %70
      %72 = vadd.xlane.f32.xlu0 %v43
      %v73 = vpop.xlane.xlu0 %72
      %74 = vadd.xlane.f32.xlu0 %v44
      %v75 = vpop.xlane.xlu0 %74
      %76 = vadd.xlane.f32.xlu0 %v45
      %v77 = vpop.xlane.xlu0 %76
      %78 = vadd.xlane.f32.xlu0 %v46
      %v79 = vpop.xlane.xlu0 %78
      %80 = vadd.xlane.f32.xlu0 %v47
      %v81 = vpop.xlane.xlu0 %80
      %v82 = vrcp.pop 128.0
      %v83 = vmul.f32 %v51, %v82
      %v84 = vmul.f32 %v53, %v82
      %v85 = vmul.f32 %v55, %v82
      %v86 = vmul.f32 %v57, %v82
      %v87 = vmul.f32 %v59, %v82
      %v88 = vmul.f32 %v61, %v82
      %v89 = vmul.f32 %v63, %v82
      %v90 = vmul.f32 %v65, %v82
      %v91 = vmul.f32 %v67, %v82
      %v92 = vmul.f32 %v69, %v82
      %v93 = vmul.f32 %v71, %v82
      %v94 = vmul.f32 %v73, %v82
      %v95 = vmul.f32 %v75, %v82
      %v96 = vmul.f32 %v77, %v82
      %v97 = vmul.f32 %v79, %v82
      %v98 = vmul.f32 %v81, %v82
      %v99 = vsub.f32 %v32, %v83
      %v100 = vsub.f32 %v33, %v84
      %v101 = vsub.f32 %v34, %v85
      %v102 = vsub.f32 %v35, %v86
      %v103 = vsub.f32 %v36, %v87
      %v104 = vsub.f32 %v37, %v88
      %v105 = vsub.f32 %v38, %v89
      %v106 = vsub.f32 %v39, %v90
      %v107 = vsub.f32 %v40, %v91
      %v108 = vsub.f32 %v41, %v92
      %v109 = vsub.f32 %v42, %v93
      %v110 = vsub.f32 %v43, %v94
      %v111 = vsub.f32 %v44, %v95
      %v112 = vsub.f32 %v45, %v96
      %v113 = vsub.f32 %v46, %v97
      %v114 = vsub.f32 %v47, %v98
      %v115 = vmul.f32 %v99, %v99
      %v116 = vmul.f32 %v100, %v100
      %v117 = vmul.f32 %v101, %v101
      %v118 = vmul.f32 %v102, %v102
      %v119 = vmul.f32 %v103, %v103
      %v120 = vmul.f32 %v104, %v104
      %v121 = vmul.f32 %v105, %v105
      %v122 = vmul.f32 %v106, %v106
      %v123 = vmul.f32 %v107, %v107
      %v124 = vmul.f32 %v108, %v108
      %v125 = vmul.f32 %v109, %v109
      %v126 = vmul.f32 %v110, %v110
      %v127 = vmul.f32 %v111, %v111
      %v128 = vmul.f32 %v112, %v112
      %v129 = vmul.f32 %v113, %v113
      %v130 = vmul.f32 %v114, %v114
      %131 = vadd.xlane.f32.xlu0 %v115
      %v132 = vpop.xlane.xlu0 %131
      %133 = vadd.xlane.f32.xlu0 %v116
      %v134 = vpop.xlane.xlu0 %133
      %135 = vadd.xlane.f32.xlu0 %v117
      %v136 = vpop.xlane.xlu0 %135
      %137 = vadd.xlane.f32.xlu0 %v118
      %v138 = vpop.xlane.xlu0 %137
      %139 = vadd.xlane.f32.xlu0 %v119
      %v140 = vpop.xlane.xlu0 %139
      %141 = vadd.xlane.f32.xlu0 %v120
      %v142 = vpop.xlane.xlu0 %141
      %143 = vadd.xlane.f32.xlu0 %v121
      %v144 = vpop.xlane.xlu0 %143
      %145 = vadd.xlane.f32.xlu0 %v122
      %v146 = vpop.xlane.xlu0 %145
      %147 = vadd.xlane.f32.xlu0 %v123
      %v148 = vpop.xlane.xlu0 %147
      %149 = vadd.xlane.f32.xlu0 %v124
      %v150 = vpop.xlane.xlu0 %149
      %151 = vadd.xlane.f32.xlu0 %v125
      %v152 = vpop.xlane.xlu0 %151
      %153 = vadd.xlane.f32.xlu0 %v126
      %v154 = vpop.xlane.xlu0 %153
      %155 = vadd.xlane.f32.xlu0 %v127
      %v156 = vpop.xlane.xlu0 %155
      %157 = vadd.xlane.f32.xlu0 %v128
      %v158 = vpop.xlane.xlu0 %157
      %159 = vadd.xlane.f32.xlu0 %v129
      %v160 = vpop.xlane.xlu0 %159
      %161 = vadd.xlane.f32.xlu0 %v130
      %v162 = vpop.xlane.xlu0 %161
      %v163 = vmul.f32 %v132, %v82
      %v164 = vmul.f32 %v134, %v82
      %v165 = vmul.f32 %v136, %v82
      %v166 = vmul.f32 %v138, %v82
      %v167 = vmul.f32 %v140, %v82
      %v168 = vmul.f32 %v142, %v82
      %v169 = vmul.f32 %v144, %v82
      %v170 = vmul.f32 %v146, %v82
      %v171 = vmul.f32 %v148, %v82
      %v172 = vmul.f32 %v150, %v82
      %v173 = vmul.f32 %v152, %v82
      %v174 = vmul.f32 %v154, %v82
      %v175 = vmul.f32 %v156, %v82
      %v176 = vmul.f32 %v158, %v82
      %v177 = vmul.f32 %v160, %v82
      %v178 = vmul.f32 %v162, %v82
      %v179 = vadd.f32 %v163, 1e-05
      %v180 = vadd.f32 %v164, 1e-05
      %v181 = vadd.f32 %v165, 1e-05
      %v182 = vadd.f32 %v166, 1e-05
      %v183 = vadd.f32 %v167, 1e-05
      %v184 = vadd.f32 %v168, 1e-05
      %v185 = vadd.f32 %v169, 1e-05
      %v186 = vadd.f32 %v170, 1e-05
      %v187 = vadd.f32 %v171, 1e-05
      %v188 = vadd.f32 %v172, 1e-05
      %v189 = vadd.f32 %v173, 1e-05
      %v190 = vadd.f32 %v174, 1e-05
      %v191 = vadd.f32 %v175, 1e-05
      %v192 = vadd.f32 %v176, 1e-05
      %v193 = vadd.f32 %v177, 1e-05
      %v194 = vadd.f32 %v178, 1e-05
      %v195 = vrsqrt.pop %v179
      %v196 = vrsqrt.pop %v180
      %v197 = vrsqrt.pop %v181
      %v198 = vrsqrt.pop %v182
      %v199 = vrsqrt.pop %v183
      %v200 = vrsqrt.pop %v184
      %v201 = vrsqrt.pop %v185
      %v202 = vrsqrt.pop %v186
      %v203 = vrsqrt.pop %v187
      %v204 = vrsqrt.pop %v188
      %v205 = vrsqrt.pop %v189
      %v206 = vrsqrt.pop %v190
      %v207 = vrsqrt.pop %v191
      %v208 = vrsqrt.pop %v192
      %v209 = vrsqrt.pop %v193
      %v210 = vrsqrt.pop %v194
      %v211 = vmul.f32 %v99, %v195
      %v212 = vmul.f32 %v100, %v196
      %v213 = vmul.f32 %v101, %v197
      %v214 = vmul.f32 %v102, %v198
      %v215 = vmul.f32 %v103, %v199
      %v216 = vmul.f32 %v104, %v200
      %v217 = vmul.f32 %v105, %v201
      %v218 = vmul.f32 %v106, %v202
      %v219 = vmul.f32 %v107, %v203
      %v220 = vmul.f32 %v108, %v204
      %v221 = vmul.f32 %v109, %v205
      %v222 = vmul.f32 %v110, %v206
      %v223 = vmul.f32 %v111, %v207
      %v224 = vmul.f32 %v112, %v208
      %v225 = vmul.f32 %v113, %v209
      %v226 = vmul.f32 %v114, %v210
      %v228 = vlaneseq
      %v229 = vshrl.u32 %v228, 7
      %v230 = vsub.s32 0, %v229
      %v231 = vrot.slane %v48, %v230
      %v233 = vmul.f32 %v211, %v231
      %v234 = vmul.f32 %v212, %v231
      %v235 = vmul.f32 %v213, %v231
      %v236 = vmul.f32 %v214, %v231
      %v237 = vmul.f32 %v215, %v231
      %v238 = vmul.f32 %v216, %v231
      %v239 = vmul.f32 %v217, %v231
      %v240 = vmul.f32 %v218, %v231
      %v241 = vmul.f32 %v219, %v231
      %v242 = vmul.f32 %v220, %v231
      %v243 = vmul.f32 %v221, %v231
      %v244 = vmul.f32 %v222, %v231
      %v245 = vmul.f32 %v223, %v231
      %v246 = vmul.f32 %v224, %v231
      %v247 = vmul.f32 %v225, %v231
      %v248 = vmul.f32 %v226, %v231
      %v250 = vlaneseq
      %v251 = vshrl.u32 %v250, 7
      %v252 = vsub.s32 0, %v251
      %v253 = vrot.slane %v49, %v252
      %v255 = vadd.f32 %v233, %v253
      %v256 = vadd.f32 %v234, %v253
      %v257 = vadd.f32 %v235, %v253
      %v258 = vadd.f32 %v236, %v253
      %v259 = vadd.f32 %v237, %v253
      %v260 = vadd.f32 %v238, %v253
      %v261 = vadd.f32 %v239, %v253
      %v262 = vadd.f32 %v240, %v253
      %v263 = vadd.f32 %v241, %v253
      %v264 = vadd.f32 %v242, %v253
      %v265 = vadd.f32 %v243, %v253
      %v266 = vadd.f32 %v244, %v253
      %v267 = vadd.f32 %v245, %v253
      %v268 = vadd.f32 %v246, %v253
      %v269 = vadd.f32 %v247, %v253
      %v270 = vadd.f32 %v248, %v253
      %v271 = vpack.c.bf16 %v256, %v255
      %v272 = vpack.c.bf16 %v258, %v257
      %v273 = vpack.c.bf16 %v260, %v259
      %v274 = vpack.c.bf16 %v262, %v261
      %v275 = vpack.c.bf16 %v264, %v263
      %v276 = vpack.c.bf16 %v266, %v265
      %v277 = vpack.c.bf16 %v268, %v267
      %v278 = vpack.c.bf16 %v270, %v269
      %279 = vst [vmem:[#allocation2] sm:$0xff] %v271
      %280 = vst [vmem:[#allocation2 + $0x8] sm:$0xff] %v272
      %281 = vst [vmem:[#allocation2 + $0x10] sm:$0xff] %v273
      %282 = vst [vmem:[#allocation2 + $0x18] sm:$0xff] %v274
      %283 = vst [vmem:[#allocation2 + $0x20] sm:$0xff] %v275
      %284 = vst [vmem:[#allocation2 + $0x28] sm:$0xff] %v276
      %285 = vst [vmem:[#allocation2 + $0x30] sm:$0xff] %v277
      %286 = vst [vmem:[#allocation2 + $0x38] sm:$0xff] %v278
      %v287 = vld [vmem:[%s6] sm:$0x1]
      %v289 = vlaneseq
      %v290 = vshrl.u32 %v289, 7
      %v291 = vsub.s32 0, %v290
      %v292 = vrot.slane %v287, %v291
      %v294 = vadd.f32 %v32, %v292
      %v295 = vadd.f32 %v33, %v292
      %v296 = vadd.f32 %v34, %v292
      %v297 = vadd.f32 %v35, %v292
      %v298 = vadd.f32 %v36, %v292
      %v299 = vadd.f32 %v37, %v292
      %v300 = vadd.f32 %v38, %v292
      %v301 = vadd.f32 %v39, %v292
      %v302 = vadd.f32 %v40, %v292
      %v303 = vadd.f32 %v41, %v292
      %v304 = vadd.f32 %v42, %v292
      %v305 = vadd.f32 %v43, %v292
      %v306 = vadd.f32 %v44, %v292
      %v307 = vadd.f32 %v45, %v292
      %v308 = vadd.f32 %v46, %v292
      %v309 = vadd.f32 %v47, %v292
      %310 = vst [vmem:[#allocation3] sm:$0xff] %v294
      %311 = vst [vmem:[#allocation3 + $0x8] sm:$0xff] %v295
      %312 = vst [vmem:[#allocation3 + $0x10] sm:$0xff] %v296
      %313 = vst [vmem:[#allocation3 + $0x18] sm:$0xff] %v297
      %314 = vst [vmem:[#allocation3 + $0x20] sm:$0xff] %v298
      %315 = vst [vmem:[#allocation3 + $0x28] sm:$0xff] %v299
      %316 = vst [vmem:[#allocation3 + $0x30] sm:$0xff] %v300
      %317 = vst [vmem:[#allocation3 + $0x38] sm:$0xff] %v301
      %318 = vst [vmem:[#allocation3 + $0x40] sm:$0xff] %v302
      %319 = vst [vmem:[#allocation3 + $0x48] sm:$0xff] %v303
      %320 = vst [vmem:[#allocation3 + $0x50] sm:$0xff] %v304
      %321 = vst [vmem:[#allocation3 + $0x58] sm:$0xff] %v305
      %322 = vst [vmem:[#allocation3 + $0x60] sm:$0xff] %v306
      %323 = vst [vmem:[#allocation3 + $0x68] sm:$0xff] %v307
      %324 = vst [vmem:[#allocation3 + $0x70] sm:$0xff] %v308
      %325 = vst [vmem:[#allocation3 + $0x78] sm:$0xff] %v309
    $region33: #{global_attention_block.5} parent=1 // pred_fallthru
      _
    %v326 = vld [vmem:[#allocation2] sm:$0xff]
    %v327 = vld [vmem:[#allocation2 + $0x8] sm:$0xff]
    %v328 = vld [vmem:[#allocation2 + $0x10] sm:$0xff]
    %v329 = vld [vmem:[#allocation2 + $0x18] sm:$0xff]
    %v330 = vld [vmem:[#allocation2 + $0x20] sm:$0xff]
    %v331 = vld [vmem:[#allocation2 + $0x28] sm:$0xff]
    %v332 = vld [vmem:[#allocation2 + $0x30] sm:$0xff]
    %v333 = vld [vmem:[#allocation2 + $0x38] sm:$0xff]
    %v334 = vld [vmem:[%s3] sm:$0xff]
    %v335 = vld [vmem:[%s3 + $0x8] sm:$0xff]
    %v336 = vld [vmem:[%s3 + $0x10] sm:$0xff]
    %v337 = vld [vmem:[%s3 + $0x18] sm:$0xff]
    %v338 = vld [vmem:[%s3 + $0x20] sm:$0xff]
    %v339 = vld [vmem:[%s3 + $0x28] sm:$0xff]
    %v340 = vld [vmem:[%s3 + $0x30] sm:$0xff]
    %v341 = vld [vmem:[%s3 + $0x38] sm:$0xff]
    %v342 = vld [vmem:[%s3 + $0x40] sm:$0xff]
    %v343 = vld [vmem:[%s3 + $0x48] sm:$0xff]
    %v344 = vld [vmem:[%s3 + $0x50] sm:$0xff]
    %v345 = vld [vmem:[%s3 + $0x58] sm:$0xff]
    %v346 = vld [vmem:[%s3 + $0x60] sm:$0xff]
    %v347 = vld [vmem:[%s3 + $0x68] sm:$0xff]
    %v348 = vld [vmem:[%s3 + $0x70] sm:$0xff]
    %v349 = vld [vmem:[%s3 + $0x78] sm:$0xff]
    %v350 = vld [vmem:[%s3 + $0x80] sm:$0xff]
    %v351 = vld [vmem:[%s3 + $0x88] sm:$0xff]
    %v352 = vld [vmem:[%s3 + $0x90] sm:$0xff]
    %v353 = vld [vmem:[%s3 + $0x98] sm:$0xff]
    %v354 = vld [vmem:[%s3 + $0xa0] sm:$0xff]
    %v355 = vld [vmem:[%s3 + $0xa8] sm:$0xff]
    %v356 = vld [vmem:[%s3 + $0xb0] sm:$0xff]
    %v357 = vld [vmem:[%s3 + $0xb8] sm:$0xff]
    %v358 = vld [vmem:[%s3 + $0xc0] sm:$0xff]
    %v359 = vld [vmem:[%s3 + $0xc8] sm:$0xff]
    %v360 = vld [vmem:[%s3 + $0xd0] sm:$0xff]
    %v361 = vld [vmem:[%s3 + $0xd8] sm:$0xff]
    %v362 = vld [vmem:[%s3 + $0xe0] sm:$0xff]
    %v363 = vld [vmem:[%s3 + $0xe8] sm:$0xff]
    %v364 = vld [vmem:[%s3 + $0xf0] sm:$0xff]
    %v365 = vld [vmem:[%s3 + $0xf8] sm:$0xff]
    %v366 = vld [vmem:[%s4] sm:$0xf]
    %v368 = vlaneseq
    %v369 = vshrl.u32 %v368, 7
    %v370 = vsub.s32 0, %v369
    %v371 = vrot.slane %v366, %v370
    %v372 = vlaneseq
    %v373 = vshrl.u32 %v372, 7
    %v374 = vsub.s32 1, %v373
    %v375 = vrot.slane %v366, %v374
    %v376 = vlaneseq
    %v377 = vshrl.u32 %v376, 7
    %v378 = vsub.s32 2, %v377
    %v379 = vrot.slane %v366, %v378
    %v380 = vlaneseq
    %v381 = vshrl.u32 %v380, 7
    %v382 = vsub.s32 3, %v381
    %v383 = vrot.slane %v366, %v382
    %v420 = vunpack.c.l.b16 %v334
    %v421 = vunpack.c.h.b16 %v334
    %v422 = vunpack.c.l.b16 %v335
    %v423 = vunpack.c.h.b16 %v335
    %v424 = vunpack.c.l.b16 %v336
    %v425 = vunpack.c.h.b16 %v336
    %v426 = vunpack.c.l.b16 %v337
    %v427 = vunpack.c.h.b16 %v337
    %v428 = vunpack.c.l.b16 %v338
    %v429 = vunpack.c.h.b16 %v338
    %v430 = vunpack.c.l.b16 %v339
    %v431 = vunpack.c.h.b16 %v339
    %v432 = vunpack.c.l.b16 %v340
    %v433 = vunpack.c.h.b16 %v340
    %v434 = vunpack.c.l.b16 %v341
    %v435 = vunpack.c.h.b16 %v341
    %v436 = vunpack.c.l.b16 %v342
    %v437 = vunpack.c.h.b16 %v342
    %v438 = vunpack.c.l.b16 %v343
    %v439 = vunpack.c.h.b16 %v343
    %v440 = vunpack.c.l.b16 %v344
    %v441 = vunpack.c.h.b16 %v344
    %v442 = vunpack.c.l.b16 %v345
    %v443 = vunpack.c.h.b16 %v345
    %v444 = vunpack.c.l.b16 %v346
    %v445 = vunpack.c.h.b16 %v346
    %v446 = vunpack.c.l.b16 %v347
    %v447 = vunpack.c.h.b16 %v347
    %v448 = vunpack.c.l.b16 %v348
    %v449 = vunpack.c.h.b16 %v348
    %v450 = vunpack.c.l.b16 %v349
    %v451 = vunpack.c.h.b16 %v349
    %v452 = vunpack.c.l.b16 %v350
    %v453 = vunpack.c.h.b16 %v350
    %v454 = vunpack.c.l.b16 %v351
    %v455 = vunpack.c.h.b16 %v351
    %v456 = vunpack.c.l.b16 %v352
    %v457 = vunpack.c.h.b16 %v352
    %v458 = vunpack.c.l.b16 %v353
    %v459 = vunpack.c.h.b16 %v353
    %v460 = vunpack.c.l.b16 %v354
    %v461 = vunpack.c.h.b16 %v354
    %v462 = vunpack.c.l.b16 %v355
    %v463 = vunpack.c.h.b16 %v355
    %v464 = vunpack.c.l.b16 %v356
    %v465 = vunpack.c.h.b16 %v356
    %v466 = vunpack.c.l.b16 %v357
    %v467 = vunpack.c.h.b16 %v357
    %v468 = vunpack.c.l.b16 %v358
    %v469 = vunpack.c.h.b16 %v358
    %v470 = vunpack.c.l.b16 %v359
    %v471 = vunpack.c.h.b16 %v359
    %v472 = vunpack.c.l.b16 %v360
    %v473 = vunpack.c.h.b16 %v360
    %v474 = vunpack.c.l.b16 %v361
    %v475 = vunpack.c.h.b16 %v361
    %v476 = vunpack.c.l.b16 %v362
    %v477 = vunpack.c.h.b16 %v362
    %v478 = vunpack.c.l.b16 %v363
    %v479 = vunpack.c.h.b16 %v363
    %v480 = vunpack.c.l.b16 %v364
    %v481 = vunpack.c.h.b16 %v364
    %v482 = vunpack.c.l.b16 %v365
    %v483 = vunpack.c.h.b16 %v365
    %v484 = vpack.c.b16 %v424, %v420
    %v485 = vpack.c.b16 %v425, %v421
    %v486 = vpack.c.b16 %v426, %v422
    %v487 = vpack.c.b16 %v427, %v423
    %v488 = vpack.c.b16 %v432, %v428
    %v489 = vpack.c.b16 %v433, %v429
    %v490 = vpack.c.b16 %v434, %v430
    %v491 = vpack.c.b16 %v435, %v431
    %v492 = vpack.c.b16 %v440, %v436
    %v493 = vpack.c.b16 %v441, %v437
    %v494 = vpack.c.b16 %v442, %v438
    %v495 = vpack.c.b16 %v443, %v439
    %v496 = vpack.c.b16 %v448, %v444
    %v497 = vpack.c.b16 %v449, %v445
    %v498 = vpack.c.b16 %v450, %v446
    %v499 = vpack.c.b16 %v451, %v447
    %v500 = vpack.c.b16 %v456, %v452
    %v501 = vpack.c.b16 %v457, %v453
    %v502 = vpack.c.b16 %v458, %v454
    %v503 = vpack.c.b16 %v459, %v455
    %v504 = vpack.c.b16 %v464, %v460
    %v505 = vpack.c.b16 %v465, %v461
    %v506 = vpack.c.b16 %v466, %v462
    %v507 = vpack.c.b16 %v467, %v463
    %v508 = vpack.c.b16 %v472, %v468
    %v509 = vpack.c.b16 %v473, %v469
    %v510 = vpack.c.b16 %v474, %v470
    %v511 = vpack.c.b16 %v475, %v471
    %v512 = vpack.c.b16 %v480, %v476
    %v513 = vpack.c.b16 %v481, %v477
    %v514 = vpack.c.b16 %v482, %v478
    %v515 = vpack.c.b16 %v483, %v479
    %548 = vmatprep.subr.bf16.mxu0 %v485
    %549 = vmatpush1.bf16.msra.mxu0 %v484
    %550 = vmatprep.subr.bf16.mxu0 %v489
    %551 = vmatpush1.bf16.msra.mxu0 %v488
    %552 = vmatprep.subr.bf16.mxu0 %v493
    %553 = vmatpush1.bf16.msra.mxu0 %v492
    %554 = vmatprep.subr.bf16.mxu0 %v497
    %555 = vmatpush1.bf16.msra.mxu0 %v496
    %556 = vmatprep.subr.bf16.mxu0 %v501
    %557 = vmatpush1.bf16.msra.mxu0 %v500
    %558 = vmatprep.subr.bf16.mxu0 %v505
    %559 = vmatpush1.bf16.msra.mxu0 %v504
    %560 = vmatprep.subr.bf16.mxu0 %v509
    %561 = vmatpush1.bf16.msra.mxu0 %v508
    %562 = vmatprep.subr.bf16.mxu0 %v513
    %563 = vmatpush1.bf16.msra.mxu0 %v512
    %564 = vmatprep.subr.bf16.mxu0 0
    %565 = vmatpush1.bf16.msra.mxu0 0
    %566 = vmatprep.subr.bf16.mxu0 0
    %567 = vmatpush1.bf16.msra.mxu0 0
    %568 = vmatprep.subr.bf16.mxu0 0
    %569 = vmatpush1.bf16.msra.mxu0 0
    %570 = vmatprep.subr.bf16.mxu0 0
    %571 = vmatpush1.bf16.msra.mxu0 0
    %572 = vmatprep.subr.bf16.mxu0 0
    %573 = vmatpush1.bf16.msra.mxu0 0
    %574 = vmatprep.subr.bf16.mxu0 0
    %575 = vmatpush1.bf16.msra.mxu0 0
    %576 = vmatprep.subr.bf16.mxu0 0
    %577 = vmatpush1.bf16.msra.mxu0 0
    %578 = vmatprep.subr.bf16.mxu0 0
    %579 = vmatpush1.bf16.msra.mxu0 0
    %580 = vmatprep.mubr.bf16.mxu0 0
    %581 = vmatmul.mubr.bf16.gmra.mrb[0].mxu0 %v326
    %v582 = vpop.f32.mrb[0].mxu0
    %v583 = vadd.f32 %v371, %v582
    %v584 = vpop.f32.mrb[0].mxu0
    %v585 = vadd.f32 %v375, %v584
    %v586 = vpop.f32.mrb[0].mxu0
    %v587 = vadd.f32 %v371, %v586
    %v588 = vpop.f32.mrb[0].mxu0
    %v589 = vadd.f32 %v375, %v588
    %590 = vmatprep.mubr.bf16.mxu0 0
    %591 = vmatmul.mubr.bf16.gmra.mrb[0].mxu0 %v327
    %v592 = vpop.f32.mrb[0].mxu0
    %v593 = vadd.f32 %v371, %v592
    %v594 = vpop.f32.mrb[0].mxu0
    %v595 = vadd.f32 %v375, %v594
    %v596 = vpop.f32.mrb[0].mxu0
    %v597 = vadd.f32 %v371, %v596
    %v598 = vpop.f32.mrb[0].mxu0
    %v599 = vadd.f32 %v375, %v598
    %600 = vmatprep.mubr.bf16.mxu0 0
    %601 = vmatmul.mubr.bf16.gmra.mrb[0].mxu0 %v328
    %v602 = vpop.f32.mrb[0].mxu0
    %v603 = vadd.f32 %v371, %v602
    %v604 = vpop.f32.mrb[0].mxu0
    %v605 = vadd.f32 %v375, %v604
    %v606 = vpop.f32.mrb[0].mxu0
    %v607 = vadd.f32 %v371, %v606
    %v608 = vpop.f32.mrb[0].mxu0
    %v609 = vadd.f32 %v375, %v608
    %610 = vmatprep.mubr.bf16.mxu0 0
    %611 = vmatmul.mubr.bf16.gmra.mrb[0].mxu0 %v329
    %v612 = vpop.f32.mrb[0].mxu0
    %v613 = vadd.f32 %v371, %v612
    %v614 = vpop.f32.mrb[0].mxu0
    %v615 = vadd.f32 %v375, %v614
    %v616 = vpop.f32.mrb[0].mxu0
    %v617 = vadd.f32 %v371, %v616
    %v618 = vpop.f32.mrb[0].mxu0
    %v619 = vadd.f32 %v375, %v618
    %620 = vmatprep.mubr.bf16.mxu0 0
    %621 = vmatmul.mubr.bf16.gmra.mrb[0].mxu0 %v330
    %v622 = vpop.f32.mrb[0].mxu0
    %v623 = vadd.f32 %v371, %v622
    %v624 = vpop.f32.mrb[0].mxu0
    %v625 = vadd.f32 %v375, %v624
    %v626 = vpop.f32.mrb[0].mxu0
    %v627 = vadd.f32 %v371, %v626
    %v628 = vpop.f32.mrb[0].mxu0
    %v629 = vadd.f32 %v375, %v628
    %630 = vmatprep.mubr.bf16.mxu0 0
    %631 = vmatmul.mubr.bf16.gmra.mrb[0].mxu0 %v331
    %v632 = vpop.f32.mrb[0].mxu0
    %v633 = vadd.f32 %v371, %v632
    %v634 = vpop.f32.mrb[0].mxu0
    %v635 = vadd.f32 %v375, %v634
    %v636 = vpop.f32.mrb[0].mxu0
    %v637 = vadd.f32 %v371, %v636
    %v638 = vpop.f32.mrb[0].mxu0
    %v639 = vadd.f32 %v375, %v638
    %640 = vmatprep.mubr.bf16.mxu0 0
    %641 = vmatmul.mubr.bf16.gmra.mrb[0].mxu0 %v332
    %v642 = vpop.f32.mrb[0].mxu0
    %v643 = vadd.f32 %v371, %v642
    %v644 = vpop.f32.mrb[0].mxu0
    %v645 = vadd.f32 %v375, %v644
    %v646 = vpop.f32.mrb[0].mxu0
    %v647 = vadd.f32 %v371, %v646
    %v648 = vpop.f32.mrb[0].mxu0
    %v649 = vadd.f32 %v375, %v648
    %650 = vmatprep.mubr.bf16.mxu0 0
    %651 = vmatmul.mubr.bf16.gmra.mrb[0].mxu0 %v333
    %v652 = vpop.f32.mrb[0].mxu0
    %v653 = vadd.f32 %v371, %v652
    %v654 = vpop.f32.mrb[0].mxu0
    %v655 = vadd.f32 %v375, %v654
    %v656 = vpop.f32.mrb[0].mxu0
    %v657 = vadd.f32 %v371, %v656
    %v658 = vpop.f32.mrb[0].mxu0
    %v659 = vadd.f32 %v375, %v658
    %660 = vdwg.mxu0
    %661 = vmatprep.subr.bf16.mxu0 %v487
    %662 = vmatpush1.bf16.msra.mxu0 %v486
    %663 = vmatprep.subr.bf16.mxu0 %v491
    %664 = vmatpush1.bf16.msra.mxu0 %v490
    %665 = vmatprep.subr.bf16.mxu0 %v495
    %666 = vmatpush1.bf16.msra.mxu0 %v494
    %667 = vmatprep.subr.bf16.mxu0 %v499
    %668 = vmatpush1.bf16.msra.mxu0 %v498
    %669 = vmatprep.subr.bf16.mxu0 %v503
    %670 = vmatpush1.bf16.msra.mxu0 %v502
    %671 = vmatprep.subr.bf16.mxu0 %v507
    %672 = vmatpush1.bf16.msra.mxu0 %v506
    %673 = vmatprep.subr.bf16.mxu0 %v511
    %674 = vmatpush1.bf16.msra.mxu0 %v510
    %675 = vmatprep.subr.bf16.mxu0 %v515
    %676 = vmatpush1.bf16.msra.mxu0 %v514
    %677 = vmatprep.subr.bf16.mxu0 0
    %678 = vmatpush1.bf16.msra.mxu0 0
    %679 = vmatprep.subr.bf16.mxu0 0
    %680 = vmatpush1.bf16.msra.mxu0 0
    %681 = vmatprep.subr.bf16.mxu0 0
    %682 = vmatpush1.bf16.msra.mxu0 0
    %683 = vmatprep.subr.bf16.mxu0 0
    %684 = vmatpush1.bf16.msra.mxu0 0
    %685 = vmatprep.subr.bf16.mxu0 0
    %686 = vmatpush1.bf16.msra.mxu0 0
    %687 = vmatprep.subr.bf16.mxu0 0
    %688 = vmatpush1.bf16.msra.mxu0 0
    %689 = vmatprep.subr.bf16.mxu0 0
    %690 = vmatpush1.bf16.msra.mxu0 0
    %691 = vmatprep.subr.bf16.mxu0 0
    %692 = vmatpush1.bf16.msra.mxu0 0
    %693 = vmatprep.mubr.bf16.mxu0 0
    %694 = vmatmul.mubr.bf16.gmra.mrb[0].mxu0 %v326
    %v695 = vpop.f32.mrb[0].mxu0
    %v696 = vadd.f32 %v379, %v695
    %v697 = vpop.f32.mrb[0].mxu0
    %v698 = vadd.f32 %v383, %v697
    %v699 = vpop.f32.mrb[0].mxu0
    %v700 = vadd.f32 %v379, %v699
    %v701 = vpop.f32.mrb[0].mxu0
    %v702 = vadd.f32 %v383, %v701
    %703 = vmatprep.mubr.bf16.mxu0 0
    %704 = vmatmul.mubr.bf16.gmra.mrb[0].mxu0 %v327
    %v705 = vpop.f32.mrb[0].mxu0
    %v706 = vadd.f32 %v379, %v705
    %v707 = vpop.f32.mrb[0].mxu0
    %v708 = vadd.f32 %v383, %v707
    %v709 = vpop.f32.mrb[0].mxu0
    %v710 = vadd.f32 %v379, %v709
    %v711 = vpop.f32.mrb[0].mxu0
    %v712 = vadd.f32 %v383, %v711
    %713 = vmatprep.mubr.bf16.mxu0 0
    %714 = vmatmul.mubr.bf16.gmra.mrb[0].mxu0 %v328
    %v715 = vpop.f32.mrb[0].mxu0
    %v716 = vadd.f32 %v379, %v715
    %v717 = vpop.f32.mrb[0].mxu0
    %v718 = vadd.f32 %v383, %v717
    %v719 = vpop.f32.mrb[0].mxu0
    %v720 = vadd.f32 %v379, %v719
    %v721 = vpop.f32.mrb[0].mxu0
    %v722 = vadd.f32 %v383, %v721
    %723 = vmatprep.mubr.bf16.mxu0 0
    %724 = vmatmul.mubr.bf16.gmra.mrb[0].mxu0 %v329
    %v725 = vpop.f32.mrb[0].mxu0
    %v726 = vadd.f32 %v379, %v725
    %v727 = vpop.f32.mrb[0].mxu0
    %v728 = vadd.f32 %v383, %v727
    %v729 = vpop.f32.mrb[0].mxu0
    %v730 = vadd.f32 %v379, %v729
    %v731 = vpop.f32.mrb[0].mxu0
    %v732 = vadd.f32 %v383, %v731
    %733 = vmatprep.mubr.bf16.mxu0 0
    %734 = vmatmul.mubr.bf16.gmra.mrb[0].mxu0 %v330
    %v735 = vpop.f32.mrb[0].mxu0
    %v736 = vadd.f32 %v379, %v735
    %v737 = vpop.f32.mrb[0].mxu0
    %v738 = vadd.f32 %v383, %v737
    %v739 = vpop.f32.mrb[0].mxu0
    %v740 = vadd.f32 %v379, %v739
    %v741 = vpop.f32.mrb[0].mxu0
    %v742 = vadd.f32 %v383, %v741
    %743 = vmatprep.mubr.bf16.mxu0 0
    %744 = vmatmul.mubr.bf16.gmra.mrb[0].mxu0 %v331
    %v745 = vpop.f32.mrb[0].mxu0
    %v746 = vadd.f32 %v379, %v745
    %v747 = vpop.f32.mrb[0].mxu0
    %v748 = vadd.f32 %v383, %v747
    %v749 = vpop.f32.mrb[0].mxu0
    %v750 = vadd.f32 %v379, %v749
    %v751 = vpop.f32.mrb[0].mxu0
    %v752 = vadd.f32 %v383, %v751
    %753 = vmatprep.mubr.bf16.mxu0 0
    %754 = vmatmul.mubr.bf16.gmra.mrb[0].mxu0 %v332
    %v755 = vpop.f32.mrb[0].mxu0
    %v756 = vadd.f32 %v379, %v755
    %v757 = vpop.f32.mrb[0].mxu0
    %v758 = vadd.f32 %v383, %v757
    %v759 = vpop.f32.mrb[0].mxu0
    %v760 = vadd.f32 %v379, %v759
    %v761 = vpop.f32.mrb[0].mxu0
    %v762 = vadd.f32 %v383, %v761
    %763 = vmatprep.mubr.bf16.mxu0 0
    %764 = vmatmul.mubr.bf16.gmra.mrb[0].mxu0 %v333
    %v765 = vpop.f32.mrb[0].mxu0
    %v766 = vadd.f32 %v379, %v765
    %v767 = vpop.f32.mrb[0].mxu0
    %v768 = vadd.f32 %v383, %v767
    %v769 = vpop.f32.mrb[0].mxu0
    %v770 = vadd.f32 %v379, %v769
    %v771 = vpop.f32.mrb[0].mxu0
    %v772 = vadd.f32 %v383, %v771
    %773 = vdwg.mxu0
    %v774 = vmul.f32 %v583, 0.5
    %v775 = vmul.f32 %v585, 0.5
    %v776 = vmul.f32 %v696, 0.5
    %v777 = vmul.f32 %v698, 0.5
    %v778 = vmul.f32 %v587, 0.5
    %v779 = vmul.f32 %v589, 0.5
    %v780 = vmul.f32 %v700, 0.5
    %v781 = vmul.f32 %v702, 0.5
    %v782 = vmul.f32 %v593, 0.5
    %v783 = vmul.f32 %v595, 0.5
    %v784 = vmul.f32 %v706, 0.5
    %v785 = vmul.f32 %v708, 0.5
    %v786 = vmul.f32 %v597, 0.5
    %v787 = vmul.f32 %v599, 0.5
    %v788 = vmul.f32 %v710, 0.5
    %v789 = vmul.f32 %v712, 0.5
    %v790 = vmul.f32 %v603, 0.5
    %v791 = vmul.f32 %v605, 0.5
    %v792 = vmul.f32 %v716, 0.5
    %v793 = vmul.f32 %v718, 0.5
    %v794 = vmul.f32 %v607, 0.5
    %v795 = vmul.f32 %v609, 0.5
    %v796 = vmul.f32 %v720, 0.5
    %v797 = vmul.f32 %v722, 0.5
    %v798 = vmul.f32 %v613, 0.5
    %v799 = vmul.f32 %v615, 0.5
    %v800 = vmul.f32 %v726, 0.5
    %v801 = vmul.f32 %v728, 0.5
    %v802 = vmul.f32 %v617, 0.5
    %v803 = vmul.f32 %v619, 0.5
    %v804 = vmul.f32 %v730, 0.5
    %v805 = vmul.f32 %v732, 0.5
    %v806 = vmul.f32 %v623, 0.5
    %v807 = vmul.f32 %v625, 0.5
    %v808 = vmul.f32 %v736, 0.5
    %v809 = vmul.f32 %v738, 0.5
    %v810 = vmul.f32 %v627, 0.5
    %v811 = vmul.f32 %v629, 0.5
    %v812 = vmul.f32 %v740, 0.5
    %v813 = vmul.f32 %v742, 0.5
    %v814 = vmul.f32 %v633, 0.5
    %v815 = vmul.f32 %v635, 0.5
    %v816 = vmul.f32 %v746, 0.5
    %v817 = vmul.f32 %v748, 0.5
    %v818 = vmul.f32 %v637, 0.5
    %v819 = vmul.f32 %v639, 0.5
    %v820 = vmul.f32 %v750, 0.5
    %v821 = vmul.f32 %v752, 0.5
    %v822 = vmul.f32 %v643, 0.5
    %v823 = vmul.f32 %v645, 0.5
    %v824 = vmul.f32 %v756, 0.5
    %v825 = vmul.f32 %v758, 0.5
    %v826 = vmul.f32 %v647, 0.5
    %v827 = vmul.f32 %v649, 0.5
    %v828 = vmul.f32 %v760, 0.5
    %v829 = vmul.f32 %v762, 0.5
    %v830 = vmul.f32 %v653, 0.5
    %v831 = vmul.f32 %v655, 0.5
    %v832 = vmul.f32 %v766, 0.5
    %v833 = vmul.f32 %v768, 0.5
    %v834 = vmul.f32 %v657, 0.5
    %v835 = vmul.f32 %v659, 0.5
    %v836 = vmul.f32 %v770, 0.5
    %v837 = vmul.f32 %v772, 0.5
    %v838 = vmul.f32 %v583, 0.70710677
    %v839 = vmul.f32 %v585, 0.70710677
    %v840 = vmul.f32 %v696, 0.70710677
    %v841 = vmul.f32 %v698, 0.70710677
    %v842 = vmul.f32 %v587, 0.70710677
    %v843 = vmul.f32 %v589, 0.70710677
    %v844 = vmul.f32 %v700, 0.70710677
    %v845 = vmul.f32 %v702, 0.70710677
    %v846 = vmul.f32 %v593, 0.70710677
    %v847 = vmul.f32 %v595, 0.70710677
    %v848 = vmul.f32 %v706, 0.70710677
    %v849 = vmul.f32 %v708, 0.70710677
    %v850 = vmul.f32 %v597, 0.70710677
    %v851 = vmul.f32 %v599, 0.70710677
    %v852 = vmul.f32 %v710, 0.70710677
    %v853 = vmul.f32 %v712, 0.70710677
    %v854 = vmul.f32 %v603, 0.70710677
    %v855 = vmul.f32 %v605, 0.70710677
    %v856 = vmul.f32 %v716, 0.70710677
    %v857 = vmul.f32 %v718, 0.70710677
    %v858 = vmul.f32 %v607, 0.70710677
    %v859 = vmul.f32 %v609, 0.70710677
    %v860 = vmul.f32 %v720, 0.70710677
    %v861 = vmul.f32 %v722, 0.70710677
    %v862 = vmul.f32 %v613, 0.70710677
    %v863 = vmul.f32 %v615, 0.70710677
    %v864 = vmul.f32 %v726, 0.70710677
    %v865 = vmul.f32 %v728, 0.70710677
    %v866 = vmul.f32 %v617, 0.70710677
    %v867 = vmul.f32 %v619, 0.70710677
    %v868 = vmul.f32 %v730, 0.70710677
    %v869 = vmul.f32 %v732, 0.70710677
    %v870 = vmul.f32 %v623, 0.70710677
    %v871 = vmul.f32 %v625, 0.70710677
    %v872 = vmul.f32 %v736, 0.70710677
    %v873 = vmul.f32 %v738, 0.70710677
    %v874 = vmul.f32 %v627, 0.70710677
    %v875 = vmul.f32 %v629, 0.70710677
    %v876 = vmul.f32 %v740, 0.70710677
    %v877 = vmul.f32 %v742, 0.70710677
    %v878 = vmul.f32 %v633, 0.70710677
    %v879 = vmul.f32 %v635, 0.70710677
    %v880 = vmul.f32 %v746, 0.70710677
    %v881 = vmul.f32 %v748, 0.70710677
    %v882 = vmul.f32 %v637, 0.70710677
    %v883 = vmul.f32 %v639, 0.70710677
    %v884 = vmul.f32 %v750, 0.70710677
    %v885 = vmul.f32 %v752, 0.70710677
    %v886 = vmul.f32 %v643, 0.70710677
    %v887 = vmul.f32 %v645, 0.70710677
    %v888 = vmul.f32 %v756, 0.70710677
    %v889 = vmul.f32 %v758, 0.70710677
    %v890 = vmul.f32 %v647, 0.70710677
    %v891 = vmul.f32 %v649, 0.70710677
    %v892 = vmul.f32 %v760, 0.70710677
    %v893 = vmul.f32 %v762, 0.70710677
    %v894 = vmul.f32 %v653, 0.70710677
    %v895 = vmul.f32 %v655, 0.70710677
    %v896 = vmul.f32 %v766, 0.70710677
    %v897 = vmul.f32 %v768, 0.70710677
    %v898 = vmul.f32 %v657, 0.70710677
    %v899 = vmul.f32 %v659, 0.70710677
    %v900 = vmul.f32 %v770, 0.70710677
    %v901 = vmul.f32 %v772, 0.70710677
    %v902 = verf.f32.pop %v838
    %v903 = verf.f32.pop %v839
    %v904 = verf.f32.pop %v840
    %v905 = verf.f32.pop %v841
    %v906 = verf.f32.pop %v842
    %v907 = verf.f32.pop %v843
    %v908 = verf.f32.pop %v844
    %v909 = verf.f32.pop %v845
    %v910 = verf.f32.pop %v846
    %v911 = verf.f32.pop %v847
    %v912 = verf.f32.pop %v848
    %v913 = verf.f32.pop %v849
    %v914 = verf.f32.pop %v850
    %v915 = verf.f32.pop %v851
    %v916 = verf.f32.pop %v852
    %v917 = verf.f32.pop %v853
    %v918 = verf.f32.pop %v854
    %v919 = verf.f32.pop %v855
    %v920 = verf.f32.pop %v856
    %v921 = verf.f32.pop %v857
    %v922 = verf.f32.pop %v858
    %v923 = verf.f32.pop %v859
    %v924 = verf.f32.pop %v860
    %v925 = verf.f32.pop %v861
    %v926 = verf.f32.pop %v862
    %v927 = verf.f32.pop %v863
    %v928 = verf.f32.pop %v864
    %v929 = verf.f32.pop %v865
    %v930 = verf.f32.pop %v866
    %v931 = verf.f32.pop %v867
    %v932 = verf.f32.pop %v868
    %v933 = verf.f32.pop %v869
    %v934 = verf.f32.pop %v870
    %v935 = verf.f32.pop %v871
    %v936 = verf.f32.pop %v872
    %v937 = verf.f32.pop %v873
    %v938 = verf.f32.pop %v874
    %v939 = verf.f32.pop %v875
    %v940 = verf.f32.pop %v876
    %v941 = verf.f32.pop %v877
    %v942 = verf.f32.pop %v878
    %v943 = verf.f32.pop %v879
    %v944 = verf.f32.pop %v880
    %v945 = verf.f32.pop %v881
    %v946 = verf.f32.pop %v882
    %v947 = verf.f32.pop %v883
    %v948 = verf.f32.pop %v884
    %v949 = verf.f32.pop %v885
    %v950 = verf.f32.pop %v886
    %v951 = verf.f32.pop %v887
    %v952 = verf.f32.pop %v888
    %v953 = verf.f32.pop %v889
    %v954 = verf.f32.pop %v890
    %v955 = verf.f32.pop %v891
    %v956 = verf.f32.pop %v892
    %v957 = verf.f32.pop %v893
    %v958 = verf.f32.pop %v894
    %v959 = verf.f32.pop %v895
    %v960 = verf.f32.pop %v896
    %v961 = verf.f32.pop %v897
    %v962 = verf.f32.pop %v898
    %v963 = verf.f32.pop %v899
    %v964 = verf.f32.pop %v900
    %v965 = verf.f32.pop %v901
    %v966 = vadd.f32 %v902, 1.0
    %v967 = vadd.f32 %v903, 1.0
    %v968 = vadd.f32 %v904, 1.0
    %v969 = vadd.f32 %v905, 1.0
    %v970 = vadd.f32 %v906, 1.0
    %v971 = vadd.f32 %v907, 1.0
    %v972 = vadd.f32 %v908, 1.0
    %v973 = vadd.f32 %v909, 1.0
    %v974 = vadd.f32 %v910, 1.0
    %v975 = vadd.f32 %v911, 1.0
    %v976 = vadd.f32 %v912, 1.0
    %v977 = vadd.f32 %v913, 1.0
    %v978 = vadd.f32 %v914, 1.0
    %v979 = vadd.f32 %v915, 1.0
    %v980 = vadd.f32 %v916, 1.0
    %v981 = vadd.f32 %v917, 1.0
    %v982 = vadd.f32 %v918, 1.0
    %v983 = vadd.f32 %v919, 1.0
    %v984 = vadd.f32 %v920, 1.0
    %v985 = vadd.f32 %v921, 1.0
    %v986 = vadd.f32 %v922, 1.0
    %v987 = vadd.f32 %v923, 1.0
    %v988 = vadd.f32 %v924, 1.0
    %v989 = vadd.f32 %v925, 1.0
    %v990 = vadd.f32 %v926, 1.0
    %v991 = vadd.f32 %v927, 1.0
    %v992 = vadd.f32 %v928, 1.0
    %v993 = vadd.f32 %v929, 1.0
    %v994 = vadd.f32 %v930, 1.0
    %v995 = vadd.f32 %v931, 1.0
    %v996 = vadd.f32 %v932, 1.0
    %v997 = vadd.f32 %v933, 1.0
    %v998 = vadd.f32 %v934, 1.0
    %v999 = vadd.f32 %v935, 1.0
    %v1000 = vadd.f32 %v936, 1.0
    %v1001 = vadd.f32 %v937, 1.0
    %v1002 = vadd.f32 %v938, 1.0
    %v1003 = vadd.f32 %v939, 1.0
    %v1004 = vadd.f32 %v940, 1.0
    %v1005 = vadd.f32 %v941, 1.0
    %v1006 = vadd.f32 %v942, 1.0
    %v1007 = vadd.f32 %v943, 1.0
    %v1008 = vadd.f32 %v944, 1.0
    %v1009 = vadd.f32 %v945, 1.0
    %v1010 = vadd.f32 %v946, 1.0
    %v1011 = vadd.f32 %v947, 1.0
    %v1012 = vadd.f32 %v948, 1.0
    %v1013 = vadd.f32 %v949, 1.0
    %v1014 = vadd.f32 %v950, 1.0
    %v1015 = vadd.f32 %v951, 1.0
    %v1016 = vadd.f32 %v952, 1.0
    %v1017 = vadd.f32 %v953, 1.0
    %v1018 = vadd.f32 %v954, 1.0
    %v1019 = vadd.f32 %v955, 1.0
    %v1020 = vadd.f32 %v956, 1.0
    %v1021 = vadd.f32 %v957, 1.0
    %v1022 = vadd.f32 %v958, 1.0
    %v1023 = vadd.f32 %v959, 1.0
    %v1024 = vadd.f32 %v960, 1.0
    %v1025 = vadd.f32 %v961, 1.0
    %v1026 = vadd.f32 %v962, 1.0
    %v1027 = vadd.f32 %v963, 1.0
    %v1028 = vadd.f32 %v964, 1.0
    %v1029 = vadd.f32 %v965, 1.0
    %v1030 = vmul.f32 %v774, %v966
    %v1031 = vmul.f32 %v775, %v967
    %v1032 = vmul.f32 %v776, %v968
    %v1033 = vmul.f32 %v777, %v969
    %v1034 = vmul.f32 %v778, %v970
    %v1035 = vmul.f32 %v779, %v971
    %v1036 = vmul.f32 %v780, %v972
    %v1037 = vmul.f32 %v781, %v973
    %v1038 = vmul.f32 %v782, %v974
    %v1039 = vmul.f32 %v783, %v975
    %v1040 = vmul.f32 %v784, %v976
    %v1041 = vmul.f32 %v785, %v977
    %v1042 = vmul.f32 %v786, %v978
    %v1043 = vmul.f32 %v787, %v979
    %v1044 = vmul.f32 %v788, %v980
    %v1045 = vmul.f32 %v789, %v981
    %v1046 = vmul.f32 %v790, %v982
    %v1047 = vmul.f32 %v791, %v983
    %v1048 = vmul.f32 %v792, %v984
    %v1049 = vmul.f32 %v793, %v985
    %v1050 = vmul.f32 %v794, %v986
    %v1051 = vmul.f32 %v795, %v987
    %v1052 = vmul.f32 %v796, %v988
    %v1053 = vmul.f32 %v797, %v989
    %v1054 = vmul.f32 %v798, %v990
    %v1055 = vmul.f32 %v799, %v991
    %v1056 = vmul.f32 %v800, %v992
    %v1057 = vmul.f32 %v801, %v993
    %v1058 = vmul.f32 %v802, %v994
    %v1059 = vmul.f32 %v803, %v995
    %v1060 = vmul.f32 %v804, %v996
    %v1061 = vmul.f32 %v805, %v997
    %v1062 = vmul.f32 %v806, %v998
    %v1063 = vmul.f32 %v807, %v999
    %v1064 = vmul.f32 %v808, %v1000
    %v1065 = vmul.f32 %v809, %v1001
    %v1066 = vmul.f32 %v810, %v1002
    %v1067 = vmul.f32 %v811, %v1003
    %v1068 = vmul.f32 %v812, %v1004
    %v1069 = vmul.f32 %v813, %v1005
    %v1070 = vmul.f32 %v814, %v1006
    %v1071 = vmul.f32 %v815, %v1007
    %v1072 = vmul.f32 %v816, %v1008
    %v1073 = vmul.f32 %v817, %v1009
    %v1074 = vmul.f32 %v818, %v1010
    %v1075 = vmul.f32 %v819, %v1011
    %v1076 = vmul.f32 %v820, %v1012
    %v1077 = vmul.f32 %v821, %v1013
    %v1078 = vmul.f32 %v822, %v1014
    %v1079 = vmul.f32 %v823, %v1015
    %v1080 = vmul.f32 %v824, %v1016
    %v1081 = vmul.f32 %v825, %v1017
    %v1082 = vmul.f32 %v826, %v1018
    %v1083 = vmul.f32 %v827, %v1019
    %v1084 = vmul.f32 %v828, %v1020
    %v1085 = vmul.f32 %v829, %v1021
    %v1086 = vmul.f32 %v830, %v1022
    %v1087 = vmul.f32 %v831, %v1023
    %v1088 = vmul.f32 %v832, %v1024
    %v1089 = vmul.f32 %v833, %v1025
    %v1090 = vmul.f32 %v834, %v1026
    %v1091 = vmul.f32 %v835, %v1027
    %v1092 = vmul.f32 %v836, %v1028
    %v1093 = vmul.f32 %v837, %v1029
    %v1094 = vld [vmem:[#allocation3] sm:$0xff]
    %v1095 = vld [vmem:[#allocation3 + $0x8] sm:$0xff]
    %v1096 = vld [vmem:[#allocation3 + $0x10] sm:$0xff]
    %v1097 = vld [vmem:[#allocation3 + $0x18] sm:$0xff]
    %v1098 = vld [vmem:[#allocation3 + $0x20] sm:$0xff]
    %v1099 = vld [vmem:[#allocation3 + $0x28] sm:$0xff]
    %v1100 = vld [vmem:[#allocation3 + $0x30] sm:$0xff]
    %v1101 = vld [vmem:[#allocation3 + $0x38] sm:$0xff]
    %v1102 = vld [vmem:[#allocation3 + $0x40] sm:$0xff]
    %v1103 = vld [vmem:[#allocation3 + $0x48] sm:$0xff]
    %v1104 = vld [vmem:[#allocation3 + $0x50] sm:$0xff]
    %v1105 = vld [vmem:[#allocation3 + $0x58] sm:$0xff]
    %v1106 = vld [vmem:[#allocation3 + $0x60] sm:$0xff]
    %v1107 = vld [vmem:[#allocation3 + $0x68] sm:$0xff]
    %v1108 = vld [vmem:[#allocation3 + $0x70] sm:$0xff]
    %v1109 = vld [vmem:[#allocation3 + $0x78] sm:$0xff]
    %v1110 = vpack.c.bf16 %v1034, %v1030
    %v1111 = vpack.c.bf16 %v1035, %v1031
    %v1112 = vpack.c.bf16 %v1036, %v1032
    %v1113 = vpack.c.bf16 %v1037, %v1033
    %v1114 = vpack.c.bf16 %v1042, %v1038
    %v1115 = vpack.c.bf16 %v1043, %v1039
    %v1116 = vpack.c.bf16 %v1044, %v1040
    %v1117 = vpack.c.bf16 %v1045, %v1041
    %v1118 = vpack.c.bf16 %v1050, %v1046
    %v1119 = vpack.c.bf16 %v1051, %v1047
    %v1120 = vpack.c.bf16 %v1052, %v1048
    %v1121 = vpack.c.bf16 %v1053, %v1049
    %v1122 = vpack.c.bf16 %v1058, %v1054
    %v1123 = vpack.c.bf16 %v1059, %v1055
    %v1124 = vpack.c.bf16 %v1060, %v1056
    %v1125 = vpack.c.bf16 %v1061, %v1057
    %v1126 = vpack.c.bf16 %v1066, %v1062
    %v1127 = vpack.c.bf16 %v1067, %v1063
    %v1128 = vpack.c.bf16 %v1068, %v1064
    %v1129 = vpack.c.bf16 %v1069, %v1065
    %v1130 = vpack.c.bf16 %v1074, %v1070
    %v1131 = vpack.c.bf16 %v1075, %v1071
    %v1132 = vpack.c.bf16 %v1076, %v1072
    %v1133 = vpack.c.bf16 %v1077, %v1073
    %v1134 = vpack.c.bf16 %v1082, %v1078
    %v1135 = vpack.c.bf16 %v1083, %v1079
    %v1136 = vpack.c.bf16 %v1084, %v1080
    %v1137 = vpack.c.bf16 %v1085, %v1081
    %v1138 = vpack.c.bf16 %v1090, %v1086
    %v1139 = vpack.c.bf16 %v1091, %v1087
    %v1140 = vpack.c.bf16 %v1092, %v1088
    %v1141 = vpack.c.bf16 %v1093, %v1089
    %v1142 = vld [vmem:[%s5] sm:$0xf]
    %v1143 = vld [vmem:[%s5 + $0x4] sm:$0xf]
    %v1144 = vld [vmem:[%s5 + $0x8] sm:$0xf]
    %v1145 = vld [vmem:[%s5 + $0xc] sm:$0xf]
    %v1146 = vld [vmem:[%s5 + $0x10] sm:$0xf]
    %v1147 = vld [vmem:[%s5 + $0x14] sm:$0xf]
    %v1148 = vld [vmem:[%s5 + $0x18] sm:$0xf]
    %v1149 = vld [vmem:[%s5 + $0x1c] sm:$0xf]
    %v1150 = vld [vmem:[%s5 + $0x20] sm:$0xf]
    %v1151 = vld [vmem:[%s5 + $0x24] sm:$0xf]
    %v1152 = vld [vmem:[%s5 + $0x28] sm:$0xf]
    %v1153 = vld [vmem:[%s5 + $0x2c] sm:$0xf]
    %v1154 = vld [vmem:[%s5 + $0x30] sm:$0xf]
    %v1155 = vld [vmem:[%s5 + $0x34] sm:$0xf]
    %v1156 = vld [vmem:[%s5 + $0x38] sm:$0xf]
    %v1157 = vld [vmem:[%s5 + $0x3c] sm:$0xf]
    %v1158 = vld [vmem:[%s5 + $0x40] sm:$0xf]
    %v1159 = vld [vmem:[%s5 + $0x44] sm:$0xf]
    %v1160 = vld [vmem:[%s5 + $0x48] sm:$0xf]
    %v1161 = vld [vmem:[%s5 + $0x4c] sm:$0xf]
    %v1162 = vld [vmem:[%s5 + $0x50] sm:$0xf]
    %v1163 = vld [vmem:[%s5 + $0x54] sm:$0xf]
    %v1164 = vld [vmem:[%s5 + $0x58] sm:$0xf]
    %v1165 = vld [vmem:[%s5 + $0x5c] sm:$0xf]
    %v1166 = vld [vmem:[%s5 + $0x60] sm:$0xf]
    %v1167 = vld [vmem:[%s5 + $0x64] sm:$0xf]
    %v1168 = vld [vmem:[%s5 + $0x68] sm:$0xf]
    %v1169 = vld [vmem:[%s5 + $0x6c] sm:$0xf]
    %v1170 = vld [vmem:[%s5 + $0x70] sm:$0xf]
    %v1171 = vld [vmem:[%s5 + $0x74] sm:$0xf]
    %v1172 = vld [vmem:[%s5 + $0x78] sm:$0xf]
    %v1173 = vld [vmem:[%s5 + $0x7c] sm:$0xf]
    %v1174 = vld [vmem:[%s5 + $0x80] sm:$0xf]
    %v1175 = vld [vmem:[%s5 + $0x84] sm:$0xf]
    %v1176 = vld [vmem:[%s5 + $0x88] sm:$0xf]
    %v1177 = vld [vmem:[%s5 + $0x8c] sm:$0xf]
    %v1178 = vld [vmem:[%s5 + $0x90] sm:$0xf]
    %v1179 = vld [vmem:[%s5 + $0x94] sm:$0xf]
    %v1180 = vld [vmem:[%s5 + $0x98] sm:$0xf]
    %v1181 = vld [vmem:[%s5 + $0x9c] sm:$0xf]
    %v1182 = vld [vmem:[%s5 + $0xa0] sm:$0xf]
    %v1183 = vld [vmem:[%s5 + $0xa4] sm:$0xf]
    %v1184 = vld [vmem:[%s5 + $0xa8] sm:$0xf]
    %v1185 = vld [vmem:[%s5 + $0xac] sm:$0xf]
    %v1186 = vld [vmem:[%s5 + $0xb0] sm:$0xf]
    %v1187 = vld [vmem:[%s5 + $0xb4] sm:$0xf]
    %v1188 = vld [vmem:[%s5 + $0xb8] sm:$0xf]
    %v1189 = vld [vmem:[%s5 + $0xbc] sm:$0xf]
    %v1190 = vld [vmem:[%s5 + $0xc0] sm:$0xf]
    %v1191 = vld [vmem:[%s5 + $0xc4] sm:$0xf]
    %v1192 = vld [vmem:[%s5 + $0xc8] sm:$0xf]
    %v1193 = vld [vmem:[%s5 + $0xcc] sm:$0xf]
    %v1194 = vld [vmem:[%s5 + $0xd0] sm:$0xf]
    %v1195 = vld [vmem:[%s5 + $0xd4] sm:$0xf]
    %v1196 = vld [vmem:[%s5 + $0xd8] sm:$0xf]
    %v1197 = vld [vmem:[%s5 + $0xdc] sm:$0xf]
    %v1198 = vld [vmem:[%s5 + $0xe0] sm:$0xf]
    %v1199 = vld [vmem:[%s5 + $0xe4] sm:$0xf]
    %v1200 = vld [vmem:[%s5 + $0xe8] sm:$0xf]
    %v1201 = vld [vmem:[%s5 + $0xec] sm:$0xf]
    %v1202 = vld [vmem:[%s5 + $0xf0] sm:$0xf]
    %v1203 = vld [vmem:[%s5 + $0xf4] sm:$0xf]
    %v1204 = vld [vmem:[%s5 + $0xf8] sm:$0xf]
    %v1205 = vld [vmem:[%s5 + $0xfc] sm:$0xf]
    %v1270 = vunpack.c.l.b16 %v1142
    %v1271 = vunpack.c.l.b16 %v1143
    %v1272 = vunpack.c.l.b16 %v1144
    %v1273 = vunpack.c.l.b16 %v1145
    %v1274 = vunpack.c.l.b16 %v1146
    %v1275 = vunpack.c.l.b16 %v1147
    %v1276 = vunpack.c.l.b16 %v1148
    %v1277 = vunpack.c.l.b16 %v1149
    %v1278 = vunpack.c.l.b16 %v1150
    %v1279 = vunpack.c.l.b16 %v1151
    %v1280 = vunpack.c.l.b16 %v1152
    %v1281 = vunpack.c.l.b16 %v1153
    %v1282 = vunpack.c.l.b16 %v1154
    %v1283 = vunpack.c.l.b16 %v1155
    %v1284 = vunpack.c.l.b16 %v1156
    %v1285 = vunpack.c.l.b16 %v1157
    %v1286 = vunpack.c.l.b16 %v1158
    %v1287 = vunpack.c.l.b16 %v1159
    %v1288 = vunpack.c.l.b16 %v1160
    %v1289 = vunpack.c.l.b16 %v1161
    %v1290 = vunpack.c.l.b16 %v1162
    %v1291 = vunpack.c.l.b16 %v1163
    %v1292 = vunpack.c.l.b16 %v1164
    %v1293 = vunpack.c.l.b16 %v1165
    %v1294 = vunpack.c.l.b16 %v1166
    %v1295 = vunpack.c.l.b16 %v1167
    %v1296 = vunpack.c.l.b16 %v1168
    %v1297 = vunpack.c.l.b16 %v1169
    %v1298 = vunpack.c.l.b16 %v1170
    %v1299 = vunpack.c.l.b16 %v1171
    %v1300 = vunpack.c.l.b16 %v1172
    %v1301 = vunpack.c.l.b16 %v1173
    %v1302 = vunpack.c.l.b16 %v1174
    %v1303 = vunpack.c.l.b16 %v1175
    %v1304 = vunpack.c.l.b16 %v1176
    %v1305 = vunpack.c.l.b16 %v1177
    %v1306 = vunpack.c.l.b16 %v1178
    %v1307 = vunpack.c.l.b16 %v1179
    %v1308 = vunpack.c.l.b16 %v1180
    %v1309 = vunpack.c.l.b16 %v1181
    %v1310 = vunpack.c.l.b16 %v1182
    %v1311 = vunpack.c.l.b16 %v1183
    %v1312 = vunpack.c.l.b16 %v1184
    %v1313 = vunpack.c.l.b16 %v1185
    %v1314 = vunpack.c.l.b16 %v1186
    %v1315 = vunpack.c.l.b16 %v1187
    %v1316 = vunpack.c.l.b16 %v1188
    %v1317 = vunpack.c.l.b16 %v1189
    %v1318 = vunpack.c.l.b16 %v1190
    %v1319 = vunpack.c.l.b16 %v1191
    %v1320 = vunpack.c.l.b16 %v1192
    %v1321 = vunpack.c.l.b16 %v1193
    %v1322 = vunpack.c.l.b16 %v1194
    %v1323 = vunpack.c.l.b16 %v1195
    %v1324 = vunpack.c.l.b16 %v1196
    %v1325 = vunpack.c.l.b16 %v1197
    %v1326 = vunpack.c.l.b16 %v1198
    %v1327 = vunpack.c.l.b16 %v1199
    %v1328 = vunpack.c.l.b16 %v1200
    %v1329 = vunpack.c.l.b16 %v1201
    %v1330 = vunpack.c.l.b16 %v1202
    %v1331 = vunpack.c.l.b16 %v1203
    %v1332 = vunpack.c.l.b16 %v1204
    %v1333 = vunpack.c.l.b16 %v1205
    %v1334 = vpack.c.b16 %v1271, %v1270
    %v1335 = vpack.c.b16 %v1273, %v1272
    %v1336 = vpack.c.b16 %v1275, %v1274
    %v1337 = vpack.c.b16 %v1277, %v1276
    %v1338 = vpack.c.b16 %v1279, %v1278
    %v1339 = vpack.c.b16 %v1281, %v1280
    %v1340 = vpack.c.b16 %v1283, %v1282
    %v1341 = vpack.c.b16 %v1285, %v1284
    %v1342 = vpack.c.b16 %v1287, %v1286
    %v1343 = vpack.c.b16 %v1289, %v1288
    %v1344 = vpack.c.b16 %v1291, %v1290
    %v1345 = vpack.c.b16 %v1293, %v1292
    %v1346 = vpack.c.b16 %v1295, %v1294
    %v1347 = vpack.c.b16 %v1297, %v1296
    %v1348 = vpack.c.b16 %v1299, %v1298
    %v1349 = vpack.c.b16 %v1301, %v1300
    %v1350 = vpack.c.b16 %v1303, %v1302
    %v1351 = vpack.c.b16 %v1305, %v1304
    %v1352 = vpack.c.b16 %v1307, %v1306
    %v1353 = vpack.c.b16 %v1309, %v1308
    %v1354 = vpack.c.b16 %v1311, %v1310
    %v1355 = vpack.c.b16 %v1313, %v1312
    %v1356 = vpack.c.b16 %v1315, %v1314
    %v1357 = vpack.c.b16 %v1317, %v1316
    %v1358 = vpack.c.b16 %v1319, %v1318
    %v1359 = vpack.c.b16 %v1321, %v1320
    %v1360 = vpack.c.b16 %v1323, %v1322
    %v1361 = vpack.c.b16 %v1325, %v1324
    %v1362 = vpack.c.b16 %v1327, %v1326
    %v1363 = vpack.c.b16 %v1329, %v1328
    %v1364 = vpack.c.b16 %v1331, %v1330
    %v1365 = vpack.c.b16 %v1333, %v1332
    %1398 = vmatprep.subr.bf16.mxu0 0
    %1399 = vmatpush1.bf16.msra.mxu0 %v1334
    %1400 = vmatprep.subr.bf16.mxu0 0
    %1401 = vmatpush1.bf16.msra.mxu0 %v1335
    %1402 = vmatprep.subr.bf16.mxu0 0
    %1403 = vmatpush1.bf16.msra.mxu0 %v1336
    %1404 = vmatprep.subr.bf16.mxu0 0
    %1405 = vmatpush1.bf16.msra.mxu0 %v1337
    %1406 = vmatprep.subr.bf16.mxu0 0
    %1407 = vmatpush1.bf16.msra.mxu0 %v1338
    %1408 = vmatprep.subr.bf16.mxu0 0
    %1409 = vmatpush1.bf16.msra.mxu0 %v1339
    %1410 = vmatprep.subr.bf16.mxu0 0
    %1411 = vmatpush1.bf16.msra.mxu0 %v1340
    %1412 = vmatprep.subr.bf16.mxu0 0
    %1413 = vmatpush1.bf16.msra.mxu0 %v1341
    %1414 = vmatprep.subr.bf16.mxu0 0
    %1415 = vmatpush1.bf16.msra.mxu0 %v1342
    %1416 = vmatprep.subr.bf16.mxu0 0
    %1417 = vmatpush1.bf16.msra.mxu0 %v1343
    %1418 = vmatprep.subr.bf16.mxu0 0
    %1419 = vmatpush1.bf16.msra.mxu0 %v1344
    %1420 = vmatprep.subr.bf16.mxu0 0
    %1421 = vmatpush1.bf16.msra.mxu0 %v1345
    %1422 = vmatprep.subr.bf16.mxu0 0
    %1423 = vmatpush1.bf16.msra.mxu0 %v1346
    %1424 = vmatprep.subr.bf16.mxu0 0
    %1425 = vmatpush1.bf16.msra.mxu0 %v1347
    %1426 = vmatprep.subr.bf16.mxu0 0
    %1427 = vmatpush1.bf16.msra.mxu0 %v1348
    %1428 = vmatprep.subr.bf16.mxu0 0
    %1429 = vmatpush1.bf16.msra.mxu0 %v1349
    %1430 = vmatprep.mubr.bf16.mxu0 %v1111
    %1431 = vmatmul.mubr.bf16.gmra.mrb[0].mxu0 %v1110
    %v1432 = vpop.f32.mrb[0].mxu0
    %v1433 = vadd.f32 0.0, %v1432
    %v1434 = vpop.f32.mrb[0].mxu0
    %v1435 = vpop.f32.mrb[0].mxu0
    %v1436 = vadd.f32 0.0, %v1435
    %v1437 = vpop.f32.mrb[0].mxu0
    %1438 = vmatprep.mubr.bf16.mxu0 %v1115
    %1439 = vmatmul.mubr.bf16.gmra.mrb[0].mxu0 %v1114
    %v1440 = vpop.f32.mrb[0].mxu0
    %v1441 = vadd.f32 0.0, %v1440
    %v1442 = vpop.f32.mrb[0].mxu0
    %v1443 = vpop.f32.mrb[0].mxu0
    %v1444 = vadd.f32 0.0, %v1443
    %v1445 = vpop.f32.mrb[0].mxu0
    %1446 = vmatprep.mubr.bf16.mxu0 %v1119
    %1447 = vmatmul.mubr.bf16.gmra.mrb[0].mxu0 %v1118
    %v1448 = vpop.f32.mrb[0].mxu0
    %v1449 = vadd.f32 0.0, %v1448
    %v1450 = vpop.f32.mrb[0].mxu0
    %v1451 = vpop.f32.mrb[0].mxu0
    %v1452 = vadd.f32 0.0, %v1451
    %v1453 = vpop.f32.mrb[0].mxu0
    %1454 = vmatprep.mubr.bf16.mxu0 %v1123
    %1455 = vmatmul.mubr.bf16.gmra.mrb[0].mxu0 %v1122
    %v1456 = vpop.f32.mrb[0].mxu0
    %v1457 = vadd.f32 0.0, %v1456
    %v1458 = vpop.f32.mrb[0].mxu0
    %v1459 = vpop.f32.mrb[0].mxu0
    %v1460 = vadd.f32 0.0, %v1459
    %v1461 = vpop.f32.mrb[0].mxu0
    %1462 = vmatprep.mubr.bf16.mxu0 %v1127
    %1463 = vmatmul.mubr.bf16.gmra.mrb[0].mxu0 %v1126
    %v1464 = vpop.f32.mrb[0].mxu0
    %v1465 = vadd.f32 0.0, %v1464
    %v1466 = vpop.f32.mrb[0].mxu0
    %v1467 = vpop.f32.mrb[0].mxu0
    %v1468 = vadd.f32 0.0, %v1467
    %v1469 = vpop.f32.mrb[0].mxu0
    %1470 = vmatprep.mubr.bf16.mxu0 %v1131
    %1471 = vmatmul.mubr.bf16.gmra.mrb[0].mxu0 %v1130
    %v1472 = vpop.f32.mrb[0].mxu0
    %v1473 = vadd.f32 0.0, %v1472
    %v1474 = vpop.f32.mrb[0].mxu0
    %v1475 = vpop.f32.mrb[0].mxu0
    %v1476 = vadd.f32 0.0, %v1475
    %v1477 = vpop.f32.mrb[0].mxu0
    %1478 = vmatprep.mubr.bf16.mxu0 %v1135
    %1479 = vmatmul.mubr.bf16.gmra.mrb[0].mxu0 %v1134
    %v1480 = vpop.f32.mrb[0].mxu0
    %v1481 = vadd.f32 0.0, %v1480
    %v1482 = vpop.f32.mrb[0].mxu0
    %v1483 = vpop.f32.mrb[0].mxu0
    %v1484 = vadd.f32 0.0, %v1483
    %v1485 = vpop.f32.mrb[0].mxu0
    %1486 = vmatprep.mubr.bf16.mxu0 %v1139
    %1487 = vmatmul.mubr.bf16.gmra.mrb[0].mxu0 %v1138
    %v1488 = vpop.f32.mrb[0].mxu0
    %v1489 = vadd.f32 0.0, %v1488
    %v1490 = vpop.f32.mrb[0].mxu0
    %v1491 = vpop.f32.mrb[0].mxu0
    %v1492 = vadd.f32 0.0, %v1491
    %v1493 = vpop.f32.mrb[0].mxu0
    %1494 = vdwg.mxu0
    %1495 = vmatprep.subr.bf16.mxu0 0
    %1496 = vmatpush1.bf16.msra.mxu0 %v1350
    %1497 = vmatprep.subr.bf16.mxu0 0
    %1498 = vmatpush1.bf16.msra.mxu0 %v1351
    %1499 = vmatprep.subr.bf16.mxu0 0
    %1500 = vmatpush1.bf16.msra.mxu0 %v1352
    %1501 = vmatprep.subr.bf16.mxu0 0
    %1502 = vmatpush1.bf16.msra.mxu0 %v1353
    %1503 = vmatprep.subr.bf16.mxu0 0
    %1504 = vmatpush1.bf16.msra.mxu0 %v1354
    %1505 = vmatprep.subr.bf16.mxu0 0
    %1506 = vmatpush1.bf16.msra.mxu0 %v1355
    %1507 = vmatprep.subr.bf16.mxu0 0
    %1508 = vmatpush1.bf16.msra.mxu0 %v1356
    %1509 = vmatprep.subr.bf16.mxu0 0
    %1510 = vmatpush1.bf16.msra.mxu0 %v1357
    %1511 = vmatprep.subr.bf16.mxu0 0
    %1512 = vmatpush1.bf16.msra.mxu0 %v1358
    %1513 = vmatprep.subr.bf16.mxu0 0
    %1514 = vmatpush1.bf16.msra.mxu0 %v1359
    %1515 = vmatprep.subr.bf16.mxu0 0
    %1516 = vmatpush1.bf16.msra.mxu0 %v1360
    %1517 = vmatprep.subr.bf16.mxu0 0
    %1518 = vmatpush1.bf16.msra.mxu0 %v1361
    %1519 = vmatprep.subr.bf16.mxu0 0
    %1520 = vmatpush1.bf16.msra.mxu0 %v1362
    %1521 = vmatprep.subr.bf16.mxu0 0
    %1522 = vmatpush1.bf16.msra.mxu0 %v1363
    %1523 = vmatprep.subr.bf16.mxu0 0
    %1524 = vmatpush1.bf16.msra.mxu0 %v1364
    %1525 = vmatprep.subr.bf16.mxu0 0
    %1526 = vmatpush1.bf16.msra.mxu0 %v1365
    %1527 = vmatprep.mubr.bf16.mxu0 %v1113
    %1528 = vmatmul.mubr.bf16.gmra.mrb[0].mxu0 %v1112
    %v1529 = vpop.f32.mrb[0].mxu0
    %v1530 = vadd.f32 %v1433, %v1529
    %v1531 = vpop.f32.mrb[0].mxu0
    %v1532 = vpop.f32.mrb[0].mxu0
    %v1533 = vadd.f32 %v1436, %v1532
    %v1534 = vpop.f32.mrb[0].mxu0
    %1535 = vmatprep.mubr.bf16.mxu0 %v1117
    %1536 = vmatmul.mubr.bf16.gmra.mrb[0].mxu0 %v1116
    %v1537 = vpop.f32.mrb[0].mxu0
    %v1538 = vadd.f32 %v1441, %v1537
    %v1539 = vpop.f32.mrb[0].mxu0
    %v1540 = vpop.f32.mrb[0].mxu0
    %v1541 = vadd.f32 %v1444, %v1540
    %v1542 = vpop.f32.mrb[0].mxu0
    %1543 = vmatprep.mubr.bf16.mxu0 %v1121
    %1544 = vmatmul.mubr.bf16.gmra.mrb[0].mxu0 %v1120
    %v1545 = vpop.f32.mrb[0].mxu0
    %v1546 = vadd.f32 %v1449, %v1545
    %v1547 = vpop.f32.mrb[0].mxu0
    %v1548 = vpop.f32.mrb[0].mxu0
    %v1549 = vadd.f32 %v1452, %v1548
    %v1550 = vpop.f32.mrb[0].mxu0
    %1551 = vmatprep.mubr.bf16.mxu0 %v1125
    %1552 = vmatmul.mubr.bf16.gmra.mrb[0].mxu0 %v1124
    %v1553 = vpop.f32.mrb[0].mxu0
    %v1554 = vadd.f32 %v1457, %v1553
    %v1555 = vpop.f32.mrb[0].mxu0
    %v1556 = vpop.f32.mrb[0].mxu0
    %v1557 = vadd.f32 %v1460, %v1556
    %v1558 = vpop.f32.mrb[0].mxu0
    %1559 = vmatprep.mubr.bf16.mxu0 %v1129
    %1560 = vmatmul.mubr.bf16.gmra.mrb[0].mxu0 %v1128
    %v1561 = vpop.f32.mrb[0].mxu0
    %v1562 = vadd.f32 %v1465, %v1561
    %v1563 = vpop.f32.mrb[0].mxu0
    %v1564 = vpop.f32.mrb[0].mxu0
    %v1565 = vadd.f32 %v1468, %v1564
    %v1566 = vpop.f32.mrb[0].mxu0
    %1567 = vmatprep.mubr.bf16.mxu0 %v1133
    %1568 = vmatmul.mubr.bf16.gmra.mrb[0].mxu0 %v1132
    %v1569 = vpop.f32.mrb[0].mxu0
    %v1570 = vadd.f32 %v1473, %v1569
    %v1571 = vpop.f32.mrb[0].mxu0
    %v1572 = vpop.f32.mrb[0].mxu0
    %v1573 = vadd.f32 %v1476, %v1572
    %v1574 = vpop.f32.mrb[0].mxu0
    %1575 = vmatprep.mubr.bf16.mxu0 %v1137
    %1576 = vmatmul.mubr.bf16.gmra.mrb[0].mxu0 %v1136
    %v1577 = vpop.f32.mrb[0].mxu0
    %v1578 = vadd.f32 %v1481, %v1577
    %v1579 = vpop.f32.mrb[0].mxu0
    %v1580 = vpop.f32.mrb[0].mxu0
    %v1581 = vadd.f32 %v1484, %v1580
    %v1582 = vpop.f32.mrb[0].mxu0
    %1583 = vmatprep.mubr.bf16.mxu0 %v1141
    %1584 = vmatmul.mubr.bf16.gmra.mrb[0].mxu0 %v1140
    %v1585 = vpop.f32.mrb[0].mxu0
    %v1586 = vadd.f32 %v1489, %v1585
    %v1587 = vpop.f32.mrb[0].mxu0
    %v1588 = vpop.f32.mrb[0].mxu0
    %v1589 = vadd.f32 %v1492, %v1588
    %v1590 = vpop.f32.mrb[0].mxu0
    %1591 = vdwg.mxu0
    %v1592 = vadd.f32 %v1094, %v1530
    %v1593 = vadd.f32 %v1095, %v1533
    %v1594 = vadd.f32 %v1096, %v1538
    %v1595 = vadd.f32 %v1097, %v1541
    %v1596 = vadd.f32 %v1098, %v1546
    %v1597 = vadd.f32 %v1099, %v1549
    %v1598 = vadd.f32 %v1100, %v1554
    %v1599 = vadd.f32 %v1101, %v1557
    %v1600 = vadd.f32 %v1102, %v1562
    %v1601 = vadd.f32 %v1103, %v1565
    %v1602 = vadd.f32 %v1104, %v1570
    %v1603 = vadd.f32 %v1105, %v1573
    %v1604 = vadd.f32 %v1106, %v1578
    %v1605 = vadd.f32 %v1107, %v1581
    %v1606 = vadd.f32 %v1108, %v1586
    %v1607 = vadd.f32 %v1109, %v1589
    %1608 = vst [vmem:[#allocation3] sm:$0xff] %v1592
    %1609 = vst [vmem:[#allocation3 + $0x8] sm:$0xff] %v1593
    %1610 = vst [vmem:[#allocation3 + $0x10] sm:$0xff] %v1594
    %1611 = vst [vmem:[#allocation3 + $0x18] sm:$0xff] %v1595
    %1612 = vst [vmem:[#allocation3 + $0x20] sm:$0xff] %v1596
    %1613 = vst [vmem:[#allocation3 + $0x28] sm:$0xff] %v1597
    %1614 = vst [vmem:[#allocation3 + $0x30] sm:$0xff] %v1598
    %1615 = vst [vmem:[#allocation3 + $0x38] sm:$0xff] %v1599
    %1616 = vst [vmem:[#allocation3 + $0x40] sm:$0xff] %v1600
    %1617 = vst [vmem:[#allocation3 + $0x48] sm:$0xff] %v1601
    %1618 = vst [vmem:[#allocation3 + $0x50] sm:$0xff] %v1602
    %1619 = vst [vmem:[#allocation3 + $0x58] sm:$0xff] %v1603
    %1620 = vst [vmem:[#allocation3 + $0x60] sm:$0xff] %v1604
    %1621 = vst [vmem:[#allocation3 + $0x68] sm:$0xff] %v1605
    %1622 = vst [vmem:[#allocation3 + $0x70] sm:$0xff] %v1606
    %1623 = vst [vmem:[#allocation3 + $0x78] sm:$0xff] %v1607
    // Predicated region
    $region34: #{global_attention_block.5} parent=1 // pred_check
      _
    $region35: #{global_attention_block.5} parent=1 // pred_check_branch
      %1625 = sbr.rel (0) target = $region37
    $region36: #{global_attention_block.5} parent=1 // pred_region
      %s1627 = ssub.s32 2048, 2048
      %1628 = vsyncadd [#allocation4], %s1627
      %s1629 = sshll.u32 [#allocation3], 4
      %s1630 = int_to_ptr.vmem [resolvable:$true] %s1629
      %1635 = dma.vmem_to_hbm [thread:$0]  %s1630, 2048, %s7, [#allocation4], 128, 128, 8
    $region37: #{global_attention_block.5} parent=1 // pred_fallthru
      _
    // Predicated region
    $region38: #{global_attention_block.5} parent=1 // pred_check
      _
    $region39: #{global_attention_block.5} parent=1 // pred_check_branch
      %1637 = sbr.rel (0) target = $region41
    $region40: #{global_attention_block.5} parent=1 // pred_region
      %1638 = dma.done [#allocation4], 2048
    $region41: #{global_attention_block.5} parent=1 // pred_fallthru
      _
    %1639 = vsyncpa [#allocation4], 1

// kernel: global_attention_block.4
$region0: #{global_attention_block.4}
  #allocation0 [shape = 'u32[]', space=smem, size = 0x4, offset = 0x4, fixed_abs, tag = 'smem constant byte address 0x4 - core index']
  #allocation1 [shape = 'u32[144,128]{1,0:T(1,128)}', space=vmem, size = 0x12000, scoped, tag = 'internal scratch']
  %s0 = inlined_call_operand.vmem [shape: bf16[2,64,384], index: 0, kind: input, shape index: {}]
  %s1 = inlined_call_operand.vmem [shape: bf16[128,128], index: 1, kind: input, shape index: {}]
  %s2 = inlined_call_operand.vmem [shape: f32[1,128], index: 2, kind: input, shape index: {}]
  %s3 = inlined_call_operand.vmem [shape: f32[2,64,128], index: 3, kind: input, shape index: {}]
  %s4 = inlined_call_operand.vmem [shape: f32[2,64,128], index: 4, kind: output, shape index: {}]
  %s5 = sld [smem:[#allocation0]]
  $region49: #{global_attention_block.4} parent=0
    _
  %s7 = ssub.s32 1, %s5
  %s8 = scalar_select 0, %s7, %s5
  loop: start=0, step=1, limit=4
  $region2: #{global_attention_block.4} parent=0 // loop_pre_header
    _
  $region3: #{global_attention_block.4} parent=0 // loop_header
    %s10 = sphi 0, %s14
    %p11 = scmp.ge.s32.totalorder %s10, 4
    %s20 = sphi 0, %s22
    %s23 = sphi 0, %s20
    %s24 = sphi 0, %s23
    %s40 = sphi 0, %s24
    %s44 = sphi 0, %s44
    %s46 = sphi 0, %s44
    %s47 = sphi 0, %s46
    %s61 = sphi 0, %s47
    %s65 = sphi 0, %s65
    %s67 = sphi 0, %s65
    %s68 = sphi 0, %s67
    %s82 = sphi 0, %s68
    %s88 = sphi 0, %s90
    %s91 = sphi 0, %s88
    %s92 = sphi 0, %s91
    %s108 = sphi 0, %s92
    %s114 = sphi 0, %s116
    %s117 = sphi 0, %s114
    %s118 = sphi 0, %s117
    %s134 = sphi 0, %s118
  $region4: #{global_attention_block.4} parent=0 // loop_header_branch
    %13 = sbr.rel (%p11) target = $region8
  $region5: #{global_attention_block.4} parent=0 // loop_body
    %s15 = ssub.s32 %s10, 1
    %s16 = ssub.s32 %s10, 2
    %s17 = sadd.s32 %s10, 1
    %s18 = ssub.s32 %s10, %s17
    %p19 = scmp.eq.s32.totalorder %s18, 0
    %s21 = sadd.s32 %s20, 1
    %s22 = scalar_select %p19, %s20, %s21
    %p25 = pneg %p19
    %p26 = scmp.eq.s32.totalorder %s10, 1
    %p27 = por %p25, %p26
    %p28 = scmp.ne.s32.totalorder %s20, %s23
    %p29 = scmp.eq.s32.totalorder %s10, 0
    %p30 = por %p28, %p29
    %p31 = scmp.ne.s32.totalorder %s20, %s23
    %p32 = scmp.eq.s32.totalorder %s15, 1
    %p33 = por %p31, %p32
    %p34 = scmp.ne.s32.totalorder %s23, %s24
    %p35 = scmp.eq.s32.totalorder %s15, 0
    %p36 = por %p34, %p35
    %p37 = scmp.ne.s32.totalorder %s23, %s24
    %p38 = scmp.eq.s32.totalorder %s16, 1
    %p39 = por %p37, %p38
    %p41 = scmp.ne.s32.totalorder %s24, %s40
    %p42 = scmp.eq.s32.totalorder %s16, 0
    %p43 = por %p41, %p42
    %s45 = sadd.s32 %s44, 1
    %p48 = scmp.eq.s32.totalorder %s10, 1
    %p49 = scmp.ne.s32.totalorder %s44, %s46
    %p50 = scmp.eq.s32.totalorder %s10, 0
    %p51 = por %p49, %p50
    %p52 = scmp.ne.s32.totalorder %s44, %s46
    %p53 = scmp.eq.s32.totalorder %s15, 1
    %p54 = por %p52, %p53
    %p55 = scmp.ne.s32.totalorder %s46, %s47
    %p56 = scmp.eq.s32.totalorder %s15, 0
    %p57 = por %p55, %p56
    %p58 = scmp.ne.s32.totalorder %s46, %s47
    %p59 = scmp.eq.s32.totalorder %s16, 1
    %p60 = por %p58, %p59
    %p62 = scmp.ne.s32.totalorder %s47, %s61
    %p63 = scmp.eq.s32.totalorder %s16, 0
    %p64 = por %p62, %p63
    %s66 = sadd.s32 %s65, 1
    %p69 = scmp.eq.s32.totalorder %s10, 1
    %p70 = scmp.ne.s32.totalorder %s65, %s67
    %p71 = scmp.eq.s32.totalorder %s10, 0
    %p72 = por %p70, %p71
    %p73 = scmp.ne.s32.totalorder %s65, %s67
    %p74 = scmp.eq.s32.totalorder %s15, 1
    %p75 = por %p73, %p74
    %p76 = scmp.ne.s32.totalorder %s67, %s68
    %p77 = scmp.eq.s32.totalorder %s15, 0
    %p78 = por %p76, %p77
    %p79 = scmp.ne.s32.totalorder %s67, %s68
    %p80 = scmp.eq.s32.totalorder %s16, 1
    %p81 = por %p79, %p80
    %p83 = scmp.ne.s32.totalorder %s68, %s82
    %p84 = scmp.eq.s32.totalorder %s16, 0
    %p85 = por %p83, %p84
    %s86 = ssub.s32 %s10, %s17
    %p87 = scmp.eq.s32.totalorder %s86, 0
    %s89 = sadd.s32 %s88, 1
    %s90 = scalar_select %p87, %s88, %s89
    %p93 = pneg %p87
    %p94 = scmp.eq.s32.totalorder %s10, 1
    %p95 = por %p93, %p94
    %p96 = scmp.ne.s32.totalorder %s88, %s91
    %p97 = scmp.eq.s32.totalorder %s10, 0
    %p98 = por %p96, %p97
    %p99 = scmp.ne.s32.totalorder %s88, %s91
    %p100 = scmp.eq.s32.totalorder %s15, 1
    %p101 = por %p99, %p100
    %p102 = scmp.ne.s32.totalorder %s91, %s92
    %p103 = scmp.eq.s32.totalorder %s15, 0
    %p104 = por %p102, %p103
    %p105 = scmp.ne.s32.totalorder %s91, %s92
    %p106 = scmp.eq.s32.totalorder %s16, 1
    %p107 = por %p105, %p106
    %p109 = scmp.ne.s32.totalorder %s92, %s108
    %p110 = scmp.eq.s32.totalorder %s16, 0
    %p111 = por %p109, %p110
    %s112 = ssub.s32 %s10, %s17
    %p113 = scmp.eq.s32.totalorder %s112, 0
    %s115 = sadd.s32 %s114, 1
    %s116 = scalar_select %p113, %s114, %s115
    %p119 = pneg %p113
    %p120 = scmp.eq.s32.totalorder %s10, 1
    %p121 = por %p119, %p120
    %p122 = scmp.ne.s32.totalorder %s114, %s117
    %p123 = scmp.eq.s32.totalorder %s10, 0
    %p124 = por %p122, %p123
    %p125 = scmp.ne.s32.totalorder %s114, %s117
    %p126 = scmp.eq.s32.totalorder %s15, 1
    %p127 = por %p125, %p126
    %p128 = scmp.ne.s32.totalorder %s117, %s118
    %p129 = scmp.eq.s32.totalorder %s15, 0
    %p130 = por %p128, %p129
    %p131 = scmp.ne.s32.totalorder %s117, %s118
    %p132 = scmp.eq.s32.totalorder %s16, 1
    %p133 = por %p131, %p132
    %p135 = scmp.ne.s32.totalorder %s118, %s134
    %p136 = scmp.eq.s32.totalorder %s16, 0
    %p137 = por %p135, %p136
    %p138 = scmp.le.s32.totalorder 1, %s10
    %p139 = scmp.lt.s32.totalorder %s10, 3
    %p140 = pnand %p138, %p139
    %p141 = pneg %p140
    // Predicated region
    $region9: #{global_attention_block.4} parent=5 // pred_check
      _
    $region10: #{global_attention_block.4} parent=5 // pred_check_branch
      %143 = sbr.rel (%p140) target = $region12
    $region11: #{global_attention_block.4} parent=5 // pred_region
      %s144 = ssub.s32 %s10, 1
      // Predicated region
      $region13: #{global_attention_block.4} parent=11 // pred_check
        %p145 = pneg %p57
      $region14: #{global_attention_block.4} parent=11 // pred_check_branch
        %147 = sbr.rel (%p145) target = $region16
      $region15: #{global_attention_block.4} parent=11 // pred_region
        _
      $region16: #{global_attention_block.4} parent=11 // pred_fallthru
        _
      // Predicated region
      $region17: #{global_attention_block.4} parent=11 // pred_check
        %p148 = pneg %p78
      $region18: #{global_attention_block.4} parent=11 // pred_check_branch
        %150 = sbr.rel (%p148) target = $region20
      $region19: #{global_attention_block.4} parent=11 // pred_region
        _
      $region20: #{global_attention_block.4} parent=11 // pred_fallthru
        _
    $region12: #{global_attention_block.4} parent=5 // pred_fallthru
      _
    %p151 = scmp.lt.s32.totalorder %s10, 2
    // Predicated region
    $region21: #{global_attention_block.4} parent=5 // pred_check
      %p152 = pneg %p151
    $region22: #{global_attention_block.4} parent=5 // pred_check_branch
      %154 = sbr.rel (%p152) target = $region24
    $region23: #{global_attention_block.4} parent=5 // pred_region
      // Predicated region
      $region25: #{global_attention_block.4} parent=23 // pred_check
        %p155 = pneg %p30
      $region26: #{global_attention_block.4} parent=23 // pred_check_branch
        %157 = sbr.rel (%p155) target = $region28
      $region27: #{global_attention_block.4} parent=23 // pred_region
        %p158 = scmp.lt.s32.totalorder %s10, 1
        %s159 = scalar_select %p158, %s10, 1
        %s160 = smul.addr %s159, 24
        %s161 = smul.addr %s160, 4
        %s162 = scalar_lea.vmem %s0, %s161
      $region28: #{global_attention_block.4} parent=23 // pred_fallthru
        _
      // Predicated region
      $region29: #{global_attention_block.4} parent=23 // pred_check
        %p163 = pneg %p98
      $region30: #{global_attention_block.4} parent=23 // pred_check_branch
        %165 = sbr.rel (%p163) target = $region32
      $region31: #{global_attention_block.4} parent=23 // pred_region
        %p166 = scmp.lt.s32.totalorder %s10, 1
        %s167 = scalar_select %p166, %s10, 1
        %s168 = smul.addr %s167, 8
        %s169 = smul.addr %s168, 8
        %s170 = scalar_lea.vmem %s3, %s169
      $region32: #{global_attention_block.4} parent=23 // pred_fallthru
        _
    $region24: #{global_attention_block.4} parent=5 // pred_fallthru
      _
    %p171 = scmp.le.s32.totalorder 1, %s10
    %p172 = scmp.lt.s32.totalorder %s10, 3
    %p173 = pnand %p171, %p172
    %p174 = pneg %p173
    // Predicated region
    $region33: #{global_attention_block.4} parent=5 // pred_check
      _
    $region34: #{global_attention_block.4} parent=5 // pred_check_branch
      %176 = sbr.rel (%p173) target = $region36
    $region35: #{global_attention_block.4} parent=5 // pred_region
      %s177 = ssub.s32 %s10, 1
      %p178 = scmp.lt.s32.totalorder %s15, 1
      %s179 = scalar_select %p178, %s15, 1
      %s180 = smul.addr %s179, 24
      %s181 = smul.addr %s180, 4
      %s182 = scalar_lea.vmem %s0, %s181
      %p183 = pneg %p36
      %p184 = pneg %p33
      %p185 = pneg %p57
      %p186 = pneg %p54
      %p187 = pneg %p78
      %p188 = pneg %p75
      %p189 = scmp.lt.s32.totalorder %s15, 1
      %s190 = scalar_select %p189, %s15, 1
      %s191 = smul.addr %s190, 8
      %s192 = smul.addr %s191, 8
      %s193 = scalar_lea.vmem %s3, %s192
      %p194 = pneg %p104
      %p195 = pneg %p101
      %p196 = pneg %p130
      %p197 = pneg %p127
      %p198 = scmp.lt.s32.totalorder %s15, 1
      %s199 = scalar_select %p198, %s15, 1
      %s200 = smul.addr %s199, 8
      %s201 = smul.addr %s200, 8
      %s202 = scalar_lea.vmem %s4, %s201
      %p203 = scmp.lt.s32.totalorder %s15, 1
      %s204 = scalar_select %p203, %s15, 1
      %s205 = smul.addr %s204, 24
      %s206 = smul.addr %s205, 4
      %s207 = scalar_lea.vmem %s0, %s206
      %p208 = scmp.lt.s32.totalorder %s15, 1
      %s209 = scalar_select %p208, %s15, 1
      %s210 = smul.addr %s209, 8
      %s211 = smul.addr %s210, 8
      %s212 = scalar_lea.vmem %s3, %s211
      %p213 = scmp.lt.s32.totalorder %s15, 1
      %s214 = scalar_select %p213, %s15, 1
      %s215 = smul.addr %s214, 8
      %s216 = smul.addr %s215, 8
      %s217 = scalar_lea.vmem %s4, %s216
      %v219 = vld [vmem:[%s207] sm:$0xff]
      %v220 = vld [vmem:[%s207 + $0x8] sm:$0xf]
      %v221 = vld [vmem:[%s207 + $0xc] sm:$0xff]
      %v222 = vld [vmem:[%s207 + $0x14] sm:$0xf]
      %v223 = vld [vmem:[%s207 + $0x18] sm:$0xff]
      %v224 = vld [vmem:[%s207 + $0x20] sm:$0xf]
      %v225 = vld [vmem:[%s207 + $0x24] sm:$0xff]
      %v226 = vld [vmem:[%s207 + $0x2c] sm:$0xf]
      %v227 = vld [vmem:[%s207 + $0x30] sm:$0xff]
      %v228 = vld [vmem:[%s207 + $0x38] sm:$0xf]
      %v229 = vld [vmem:[%s207 + $0x3c] sm:$0xff]
      %v230 = vld [vmem:[%s207 + $0x44] sm:$0xf]
      %v231 = vld [vmem:[%s207 + $0x48] sm:$0xff]
      %v232 = vld [vmem:[%s207 + $0x50] sm:$0xf]
      %v233 = vld [vmem:[%s207 + $0x54] sm:$0xff]
      %v234 = vld [vmem:[%s207 + $0x5c] sm:$0xf]
      %v235 = vld [vmem:[%s1] sm:$0xf]
      %v236 = vld [vmem:[%s1 + $0x4] sm:$0xf]
      %v237 = vld [vmem:[%s1 + $0x8] sm:$0xf]
      %v238 = vld [vmem:[%s1 + $0xc] sm:$0xf]
      %v239 = vld [vmem:[%s1 + $0x10] sm:$0xf]
      %v240 = vld [vmem:[%s1 + $0x14] sm:$0xf]
      %v241 = vld [vmem:[%s1 + $0x18] sm:$0xf]
      %v242 = vld [vmem:[%s1 + $0x1c] sm:$0xf]
      %v243 = vld [vmem:[%s1 + $0x20] sm:$0xf]
      %v244 = vld [vmem:[%s1 + $0x24] sm:$0xf]
      %v245 = vld [vmem:[%s1 + $0x28] sm:$0xf]
      %v246 = vld [vmem:[%s1 + $0x2c] sm:$0xf]
      %v247 = vld [vmem:[%s1 + $0x30] sm:$0xf]
      %v248 = vld [vmem:[%s1 + $0x34] sm:$0xf]
      %v249 = vld [vmem:[%s1 + $0x38] sm:$0xf]
      %v250 = vld [vmem:[%s1 + $0x3c] sm:$0xf]
      %v251 = vld [vmem:[%s212] sm:$0xff]
      %v252 = vld [vmem:[%s212 + $0x8] sm:$0xff]
      %v253 = vld [vmem:[%s212 + $0x10] sm:$0xff]
      %v254 = vld [vmem:[%s212 + $0x18] sm:$0xff]
      %v255 = vld [vmem:[%s212 + $0x20] sm:$0xff]
      %v256 = vld [vmem:[%s212 + $0x28] sm:$0xff]
      %v257 = vld [vmem:[%s212 + $0x30] sm:$0xff]
      %v258 = vld [vmem:[%s212 + $0x38] sm:$0xff]
      %v259 = vld [vmem:[%s2] sm:$0x1]
      %v261 = vlaneseq
      %v262 = vshrl.u32 %v261, 7
      %v263 = vsub.s32 0, %v262
      %v264 = vrot.slane %v259, %v263
      %v266 = vadd.f32 %v251, %v264
      %v267 = vadd.f32 %v252, %v264
      %v268 = vadd.f32 %v253, %v264
      %v269 = vadd.f32 %v254, %v264
      %v270 = vadd.f32 %v255, %v264
      %v271 = vadd.f32 %v256, %v264
      %v272 = vadd.f32 %v257, %v264
      %v273 = vadd.f32 %v258, %v264
      %v274 = vunpack.c.l.bf16 %v219
      %v275 = vunpack.c.l.bf16 %v221
      %v276 = vunpack.c.l.bf16 %v223
      %v277 = vunpack.c.l.bf16 %v225
      %v278 = vunpack.c.l.bf16 %v227
      %v279 = vunpack.c.l.bf16 %v229
      %v280 = vunpack.c.l.bf16 %v231
      %v281 = vunpack.c.l.bf16 %v233
      %v282 = vmul.f32 %v274, 0.25
      %v283 = vmul.f32 %v275, 0.25
      %v284 = vmul.f32 %v276, 0.25
      %v285 = vmul.f32 %v277, 0.25
      %v286 = vmul.f32 %v278, 0.25
      %v287 = vmul.f32 %v279, 0.25
      %v288 = vmul.f32 %v280, 0.25
      %v289 = vmul.f32 %v281, 0.25
      %v290 = vpack.c.bf16 %v283, %v282
      %v291 = vpack.c.bf16 %v285, %v284
      %v292 = vpack.c.bf16 %v287, %v286
      %v293 = vpack.c.bf16 %v289, %v288
      %v302 = vunpack.c.h.b16 %v219
      %v303 = vunpack.c.h.b16 %v221
      %v304 = vunpack.c.h.b16 %v223
      %v305 = vunpack.c.h.b16 %v225
      %v306 = vunpack.c.h.b16 %v227
      %v307 = vunpack.c.h.b16 %v229
      %v308 = vunpack.c.h.b16 %v231
      %v309 = vunpack.c.h.b16 %v233
      %v310 = vpack.c.b16 %v303, %v302
      %v311 = vpack.c.b16 %v305, %v304
      %v312 = vpack.c.b16 %v307, %v306
      %v313 = vpack.c.b16 %v309, %v308
      %vm314 = vcmask 130048
      %v316 = vsel %vm314, %v290, 0
      %v319 = vsel %vm314, %v291, 0
      %v322 = vsel %vm314, %v292, 0
      %v325 = vsel %vm314, %v293, 0
      %v328 = vsel %vm314, %v310, 0
      %v331 = vsel %vm314, %v311, 0
      %v334 = vsel %vm314, %v312, 0
      %v337 = vsel %vm314, %v313, 0
      %339 = vmatprep.subr.bf16.mxu0 0
      %340 = vmatpush1.bf16.xpose.msra.mxu0 %v328
      %341 = vmatprep.subr.bf16.mxu0 0
      %342 = vmatpush1.bf16.xpose.msra.mxu0 %v331
      %343 = vmatprep.subr.bf16.mxu0 0
      %344 = vmatpush1.bf16.xpose.msra.mxu0 %v334
      %345 = vmatprep.subr.bf16.mxu0 0
      %346 = vmatpush1.bf16.xpose.msra.mxu0 %v337
      %347 = vmatprep.subr.bf16.mxu0 0
      %348 = vmatpush1.bf16.xpose.msra.mxu0 0
      %349 = vmatprep.subr.bf16.mxu0 0
      %350 = vmatpush1.bf16.xpose.msra.mxu0 0
      %351 = vmatprep.subr.bf16.mxu0 0
      %352 = vmatpush1.bf16.xpose.msra.mxu0 0
      %353 = vmatprep.subr.bf16.mxu0 0
      %354 = vmatpush1.bf16.xpose.msra.mxu0 0
      %355 = vmatprep.subr.bf16.mxu0 0
      %356 = vmatpush1.bf16.xpose.msra.mxu0 0
      %357 = vmatprep.subr.bf16.mxu0 0
      %358 = vmatpush1.bf16.xpose.msra.mxu0 0
      %359 = vmatprep.subr.bf16.mxu0 0
      %360 = vmatpush1.bf16.xpose.msra.mxu0 0
      %361 = vmatprep.subr.bf16.mxu0 0
      %362 = vmatpush1.bf16.xpose.msra.mxu0 0
      %363 = vmatprep.subr.bf16.mxu0 0
      %364 = vmatpush1.bf16.xpose.msra.mxu0 0
      %365 = vmatprep.subr.bf16.mxu0 0
      %366 = vmatpush1.bf16.xpose.msra.mxu0 0
      %367 = vmatprep.subr.bf16.mxu0 0
      %368 = vmatpush1.bf16.xpose.msra.mxu0 0
      %369 = vmatprep.subr.bf16.mxu0 0
      %370 = vmatpush1.bf16.xpose.msra.mxu0 0
      %371 = vmatprep.mubr.bf16.mxu0 0
      %372 = vmatmul.mubr.bf16.gmra.mrb[0].mxu0 %v316
      %v373 = vpop.f32.mrb[0].mxu0
      %v374 = vadd.f32 0.0, %v373
      %v375 = vpop.f32.mrb[0].mxu0
      %v376 = vpop.f32.mrb[0].mxu0
      %v377 = vadd.f32 0.0, %v376
      %v378 = vpop.f32.mrb[0].mxu0
      %379 = vmatprep.mubr.bf16.mxu0 0
      %380 = vmatmul.mubr.bf16.gmra.mrb[0].mxu0 %v319
      %v381 = vpop.f32.mrb[0].mxu0
      %v382 = vadd.f32 0.0, %v381
      %v383 = vpop.f32.mrb[0].mxu0
      %v384 = vpop.f32.mrb[0].mxu0
      %v385 = vadd.f32 0.0, %v384
      %v386 = vpop.f32.mrb[0].mxu0
      %387 = vmatprep.mubr.bf16.mxu0 0
      %388 = vmatmul.mubr.bf16.gmra.mrb[0].mxu0 %v322
      %v389 = vpop.f32.mrb[0].mxu0
      %v390 = vadd.f32 0.0, %v389
      %v391 = vpop.f32.mrb[0].mxu0
      %v392 = vpop.f32.mrb[0].mxu0
      %v393 = vadd.f32 0.0, %v392
      %v394 = vpop.f32.mrb[0].mxu0
      %395 = vmatprep.mubr.bf16.mxu0 0
      %396 = vmatmul.mubr.bf16.gmra.mrb[0].mxu0 %v325
      %v397 = vpop.f32.mrb[0].mxu0
      %v398 = vadd.f32 0.0, %v397
      %v399 = vpop.f32.mrb[0].mxu0
      %v400 = vpop.f32.mrb[0].mxu0
      %v401 = vadd.f32 0.0, %v400
      %v402 = vpop.f32.mrb[0].mxu0
      %403 = vdwg.mxu0
      %vm404 = vcmask 523264
      %v405 = vsel %vm404, %v374, -inf
      %406 = vmax.xlane.f32.xlu0 %v405
      %v407 = vpop.xlane.xlu0 %406
      %v408 = vsel %vm404, %v377, -inf
      %409 = vmax.xlane.f32.xlu0 %v408
      %v410 = vpop.xlane.xlu0 %409
      %v411 = vsel %vm404, %v382, -inf
      %412 = vmax.xlane.f32.xlu0 %v411
      %v413 = vpop.xlane.xlu0 %412
      %v414 = vsel %vm404, %v385, -inf
      %415 = vmax.xlane.f32.xlu0 %v414
      %v416 = vpop.xlane.xlu0 %415
      %v417 = vsel %vm404, %v390, -inf
      %418 = vmax.xlane.f32.xlu0 %v417
      %v419 = vpop.xlane.xlu0 %418
      %v420 = vsel %vm404, %v393, -inf
      %421 = vmax.xlane.f32.xlu0 %v420
      %v422 = vpop.xlane.xlu0 %421
      %v423 = vsel %vm404, %v398, -inf
      %424 = vmax.xlane.f32.xlu0 %v423
      %v425 = vpop.xlane.xlu0 %424
      %v426 = vsel %vm404, %v401, -inf
      %427 = vmax.xlane.f32.xlu0 %v426
      %v428 = vpop.xlane.xlu0 %427
      %v429 = vsub.f32 %v374, %v407
      %v430 = vsub.f32 %v377, %v410
      %v431 = vsub.f32 %v382, %v413
      %v432 = vsub.f32 %v385, %v416
      %v433 = vsub.f32 %v390, %v419
      %v434 = vsub.f32 %v393, %v422
      %v435 = vsub.f32 %v398, %v425
      %v436 = vsub.f32 %v401, %v428
      %v437 = vmul.f32 %v429, 1.442695
      %v438 = vpow.pop %v437
      %v439 = vmul.f32 %v430, 1.442695
      %v440 = vpow.pop %v439
      %v441 = vmul.f32 %v431, 1.442695
      %v442 = vpow.pop %v441
      %v443 = vmul.f32 %v432, 1.442695
      %v444 = vpow.pop %v443
      %v445 = vmul.f32 %v433, 1.442695
      %v446 = vpow.pop %v445
      %v447 = vmul.f32 %v434, 1.442695
      %v448 = vpow.pop %v447
      %v449 = vmul.f32 %v435, 1.442695
      %v450 = vpow.pop %v449
      %v451 = vmul.f32 %v436, 1.442695
      %v452 = vpow.pop %v451
      %v453 = vsel %vm404, %v438, 0.0
      %454 = vadd.xlane.f32.xlu0 %v453
      %v455 = vpop.xlane.xlu0 %454
      %v456 = vsel %vm404, %v440, 0.0
      %457 = vadd.xlane.f32.xlu0 %v456
      %v458 = vpop.xlane.xlu0 %457
      %v459 = vsel %vm404, %v442, 0.0
      %460 = vadd.xlane.f32.xlu0 %v459
      %v461 = vpop.xlane.xlu0 %460
      %v462 = vsel %vm404, %v444, 0.0
      %463 = vadd.xlane.f32.xlu0 %v462
      %v464 = vpop.xlane.xlu0 %463
      %v465 = vsel %vm404, %v446, 0.0
      %466 = vadd.xlane.f32.xlu0 %v465
      %v467 = vpop.xlane.xlu0 %466
      %v468 = vsel %vm404, %v448, 0.0
      %469 = vadd.xlane.f32.xlu0 %v468
      %v470 = vpop.xlane.xlu0 %469
      %v471 = vsel %vm404, %v450, 0.0
      %472 = vadd.xlane.f32.xlu0 %v471
      %v473 = vpop.xlane.xlu0 %472
      %v474 = vsel %vm404, %v452, 0.0
      %475 = vadd.xlane.f32.xlu0 %v474
      %v476 = vpop.xlane.xlu0 %475
      %v477 = vpack.c.bf16 %v440, %v438
      %v478 = vpack.c.bf16 %v444, %v442
      %v479 = vpack.c.bf16 %v448, %v446
      %v480 = vpack.c.bf16 %v452, %v450
      %v489 = vunpack.c.l.b16 %v220
      %v490 = vunpack.c.l.b16 %v222
      %v491 = vunpack.c.l.b16 %v224
      %v492 = vunpack.c.l.b16 %v226
      %v493 = vunpack.c.l.b16 %v228
      %v494 = vunpack.c.l.b16 %v230
      %v495 = vunpack.c.l.b16 %v232
      %v496 = vunpack.c.l.b16 %v234
      %v497 = vpack.c.b16 %v490, %v489
      %v498 = vpack.c.b16 %v492, %v491
      %v499 = vpack.c.b16 %v494, %v493
      %v500 = vpack.c.b16 %v496, %v495
      %v506 = vsel %vm404, %v477, 0
      %v509 = vsel %vm404, %v478, 0
      %v512 = vsel %vm404, %v479, 0
      %v515 = vsel %vm404, %v480, 0
      %517 = vmatprep.subr.bf16.mxu0 0
      %518 = vmatpush1.bf16.msra.mxu0 %v497
      %519 = vmatprep.subr.bf16.mxu0 0
      %520 = vmatpush1.bf16.msra.mxu0 %v498
      %521 = vmatprep.subr.bf16.mxu0 0
      %522 = vmatpush1.bf16.msra.mxu0 %v499
      %523 = vmatprep.subr.bf16.mxu0 0
      %524 = vmatpush1.bf16.msra.mxu0 %v500
      %525 = vmatprep.subr.bf16.mxu0 0
      %526 = vmatpush1.bf16.msra.mxu0 0
      %527 = vmatprep.subr.bf16.mxu0 0
      %528 = vmatpush1.bf16.msra.mxu0 0
      %529 = vmatprep.subr.bf16.mxu0 0
      %530 = vmatpush1.bf16.msra.mxu0 0
      %531 = vmatprep.subr.bf16.mxu0 0
      %532 = vmatpush1.bf16.msra.mxu0 0
      %533 = vmatprep.subr.bf16.mxu0 0
      %534 = vmatpush1.bf16.msra.mxu0 0
      %535 = vmatprep.subr.bf16.mxu0 0
      %536 = vmatpush1.bf16.msra.mxu0 0
      %537 = vmatprep.subr.bf16.mxu0 0
      %538 = vmatpush1.bf16.msra.mxu0 0
      %539 = vmatprep.subr.bf16.mxu0 0
      %540 = vmatpush1.bf16.msra.mxu0 0
      %541 = vmatprep.subr.bf16.mxu0 0
      %542 = vmatpush1.bf16.msra.mxu0 0
      %543 = vmatprep.subr.bf16.mxu0 0
      %544 = vmatpush1.bf16.msra.mxu0 0
      %545 = vmatprep.subr.bf16.mxu0 0
      %546 = vmatpush1.bf16.msra.mxu0 0
      %547 = vmatprep.subr.bf16.mxu0 0
      %548 = vmatpush1.bf16.msra.mxu0 0
      %549 = vmatprep.mubr.bf16.mxu0 0
      %550 = vmatmul.mubr.bf16.gmra.mrb[0].mxu0 %v506
      %v551 = vpop.f32.mrb[0].mxu0
      %v552 = vadd.f32 0.0, %v551
      %v553 = vpop.f32.mrb[0].mxu0
      %v554 = vpop.f32.mrb[0].mxu0
      %v555 = vadd.f32 0.0, %v554
      %v556 = vpop.f32.mrb[0].mxu0
      %557 = vmatprep.mubr.bf16.mxu0 0
      %558 = vmatmul.mubr.bf16.gmra.mrb[0].mxu0 %v509
      %v559 = vpop.f32.mrb[0].mxu0
      %v560 = vadd.f32 0.0, %v559
      %v561 = vpop.f32.mrb[0].mxu0
      %v562 = vpop.f32.mrb[0].mxu0
      %v563 = vadd.f32 0.0, %v562
      %v564 = vpop.f32.mrb[0].mxu0
      %565 = vmatprep.mubr.bf16.mxu0 0
      %566 = vmatmul.mubr.bf16.gmra.mrb[0].mxu0 %v512
      %v567 = vpop.f32.mrb[0].mxu0
      %v568 = vadd.f32 0.0, %v567
      %v569 = vpop.f32.mrb[0].mxu0
      %v570 = vpop.f32.mrb[0].mxu0
      %v571 = vadd.f32 0.0, %v570
      %v572 = vpop.f32.mrb[0].mxu0
      %573 = vmatprep.mubr.bf16.mxu0 0
      %574 = vmatmul.mubr.bf16.gmra.mrb[0].mxu0 %v515
      %v575 = vpop.f32.mrb[0].mxu0
      %v576 = vadd.f32 0.0, %v575
      %v577 = vpop.f32.mrb[0].mxu0
      %v578 = vpop.f32.mrb[0].mxu0
      %v579 = vadd.f32 0.0, %v578
      %v580 = vpop.f32.mrb[0].mxu0
      %581 = vdwg.mxu0
      %v582 = vrcp.pop %v455
      %v583 = vrcp.pop %v458
      %v584 = vrcp.pop %v461
      %v585 = vrcp.pop %v464
      %v586 = vrcp.pop %v467
      %v587 = vrcp.pop %v470
      %v588 = vrcp.pop %v473
      %v589 = vrcp.pop %v476
      %v590 = vmul.f32 %v552, %v582
      %v591 = vmul.f32 %v555, %v583
      %v592 = vmul.f32 %v560, %v584
      %v593 = vmul.f32 %v563, %v585
      %v594 = vmul.f32 %v568, %v586
      %v595 = vmul.f32 %v571, %v587
      %v596 = vmul.f32 %v576, %v588
      %v597 = vmul.f32 %v579, %v589
      %v598 = vpack.c.bf16 %v591, %v590
      %v599 = vpack.c.bf16 %v593, %v592
      %v600 = vpack.c.bf16 %v595, %v594
      %v601 = vpack.c.bf16 %v597, %v596
      %v604 = vunpack.c.l.b16 %v235
      %v605 = vunpack.c.l.b16 %v236
      %v606 = vpack.c.b16 %v605, %v604
      %v609 = vsel %vm314, %v598, 0
      %v612 = vsel %vm314, %v599, 0
      %v615 = vsel %vm314, %v600, 0
      %v618 = vsel %vm314, %v601, 0
      %620 = vmatprep.subr.bf16.mxu0 0
      %621 = vmatpush1.bf16.msra.mxu0 %v606
      %622 = vmatprep.subr.bf16.mxu0 0
      %623 = vmatpush1.bf16.msra.mxu0 0
      %624 = vmatprep.subr.bf16.mxu0 0
      %625 = vmatpush1.bf16.msra.mxu0 0
      %626 = vmatprep.subr.bf16.mxu0 0
      %627 = vmatpush1.bf16.msra.mxu0 0
      %628 = vmatprep.subr.bf16.mxu0 0
      %629 = vmatpush1.bf16.msra.mxu0 0
      %630 = vmatprep.subr.bf16.mxu0 0
      %631 = vmatpush1.bf16.msra.mxu0 0
      %632 = vmatprep.subr.bf16.mxu0 0
      %633 = vmatpush1.bf16.msra.mxu0 0
      %634 = vmatprep.subr.bf16.mxu0 0
      %635 = vmatpush1.bf16.msra.mxu0 0
      %636 = vmatprep.subr.bf16.mxu0 0
      %637 = vmatpush1.bf16.msra.mxu0 0
      %638 = vmatprep.subr.bf16.mxu0 0
      %639 = vmatpush1.bf16.msra.mxu0 0
      %640 = vmatprep.subr.bf16.mxu0 0
      %641 = vmatpush1.bf16.msra.mxu0 0
      %642 = vmatprep.subr.bf16.mxu0 0
      %643 = vmatpush1.bf16.msra.mxu0 0
      %644 = vmatprep.subr.bf16.mxu0 0
      %645 = vmatpush1.bf16.msra.mxu0 0
      %646 = vmatprep.subr.bf16.mxu0 0
      %647 = vmatpush1.bf16.msra.mxu0 0
      %648 = vmatprep.subr.bf16.mxu0 0
      %649 = vmatpush1.bf16.msra.mxu0 0
      %650 = vmatprep.subr.bf16.mxu0 0
      %651 = vmatpush1.bf16.msra.mxu0 0
      %652 = vmatprep.mubr.bf16.mxu0 0
      %653 = vmatmul.mubr.bf16.gmra.mrb[0].mxu0 %v609
      %v654 = vpop.f32.mrb[0].mxu0
      %v655 = vadd.f32 0.0, %v654
      %v656 = vpop.f32.mrb[0].mxu0
      %v657 = vpop.f32.mrb[0].mxu0
      %v658 = vadd.f32 0.0, %v657
      %v659 = vpop.f32.mrb[0].mxu0
      %660 = vmatprep.mubr.bf16.mxu0 0
      %661 = vmatmul.mubr.bf16.gmra.mrb[0].mxu0 %v612
      %v662 = vpop.f32.mrb[0].mxu0
      %v663 = vadd.f32 0.0, %v662
      %v664 = vpop.f32.mrb[0].mxu0
      %v665 = vpop.f32.mrb[0].mxu0
      %v666 = vadd.f32 0.0, %v665
      %v667 = vpop.f32.mrb[0].mxu0
      %668 = vmatprep.mubr.bf16.mxu0 0
      %669 = vmatmul.mubr.bf16.gmra.mrb[0].mxu0 %v615
      %v670 = vpop.f32.mrb[0].mxu0
      %v671 = vadd.f32 0.0, %v670
      %v672 = vpop.f32.mrb[0].mxu0
      %v673 = vpop.f32.mrb[0].mxu0
      %v674 = vadd.f32 0.0, %v673
      %v675 = vpop.f32.mrb[0].mxu0
      %676 = vmatprep.mubr.bf16.mxu0 0
      %677 = vmatmul.mubr.bf16.gmra.mrb[0].mxu0 %v618
      %v678 = vpop.f32.mrb[0].mxu0
      %v679 = vadd.f32 0.0, %v678
      %v680 = vpop.f32.mrb[0].mxu0
      %v681 = vpop.f32.mrb[0].mxu0
      %v682 = vadd.f32 0.0, %v681
      %v683 = vpop.f32.mrb[0].mxu0
      %684 = vdwg.mxu0
      %v685 = vadd.f32 %v266, %v655
      %v686 = vadd.f32 %v267, %v658
      %v687 = vadd.f32 %v268, %v663
      %v688 = vadd.f32 %v269, %v666
      %v689 = vadd.f32 %v270, %v671
      %v690 = vadd.f32 %v271, %v674
      %v691 = vadd.f32 %v272, %v679
      %v692 = vadd.f32 %v273, %v682
      %697 = vrot.lane.b32.xlu0 %v290, 112
      %v698 = vpop.permute.xlu0 %697
      %699 = vrot.lane.b32.xlu0 %v291, 112
      %v700 = vpop.permute.xlu0 %699
      %701 = vrot.lane.b32.xlu0 %v292, 112
      %v702 = vpop.permute.xlu0 %701
      %703 = vrot.lane.b32.xlu0 %v293, 112
      %v704 = vpop.permute.xlu0 %703
      %705 = vrot.lane.b32.xlu0 %v310, 112
      %v706 = vpop.permute.xlu0 %705
      %707 = vrot.lane.b32.xlu0 %v311, 112
      %v708 = vpop.permute.xlu0 %707
      %709 = vrot.lane.b32.xlu0 %v312, 112
      %v710 = vpop.permute.xlu0 %709
      %711 = vrot.lane.b32.xlu0 %v313, 112
      %v712 = vpop.permute.xlu0 %711
      %v714 = vsel %vm314, %v698, 0
      %v717 = vsel %vm314, %v700, 0
      %v720 = vsel %vm314, %v702, 0
      %v723 = vsel %vm314, %v704, 0
      %v726 = vsel %vm314, %v706, 0
      %v729 = vsel %vm314, %v708, 0
      %v732 = vsel %vm314, %v710, 0
      %v735 = vsel %vm314, %v712, 0
      %737 = vmatprep.subr.bf16.mxu0 0
      %738 = vmatpush1.bf16.xpose.msra.mxu0 %v726
      %739 = vmatprep.subr.bf16.mxu0 0
      %740 = vmatpush1.bf16.xpose.msra.mxu0 %v729
      %741 = vmatprep.subr.bf16.mxu0 0
      %742 = vmatpush1.bf16.xpose.msra.mxu0 %v732
      %743 = vmatprep.subr.bf16.mxu0 0
      %744 = vmatpush1.bf16.xpose.msra.mxu0 %v735
      %745 = vmatprep.subr.bf16.mxu0 0
      %746 = vmatpush1.bf16.xpose.msra.mxu0 0
      %747 = vmatprep.subr.bf16.mxu0 0
      %748 = vmatpush1.bf16.xpose.msra.mxu0 0
      %749 = vmatprep.subr.bf16.mxu0 0
      %750 = vmatpush1.bf16.xpose.msra.mxu0 0
      %751 = vmatprep.subr.bf16.mxu0 0
      %752 = vmatpush1.bf16.xpose.msra.mxu0 0
      %753 = vmatprep.subr.bf16.mxu0 0
      %754 = vmatpush1.bf16.xpose.msra.mxu0 0
      %755 = vmatprep.subr.bf16.mxu0 0
      %756 = vmatpush1.bf16.xpose.msra.mxu0 0
      %757 = vmatprep.subr.bf16.mxu0 0
      %758 = vmatpush1.bf16.xpose.msra.mxu0 0
      %759 = vmatprep.subr.bf16.mxu0 0
      %760 = vmatpush1.bf16.xpose.msra.mxu0 0
      %761 = vmatprep.subr.bf16.mxu0 0
      %762 = vmatpush1.bf16.xpose.msra.mxu0 0
      %763 = vmatprep.subr.bf16.mxu0 0
      %764 = vmatpush1.bf16.xpose.msra.mxu0 0
      %765 = vmatprep.subr.bf16.mxu0 0
      %766 = vmatpush1.bf16.xpose.msra.mxu0 0
      %767 = vmatprep.subr.bf16.mxu0 0
      %768 = vmatpush1.bf16.xpose.msra.mxu0 0
      %769 = vmatprep.mubr.bf16.mxu0 0
      %770 = vmatmul.mubr.bf16.gmra.mrb[0].mxu0 %v714
      %v771 = vpop.f32.mrb[0].mxu0
      %v772 = vadd.f32 0.0, %v771
      %v773 = vpop.f32.mrb[0].mxu0
      %v774 = vpop.f32.mrb[0].mxu0
      %v775 = vadd.f32 0.0, %v774
      %v776 = vpop.f32.mrb[0].mxu0
      %777 = vmatprep.mubr.bf16.mxu0 0
      %778 = vmatmul.mubr.bf16.gmra.mrb[0].mxu0 %v717
      %v779 = vpop.f32.mrb[0].mxu0
      %v780 = vadd.f32 0.0, %v779
      %v781 = vpop.f32.mrb[0].mxu0
      %v782 = vpop.f32.mrb[0].mxu0
      %v783 = vadd.f32 0.0, %v782
      %v784 = vpop.f32.mrb[0].mxu0
      %785 = vmatprep.mubr.bf16.mxu0 0
      %786 = vmatmul.mubr.bf16.gmra.mrb[0].mxu0 %v720
      %v787 = vpop.f32.mrb[0].mxu0
      %v788 = vadd.f32 0.0, %v787
      %v789 = vpop.f32.mrb[0].mxu0
      %v790 = vpop.f32.mrb[0].mxu0
      %v791 = vadd.f32 0.0, %v790
      %v792 = vpop.f32.mrb[0].mxu0
      %793 = vmatprep.mubr.bf16.mxu0 0
      %794 = vmatmul.mubr.bf16.gmra.mrb[0].mxu0 %v723
      %v795 = vpop.f32.mrb[0].mxu0
      %v796 = vadd.f32 0.0, %v795
      %v797 = vpop.f32.mrb[0].mxu0
      %v798 = vpop.f32.mrb[0].mxu0
      %v799 = vadd.f32 0.0, %v798
      %v800 = vpop.f32.mrb[0].mxu0
      %801 = vdwg.mxu0
      %v802 = vsel %vm404, %v772, -inf
      %803 = vmax.xlane.f32.xlu0 %v802
      %v804 = vpop.xlane.xlu0 %803
      %v805 = vsel %vm404, %v775, -inf
      %806 = vmax.xlane.f32.xlu0 %v805
      %v807 = vpop.xlane.xlu0 %806
      %v808 = vsel %vm404, %v780, -inf
      %809 = vmax.xlane.f32.xlu0 %v808
      %v810 = vpop.xlane.xlu0 %809
      %v811 = vsel %vm404, %v783, -inf
      %812 = vmax.xlane.f32.xlu0 %v811
      %v813 = vpop.xlane.xlu0 %812
      %v814 = vsel %vm404, %v788, -inf
      %815 = vmax.xlane.f32.xlu0 %v814
      %v816 = vpop.xlane.xlu0 %815
      %v817 = vsel %vm404, %v791, -inf
      %818 = vmax.xlane.f32.xlu0 %v817
      %v819 = vpop.xlane.xlu0 %818
      %v820 = vsel %vm404, %v796, -inf
      %821 = vmax.xlane.f32.xlu0 %v820
      %v822 = vpop.xlane.xlu0 %821
      %v823 = vsel %vm404, %v799, -inf
      %824 = vmax.xlane.f32.xlu0 %v823
      %v825 = vpop.xlane.xlu0 %824
      %v826 = vsub.f32 %v772, %v804
      %v827 = vsub.f32 %v775, %v807
      %v828 = vsub.f32 %v780, %v810
      %v829 = vsub.f32 %v783, %v813
      %v830 = vsub.f32 %v788, %v816
      %v831 = vsub.f32 %v791, %v819
      %v832 = vsub.f32 %v796, %v822
      %v833 = vsub.f32 %v799, %v825
      %v834 = vmul.f32 %v826, 1.442695
      %v835 = vpow.pop %v834
      %v836 = vmul.f32 %v827, 1.442695
      %v837 = vpow.pop %v836
      %v838 = vmul.f32 %v828, 1.442695
      %v839 = vpow.pop %v838
      %v840 = vmul.f32 %v829, 1.442695
      %v841 = vpow.pop %v840
      %v842 = vmul.f32 %v830, 1.442695
      %v843 = vpow.pop %v842
      %v844 = vmul.f32 %v831, 1.442695
      %v845 = vpow.pop %v844
      %v846 = vmul.f32 %v832, 1.442695
      %v847 = vpow.pop %v846
      %v848 = vmul.f32 %v833, 1.442695
      %v849 = vpow.pop %v848
      %v850 = vsel %vm404, %v835, 0.0
      %851 = vadd.xlane.f32.xlu0 %v850
      %v852 = vpop.xlane.xlu0 %851
      %v853 = vsel %vm404, %v837, 0.0
      %854 = vadd.xlane.f32.xlu0 %v853
      %v855 = vpop.xlane.xlu0 %854
      %v856 = vsel %vm404, %v839, 0.0
      %857 = vadd.xlane.f32.xlu0 %v856
      %v858 = vpop.xlane.xlu0 %857
      %v859 = vsel %vm404, %v841, 0.0
      %860 = vadd.xlane.f32.xlu0 %v859
      %v861 = vpop.xlane.xlu0 %860
      %v862 = vsel %vm404, %v843, 0.0
      %863 = vadd.xlane.f32.xlu0 %v862
      %v864 = vpop.xlane.xlu0 %863
      %v865 = vsel %vm404, %v845, 0.0
      %866 = vadd.xlane.f32.xlu0 %v865
      %v867 = vpop.xlane.xlu0 %866
      %v868 = vsel %vm404, %v847, 0.0
      %869 = vadd.xlane.f32.xlu0 %v868
      %v870 = vpop.xlane.xlu0 %869
      %v871 = vsel %vm404, %v849, 0.0
      %872 = vadd.xlane.f32.xlu0 %v871
      %v873 = vpop.xlane.xlu0 %872
      %v874 = vpack.c.bf16 %v837, %v835
      %v875 = vpack.c.bf16 %v841, %v839
      %v876 = vpack.c.bf16 %v845, %v843
      %v877 = vpack.c.bf16 %v849, %v847
      %878 = vrot.lane.b32.xlu0 %v497, 112
      %v879 = vpop.permute.xlu0 %878
      %880 = vrot.lane.b32.xlu0 %v498, 112
      %v881 = vpop.permute.xlu0 %880
      %882 = vrot.lane.b32.xlu0 %v499, 112
      %v883 = vpop.permute.xlu0 %882
      %884 = vrot.lane.b32.xlu0 %v500, 112
      %v885 = vpop.permute.xlu0 %884
      %v891 = vsel %vm404, %v874, 0
      %v894 = vsel %vm404, %v875, 0
      %v897 = vsel %vm404, %v876, 0
      %v900 = vsel %vm404, %v877, 0
      %902 = vmatprep.subr.bf16.mxu0 0
      %903 = vmatpush1.bf16.msra.mxu0 %v879
      %904 = vmatprep.subr.bf16.mxu0 0
      %905 = vmatpush1.bf16.msra.mxu0 %v881
      %906 = vmatprep.subr.bf16.mxu0 0
      %907 = vmatpush1.bf16.msra.mxu0 %v883
      %908 = vmatprep.subr.bf16.mxu0 0
      %909 = vmatpush1.bf16.msra.mxu0 %v885
      %910 = vmatprep.subr.bf16.mxu0 0
      %911 = vmatpush1.bf16.msra.mxu0 0
      %912 = vmatprep.subr.bf16.mxu0 0
      %913 = vmatpush1.bf16.msra.mxu0 0
      %914 = vmatprep.subr.bf16.mxu0 0
      %915 = vmatpush1.bf16.msra.mxu0 0
      %916 = vmatprep.subr.bf16.mxu0 0
      %917 = vmatpush1.bf16.msra.mxu0 0
      %918 = vmatprep.subr.bf16.mxu0 0
      %919 = vmatpush1.bf16.msra.mxu0 0
      %920 = vmatprep.subr.bf16.mxu0 0
      %921 = vmatpush1.bf16.msra.mxu0 0
      %922 = vmatprep.subr.bf16.mxu0 0
      %923 = vmatpush1.bf16.msra.mxu0 0
      %924 = vmatprep.subr.bf16.mxu0 0
      %925 = vmatpush1.bf16.msra.mxu0 0
      %926 = vmatprep.subr.bf16.mxu0 0
      %927 = vmatpush1.bf16.msra.mxu0 0
      %928 = vmatprep.subr.bf16.mxu0 0
      %929 = vmatpush1.bf16.msra.mxu0 0
      %930 = vmatprep.subr.bf16.mxu0 0
      %931 = vmatpush1.bf16.msra.mxu0 0
      %932 = vmatprep.subr.bf16.mxu0 0
      %933 = vmatpush1.bf16.msra.mxu0 0
      %934 = vmatprep.mubr.bf16.mxu0 0
      %935 = vmatmul.mubr.bf16.gmra.mrb[0].mxu0 %v891
      %v936 = vpop.f32.mrb[0].mxu0
      %v937 = vadd.f32 0.0, %v936
      %v938 = vpop.f32.mrb[0].mxu0
      %v939 = vpop.f32.mrb[0].mxu0
      %v940 = vadd.f32 0.0, %v939
      %v941 = vpop.f32.mrb[0].mxu0
      %942 = vmatprep.mubr.bf16.mxu0 0
      %943 = vmatmul.mubr.bf16.gmra.mrb[0].mxu0 %v894
      %v944 = vpop.f32.mrb[0].mxu0
      %v945 = vadd.f32 0.0, %v944
      %v946 = vpop.f32.mrb[0].mxu0
      %v947 = vpop.f32.mrb[0].mxu0
      %v948 = vadd.f32 0.0, %v947
      %v949 = vpop.f32.mrb[0].mxu0
      %950 = vmatprep.mubr.bf16.mxu0 0
      %951 = vmatmul.mubr.bf16.gmra.mrb[0].mxu0 %v897
      %v952 = vpop.f32.mrb[0].mxu0
      %v953 = vadd.f32 0.0, %v952
      %v954 = vpop.f32.mrb[0].mxu0
      %v955 = vpop.f32.mrb[0].mxu0
      %v956 = vadd.f32 0.0, %v955
      %v957 = vpop.f32.mrb[0].mxu0
      %958 = vmatprep.mubr.bf16.mxu0 0
      %959 = vmatmul.mubr.bf16.gmra.mrb[0].mxu0 %v900
      %v960 = vpop.f32.mrb[0].mxu0
      %v961 = vadd.f32 0.0, %v960
      %v962 = vpop.f32.mrb[0].mxu0
      %v963 = vpop.f32.mrb[0].mxu0
      %v964 = vadd.f32 0.0, %v963
      %v965 = vpop.f32.mrb[0].mxu0
      %966 = vdwg.mxu0
      %v967 = vrcp.pop %v852
      %v968 = vrcp.pop %v855
      %v969 = vrcp.pop %v858
      %v970 = vrcp.pop %v861
      %v971 = vrcp.pop %v864
      %v972 = vrcp.pop %v867
      %v973 = vrcp.pop %v870
      %v974 = vrcp.pop %v873
      %v975 = vmul.f32 %v937, %v967
      %v976 = vmul.f32 %v940, %v968
      %v977 = vmul.f32 %v945, %v969
      %v978 = vmul.f32 %v948, %v970
      %v979 = vmul.f32 %v953, %v971
      %v980 = vmul.f32 %v956, %v972
      %v981 = vmul.f32 %v961, %v973
      %v982 = vmul.f32 %v964, %v974
      %v983 = vpack.c.bf16 %v976, %v975
      %v984 = vpack.c.bf16 %v978, %v977
      %v985 = vpack.c.bf16 %v980, %v979
      %v986 = vpack.c.bf16 %v982, %v981
      %v989 = vunpack.c.l.b16 %v237
      %v990 = vunpack.c.l.b16 %v238
      %v991 = vpack.c.b16 %v990, %v989
      %v994 = vsel %vm314, %v983, 0
      %v997 = vsel %vm314, %v984, 0
      %v1000 = vsel %vm314, %v985, 0
      %v1003 = vsel %vm314, %v986, 0
      %1005 = vmatprep.subr.bf16.mxu0 0
      %1006 = vmatpush1.bf16.msra.mxu0 %v991
      %1007 = vmatprep.subr.bf16.mxu0 0
      %1008 = vmatpush1.bf16.msra.mxu0 0
      %1009 = vmatprep.subr.bf16.mxu0 0
      %1010 = vmatpush1.bf16.msra.mxu0 0
      %1011 = vmatprep.subr.bf16.mxu0 0
      %1012 = vmatpush1.bf16.msra.mxu0 0
      %1013 = vmatprep.subr.bf16.mxu0 0
      %1014 = vmatpush1.bf16.msra.mxu0 0
      %1015 = vmatprep.subr.bf16.mxu0 0
      %1016 = vmatpush1.bf16.msra.mxu0 0
      %1017 = vmatprep.subr.bf16.mxu0 0
      %1018 = vmatpush1.bf16.msra.mxu0 0
      %1019 = vmatprep.subr.bf16.mxu0 0
      %1020 = vmatpush1.bf16.msra.mxu0 0
      %1021 = vmatprep.subr.bf16.mxu0 0
      %1022 = vmatpush1.bf16.msra.mxu0 0
      %1023 = vmatprep.subr.bf16.mxu0 0
      %1024 = vmatpush1.bf16.msra.mxu0 0
      %1025 = vmatprep.subr.bf16.mxu0 0
      %1026 = vmatpush1.bf16.msra.mxu0 0
      %1027 = vmatprep.subr.bf16.mxu0 0
      %1028 = vmatpush1.bf16.msra.mxu0 0
      %1029 = vmatprep.subr.bf16.mxu0 0
      %1030 = vmatpush1.bf16.msra.mxu0 0
      %1031 = vmatprep.subr.bf16.mxu0 0
      %1032 = vmatpush1.bf16.msra.mxu0 0
      %1033 = vmatprep.subr.bf16.mxu0 0
      %1034 = vmatpush1.bf16.msra.mxu0 0
      %1035 = vmatprep.subr.bf16.mxu0 0
      %1036 = vmatpush1.bf16.msra.mxu0 0
      %1037 = vmatprep.mubr.bf16.mxu0 0
      %1038 = vmatmul.mubr.bf16.gmra.mrb[0].mxu0 %v994
      %v1039 = vpop.f32.mrb[0].mxu0
      %v1040 = vadd.f32 0.0, %v1039
      %v1041 = vpop.f32.mrb[0].mxu0
      %v1042 = vpop.f32.mrb[0].mxu0
      %v1043 = vadd.f32 0.0, %v1042
      %v1044 = vpop.f32.mrb[0].mxu0
      %1045 = vmatprep.mubr.bf16.mxu0 0
      %1046 = vmatmul.mubr.bf16.gmra.mrb[0].mxu0 %v997
      %v1047 = vpop.f32.mrb[0].mxu0
      %v1048 = vadd.f32 0.0, %v1047
      %v1049 = vpop.f32.mrb[0].mxu0
      %v1050 = vpop.f32.mrb[0].mxu0
      %v1051 = vadd.f32 0.0, %v1050
      %v1052 = vpop.f32.mrb[0].mxu0
      %1053 = vmatprep.mubr.bf16.mxu0 0
      %1054 = vmatmul.mubr.bf16.gmra.mrb[0].mxu0 %v1000
      %v1055 = vpop.f32.mrb[0].mxu0
      %v1056 = vadd.f32 0.0, %v1055
      %v1057 = vpop.f32.mrb[0].mxu0
      %v1058 = vpop.f32.mrb[0].mxu0
      %v1059 = vadd.f32 0.0, %v1058
      %v1060 = vpop.f32.mrb[0].mxu0
      %1061 = vmatprep.mubr.bf16.mxu0 0
      %1062 = vmatmul.mubr.bf16.gmra.mrb[0].mxu0 %v1003
      %v1063 = vpop.f32.mrb[0].mxu0
      %v1064 = vadd.f32 0.0, %v1063
      %v1065 = vpop.f32.mrb[0].mxu0
      %v1066 = vpop.f32.mrb[0].mxu0
      %v1067 = vadd.f32 0.0, %v1066
      %v1068 = vpop.f32.mrb[0].mxu0
      %1069 = vdwg.mxu0
      %v1070 = vadd.f32 %v685, %v1040
      %v1071 = vadd.f32 %v686, %v1043
      %v1072 = vadd.f32 %v687, %v1048
      %v1073 = vadd.f32 %v688, %v1051
      %v1074 = vadd.f32 %v689, %v1056
      %v1075 = vadd.f32 %v690, %v1059
      %v1076 = vadd.f32 %v691, %v1064
      %v1077 = vadd.f32 %v692, %v1067
      %1078 = vrot.lane.b32.xlu0 %v290, 96
      %v1079 = vpop.permute.xlu0 %1078
      %1080 = vrot.lane.b32.xlu0 %v291, 96
      %v1081 = vpop.permute.xlu0 %1080
      %1082 = vrot.lane.b32.xlu0 %v292, 96
      %v1083 = vpop.permute.xlu0 %1082
      %1084 = vrot.lane.b32.xlu0 %v293, 96
      %v1085 = vpop.permute.xlu0 %1084
      %1086 = vrot.lane.b32.xlu0 %v310, 96
      %v1087 = vpop.permute.xlu0 %1086
      %1088 = vrot.lane.b32.xlu0 %v311, 96
      %v1089 = vpop.permute.xlu0 %1088
      %1090 = vrot.lane.b32.xlu0 %v312, 96
      %v1091 = vpop.permute.xlu0 %1090
      %1092 = vrot.lane.b32.xlu0 %v313, 96
      %v1093 = vpop.permute.xlu0 %1092
      %v1095 = vsel %vm314, %v1079, 0
      %v1098 = vsel %vm314, %v1081, 0
      %v1101 = vsel %vm314, %v1083, 0
      %v1104 = vsel %vm314, %v1085, 0
      %v1107 = vsel %vm314, %v1087, 0
      %v1110 = vsel %vm314, %v1089, 0
      %v1113 = vsel %vm314, %v1091, 0
      %v1116 = vsel %vm314, %v1093, 0
      %1118 = vmatprep.subr.bf16.mxu0 0
      %1119 = vmatpush1.bf16.xpose.msra.mxu0 %v1107
      %1120 = vmatprep.subr.bf16.mxu0 0
      %1121 = vmatpush1.bf16.xpose.msra.mxu0 %v1110
      %1122 = vmatprep.subr.bf16.mxu0 0
      %1123 = vmatpush1.bf16.xpose.msra.mxu0 %v1113
      %1124 = vmatprep.subr.bf16.mxu0 0
      %1125 = vmatpush1.bf16.xpose.msra.mxu0 %v1116
      %1126 = vmatprep.subr.bf16.mxu0 0
      %1127 = vmatpush1.bf16.xpose.msra.mxu0 0
      %1128 = vmatprep.subr.bf16.mxu0 0
      %1129 = vmatpush1.bf16.xpose.msra.mxu0 0
      %1130 = vmatprep.subr.bf16.mxu0 0
      %1131 = vmatpush1.bf16.xpose.msra.mxu0 0
      %1132 = vmatprep.subr.bf16.mxu0 0
      %1133 = vmatpush1.bf16.xpose.msra.mxu0 0
      %1134 = vmatprep.subr.bf16.mxu0 0
      %1135 = vmatpush1.bf16.xpose.msra.mxu0 0
      %1136 = vmatprep.subr.bf16.mxu0 0
      %1137 = vmatpush1.bf16.xpose.msra.mxu0 0
      %1138 = vmatprep.subr.bf16.mxu0 0
      %1139 = vmatpush1.bf16.xpose.msra.mxu0 0
      %1140 = vmatprep.subr.bf16.mxu0 0
      %1141 = vmatpush1.bf16.xpose.msra.mxu0 0
      %1142 = vmatprep.subr.bf16.mxu0 0
      %1143 = vmatpush1.bf16.xpose.msra.mxu0 0
      %1144 = vmatprep.subr.bf16.mxu0 0
      %1145 = vmatpush1.bf16.xpose.msra.mxu0 0
      %1146 = vmatprep.subr.bf16.mxu0 0
      %1147 = vmatpush1.bf16.xpose.msra.mxu0 0
      %1148 = vmatprep.subr.bf16.mxu0 0
      %1149 = vmatpush1.bf16.xpose.msra.mxu0 0
      %1150 = vmatprep.mubr.bf16.mxu0 0
      %1151 = vmatmul.mubr.bf16.gmra.mrb[0].mxu0 %v1095
      %v1152 = vpop.f32.mrb[0].mxu0
      %v1153 = vadd.f32 0.0, %v1152
      %v1154 = vpop.f32.mrb[0].mxu0
      %v1155 = vpop.f32.mrb[0].mxu0
      %v1156 = vadd.f32 0.0, %v1155
      %v1157 = vpop.f32.mrb[0].mxu0
      %1158 = vmatprep.mubr.bf16.mxu0 0
      %1159 = vmatmul.mubr.bf16.gmra.mrb[0].mxu0 %v1098
      %v1160 = vpop.f32.mrb[0].mxu0
      %v1161 = vadd.f32 0.0, %v1160
      %v1162 = vpop.f32.mrb[0].mxu0
      %v1163 = vpop.f32.mrb[0].mxu0
      %v1164 = vadd.f32 0.0, %v1163
      %v1165 = vpop.f32.mrb[0].mxu0
      %1166 = vmatprep.mubr.bf16.mxu0 0
      %1167 = vmatmul.mubr.bf16.gmra.mrb[0].mxu0 %v1101
      %v1168 = vpop.f32.mrb[0].mxu0
      %v1169 = vadd.f32 0.0, %v1168
      %v1170 = vpop.f32.mrb[0].mxu0
      %v1171 = vpop.f32.mrb[0].mxu0
      %v1172 = vadd.f32 0.0, %v1171
      %v1173 = vpop.f32.mrb[0].mxu0
      %1174 = vmatprep.mubr.bf16.mxu0 0
      %1175 = vmatmul.mubr.bf16.gmra.mrb[0].mxu0 %v1104
      %v1176 = vpop.f32.mrb[0].mxu0
      %v1177 = vadd.f32 0.0, %v1176
      %v1178 = vpop.f32.mrb[0].mxu0
      %v1179 = vpop.f32.mrb[0].mxu0
      %v1180 = vadd.f32 0.0, %v1179
      %v1181 = vpop.f32.mrb[0].mxu0
      %1182 = vdwg.mxu0
      %v1183 = vsel %vm404, %v1153, -inf
      %1184 = vmax.xlane.f32.xlu0 %v1183
      %v1185 = vpop.xlane.xlu0 %1184
      %v1186 = vsel %vm404, %v1156, -inf
      %1187 = vmax.xlane.f32.xlu0 %v1186
      %v1188 = vpop.xlane.xlu0 %1187
      %v1189 = vsel %vm404, %v1161, -inf
      %1190 = vmax.xlane.f32.xlu0 %v1189
      %v1191 = vpop.xlane.xlu0 %1190
      %v1192 = vsel %vm404, %v1164, -inf
      %1193 = vmax.xlane.f32.xlu0 %v1192
      %v1194 = vpop.xlane.xlu0 %1193
      %v1195 = vsel %vm404, %v1169, -inf
      %1196 = vmax.xlane.f32.xlu0 %v1195
      %v1197 = vpop.xlane.xlu0 %1196
      %v1198 = vsel %vm404, %v1172, -inf
      %1199 = vmax.xlane.f32.xlu0 %v1198
      %v1200 = vpop.xlane.xlu0 %1199
      %v1201 = vsel %vm404, %v1177, -inf
      %1202 = vmax.xlane.f32.xlu0 %v1201
      %v1203 = vpop.xlane.xlu0 %1202
      %v1204 = vsel %vm404, %v1180, -inf
      %1205 = vmax.xlane.f32.xlu0 %v1204
      %v1206 = vpop.xlane.xlu0 %1205
      %v1207 = vsub.f32 %v1153, %v1185
      %v1208 = vsub.f32 %v1156, %v1188
      %v1209 = vsub.f32 %v1161, %v1191
      %v1210 = vsub.f32 %v1164, %v1194
      %v1211 = vsub.f32 %v1169, %v1197
      %v1212 = vsub.f32 %v1172, %v1200
      %v1213 = vsub.f32 %v1177, %v1203
      %v1214 = vsub.f32 %v1180, %v1206
      %v1215 = vmul.f32 %v1207, 1.442695
      %v1216 = vpow.pop %v1215
      %v1217 = vmul.f32 %v1208, 1.442695
      %v1218 = vpow.pop %v1217
      %v1219 = vmul.f32 %v1209, 1.442695
      %v1220 = vpow.pop %v1219
      %v1221 = vmul.f32 %v1210, 1.442695
      %v1222 = vpow.pop %v1221
      %v1223 = vmul.f32 %v1211, 1.442695
      %v1224 = vpow.pop %v1223
      %v1225 = vmul.f32 %v1212, 1.442695
      %v1226 = vpow.pop %v1225
      %v1227 = vmul.f32 %v1213, 1.442695
      %v1228 = vpow.pop %v1227
      %v1229 = vmul.f32 %v1214, 1.442695
      %v1230 = vpow.pop %v1229
      %v1231 = vsel %vm404, %v1216, 0.0
      %1232 = vadd.xlane.f32.xlu0 %v1231
      %v1233 = vpop.xlane.xlu0 %1232
      %v1234 = vsel %vm404, %v1218, 0.0
      %1235 = vadd.xlane.f32.xlu0 %v1234
      %v1236 = vpop.xlane.xlu0 %1235
      %v1237 = vsel %vm404, %v1220, 0.0
      %1238 = vadd.xlane.f32.xlu0 %v1237
      %v1239 = vpop.xlane.xlu0 %1238
      %v1240 = vsel %vm404, %v1222, 0.0
      %1241 = vadd.xlane.f32.xlu0 %v1240
      %v1242 = vpop.xlane.xlu0 %1241
      %v1243 = vsel %vm404, %v1224, 0.0
      %1244 = vadd.xlane.f32.xlu0 %v1243
      %v1245 = vpop.xlane.xlu0 %1244
      %v1246 = vsel %vm404, %v1226, 0.0
      %1247 = vadd.xlane.f32.xlu0 %v1246
      %v1248 = vpop.xlane.xlu0 %1247
      %v1249 = vsel %vm404, %v1228, 0.0
      %1250 = vadd.xlane.f32.xlu0 %v1249
      %v1251 = vpop.xlane.xlu0 %1250
      %v1252 = vsel %vm404, %v1230, 0.0
      %1253 = vadd.xlane.f32.xlu0 %v1252
      %v1254 = vpop.xlane.xlu0 %1253
      %v1255 = vpack.c.bf16 %v1218, %v1216
      %v1256 = vpack.c.bf16 %v1222, %v1220
      %v1257 = vpack.c.bf16 %v1226, %v1224
      %v1258 = vpack.c.bf16 %v1230, %v1228
      %1259 = vrot.lane.b32.xlu0 %v497, 96
      %v1260 = vpop.permute.xlu0 %1259
      %1261 = vrot.lane.b32.xlu0 %v498, 96
      %v1262 = vpop.permute.xlu0 %1261
      %1263 = vrot.lane.b32.xlu0 %v499, 96
      %v1264 = vpop.permute.xlu0 %1263
      %1265 = vrot.lane.b32.xlu0 %v500, 96
      %v1266 = vpop.permute.xlu0 %1265
      %v1272 = vsel %vm404, %v1255, 0
      %v1275 = vsel %vm404, %v1256, 0
      %v1278 = vsel %vm404, %v1257, 0
      %v1281 = vsel %vm404, %v1258, 0
      %1283 = vmatprep.subr.bf16.mxu0 0
      %1284 = vmatpush1.bf16.msra.mxu0 %v1260
      %1285 = vmatprep.subr.bf16.mxu0 0
      %1286 = vmatpush1.bf16.msra.mxu0 %v1262
      %1287 = vmatprep.subr.bf16.mxu0 0
      %1288 = vmatpush1.bf16.msra.mxu0 %v1264
      %1289 = vmatprep.subr.bf16.mxu0 0
      %1290 = vmatpush1.bf16.msra.mxu0 %v1266
      %1291 = vmatprep.subr.bf16.mxu0 0
      %1292 = vmatpush1.bf16.msra.mxu0 0
      %1293 = vmatprep.subr.bf16.mxu0 0
      %1294 = vmatpush1.bf16.msra.mxu0 0
      %1295 = vmatprep.subr.bf16.mxu0 0
      %1296 = vmatpush1.bf16.msra.mxu0 0
      %1297 = vmatprep.subr.bf16.mxu0 0
      %1298 = vmatpush1.bf16.msra.mxu0 0
      %1299 = vmatprep.subr.bf16.mxu0 0
      %1300 = vmatpush1.bf16.msra.mxu0 0
      %1301 = vmatprep.subr.bf16.mxu0 0
      %1302 = vmatpush1.bf16.msra.mxu0 0
      %1303 = vmatprep.subr.bf16.mxu0 0
      %1304 = vmatpush1.bf16.msra.mxu0 0
      %1305 = vmatprep.subr.bf16.mxu0 0
      %1306 = vmatpush1.bf16.msra.mxu0 0
      %1307 = vmatprep.subr.bf16.mxu0 0
      %1308 = vmatpush1.bf16.msra.mxu0 0
      %1309 = vmatprep.subr.bf16.mxu0 0
      %1310 = vmatpush1.bf16.msra.mxu0 0
      %1311 = vmatprep.subr.bf16.mxu0 0
      %1312 = vmatpush1.bf16.msra.mxu0 0
      %1313 = vmatprep.subr.bf16.mxu0 0
      %1314 = vmatpush1.bf16.msra.mxu0 0
      %1315 = vmatprep.mubr.bf16.mxu0 0
      %1316 = vmatmul.mubr.bf16.gmra.mrb[0].mxu0 %v1272
      %v1317 = vpop.f32.mrb[0].mxu0
      %v1318 = vadd.f32 0.0, %v1317
      %v1319 = vpop.f32.mrb[0].mxu0
      %v1320 = vpop.f32.mrb[0].mxu0
      %v1321 = vadd.f32 0.0, %v1320
      %v1322 = vpop.f32.mrb[0].mxu0
      %1323 = vmatprep.mubr.bf16.mxu0 0
      %1324 = vmatmul.mubr.bf16.gmra.mrb[0].mxu0 %v1275
      %v1325 = vpop.f32.mrb[0].mxu0
      %v1326 = vadd.f32 0.0, %v1325
      %v1327 = vpop.f32.mrb[0].mxu0
      %v1328 = vpop.f32.mrb[0].mxu0
      %v1329 = vadd.f32 0.0, %v1328
      %v1330 = vpop.f32.mrb[0].mxu0
      %1331 = vmatprep.mubr.bf16.mxu0 0
      %1332 = vmatmul.mubr.bf16.gmra.mrb[0].mxu0 %v1278
      %v1333 = vpop.f32.mrb[0].mxu0
      %v1334 = vadd.f32 0.0, %v1333
      %v1335 = vpop.f32.mrb[0].mxu0
      %v1336 = vpop.f32.mrb[0].mxu0
      %v1337 = vadd.f32 0.0, %v1336
      %v1338 = vpop.f32.mrb[0].mxu0
      %1339 = vmatprep.mubr.bf16.mxu0 0
      %1340 = vmatmul.mubr.bf16.gmra.mrb[0].mxu0 %v1281
      %v1341 = vpop.f32.mrb[0].mxu0
      %v1342 = vadd.f32 0.0, %v1341
      %v1343 = vpop.f32.mrb[0].mxu0
      %v1344 = vpop.f32.mrb[0].mxu0
      %v1345 = vadd.f32 0.0, %v1344
      %v1346 = vpop.f32.mrb[0].mxu0
      %1347 = vdwg.mxu0
      %v1348 = vrcp.pop %v1233
      %v1349 = vrcp.pop %v1236
      %v1350 = vrcp.pop %v1239
      %v1351 = vrcp.pop %v1242
      %v1352 = vrcp.pop %v1245
      %v1353 = vrcp.pop %v1248
      %v1354 = vrcp.pop %v1251
      %v1355 = vrcp.pop %v1254
      %v1356 = vmul.f32 %v1318, %v1348
      %v1357 = vmul.f32 %v1321, %v1349
      %v1358 = vmul.f32 %v1326, %v1350
      %v1359 = vmul.f32 %v1329, %v1351
      %v1360 = vmul.f32 %v1334, %v1352
      %v1361 = vmul.f32 %v1337, %v1353
      %v1362 = vmul.f32 %v1342, %v1354
      %v1363 = vmul.f32 %v1345, %v1355
      %v1364 = vpack.c.bf16 %v1357, %v1356
      %v1365 = vpack.c.bf16 %v1359, %v1358
      %v1366 = vpack.c.bf16 %v1361, %v1360
      %v1367 = vpack.c.bf16 %v1363, %v1362
      %v1370 = vunpack.c.l.b16 %v239
      %v1371 = vunpack.c.l.b16 %v240
      %v1372 = vpack.c.b16 %v1371, %v1370
      %v1375 = vsel %vm314, %v1364, 0
      %v1378 = vsel %vm314, %v1365, 0
      %v1381 = vsel %vm314, %v1366, 0
      %v1384 = vsel %vm314, %v1367, 0
      %1386 = vmatprep.subr.bf16.mxu0 0
      %1387 = vmatpush1.bf16.msra.mxu0 %v1372
      %1388 = vmatprep.subr.bf16.mxu0 0
      %1389 = vmatpush1.bf16.msra.mxu0 0
      %1390 = vmatprep.subr.bf16.mxu0 0
      %1391 = vmatpush1.bf16.msra.mxu0 0
      %1392 = vmatprep.subr.bf16.mxu0 0
      %1393 = vmatpush1.bf16.msra.mxu0 0
      %1394 = vmatprep.subr.bf16.mxu0 0
      %1395 = vmatpush1.bf16.msra.mxu0 0
      %1396 = vmatprep.subr.bf16.mxu0 0
      %1397 = vmatpush1.bf16.msra.mxu0 0
      %1398 = vmatprep.subr.bf16.mxu0 0
      %1399 = vmatpush1.bf16.msra.mxu0 0
      %1400 = vmatprep.subr.bf16.mxu0 0
      %1401 = vmatpush1.bf16.msra.mxu0 0
      %1402 = vmatprep.subr.bf16.mxu0 0
      %1403 = vmatpush1.bf16.msra.mxu0 0
      %1404 = vmatprep.subr.bf16.mxu0 0
      %1405 = vmatpush1.bf16.msra.mxu0 0
      %1406 = vmatprep.subr.bf16.mxu0 0
      %1407 = vmatpush1.bf16.msra.mxu0 0
      %1408 = vmatprep.subr.bf16.mxu0 0
      %1409 = vmatpush1.bf16.msra.mxu0 0
      %1410 = vmatprep.subr.bf16.mxu0 0
      %1411 = vmatpush1.bf16.msra.mxu0 0
      %1412 = vmatprep.subr.bf16.mxu0 0
      %1413 = vmatpush1.bf16.msra.mxu0 0
      %1414 = vmatprep.subr.bf16.mxu0 0
      %1415 = vmatpush1.bf16.msra.mxu0 0
      %1416 = vmatprep.subr.bf16.mxu0 0
      %1417 = vmatpush1.bf16.msra.mxu0 0
      %1418 = vmatprep.mubr.bf16.mxu0 0
      %1419 = vmatmul.mubr.bf16.gmra.mrb[0].mxu0 %v1375
      %v1420 = vpop.f32.mrb[0].mxu0
      %v1421 = vadd.f32 0.0, %v1420
      %v1422 = vpop.f32.mrb[0].mxu0
      %v1423 = vpop.f32.mrb[0].mxu0
      %v1424 = vadd.f32 0.0, %v1423
      %v1425 = vpop.f32.mrb[0].mxu0
      %1426 = vmatprep.mubr.bf16.mxu0 0
      %1427 = vmatmul.mubr.bf16.gmra.mrb[0].mxu0 %v1378
      %v1428 = vpop.f32.mrb[0].mxu0
      %v1429 = vadd.f32 0.0, %v1428
      %v1430 = vpop.f32.mrb[0].mxu0
      %v1431 = vpop.f32.mrb[0].mxu0
      %v1432 = vadd.f32 0.0, %v1431
      %v1433 = vpop.f32.mrb[0].mxu0
      %1434 = vmatprep.mubr.bf16.mxu0 0
      %1435 = vmatmul.mubr.bf16.gmra.mrb[0].mxu0 %v1381
      %v1436 = vpop.f32.mrb[0].mxu0
      %v1437 = vadd.f32 0.0, %v1436
      %v1438 = vpop.f32.mrb[0].mxu0
      %v1439 = vpop.f32.mrb[0].mxu0
      %v1440 = vadd.f32 0.0, %v1439
      %v1441 = vpop.f32.mrb[0].mxu0
      %1442 = vmatprep.mubr.bf16.mxu0 0
      %1443 = vmatmul.mubr.bf16.gmra.mrb[0].mxu0 %v1384
      %v1444 = vpop.f32.mrb[0].mxu0
      %v1445 = vadd.f32 0.0, %v1444
      %v1446 = vpop.f32.mrb[0].mxu0
      %v1447 = vpop.f32.mrb[0].mxu0
      %v1448 = vadd.f32 0.0, %v1447
      %v1449 = vpop.f32.mrb[0].mxu0
      %1450 = vdwg.mxu0
      %v1451 = vadd.f32 %v1070, %v1421
      %v1452 = vadd.f32 %v1071, %v1424
      %v1453 = vadd.f32 %v1072, %v1429
      %v1454 = vadd.f32 %v1073, %v1432
      %v1455 = vadd.f32 %v1074, %v1437
      %v1456 = vadd.f32 %v1075, %v1440
      %v1457 = vadd.f32 %v1076, %v1445
      %v1458 = vadd.f32 %v1077, %v1448
      %1459 = vrot.lane.b32.xlu0 %v290, 80
      %v1460 = vpop.permute.xlu0 %1459
      %1461 = vrot.lane.b32.xlu0 %v291, 80
      %v1462 = vpop.permute.xlu0 %1461
      %1463 = vrot.lane.b32.xlu0 %v292, 80
      %v1464 = vpop.permute.xlu0 %1463
      %1465 = vrot.lane.b32.xlu0 %v293, 80
      %v1466 = vpop.permute.xlu0 %1465
      %1467 = vrot.lane.b32.xlu0 %v310, 80
      %v1468 = vpop.permute.xlu0 %1467
      %1469 = vrot.lane.b32.xlu0 %v311, 80
      %v1470 = vpop.permute.xlu0 %1469
      %1471 = vrot.lane.b32.xlu0 %v312, 80
      %v1472 = vpop.permute.xlu0 %1471
      %1473 = vrot.lane.b32.xlu0 %v313, 80
      %v1474 = vpop.permute.xlu0 %1473
      %v1476 = vsel %vm314, %v1460, 0
      %v1479 = vsel %vm314, %v1462, 0
      %v1482 = vsel %vm314, %v1464, 0
      %v1485 = vsel %vm314, %v1466, 0
      %v1488 = vsel %vm314, %v1468, 0
      %v1491 = vsel %vm314, %v1470, 0
      %v1494 = vsel %vm314, %v1472, 0
      %v1497 = vsel %vm314, %v1474, 0
      %1499 = vmatprep.subr.bf16.mxu0 0
      %1500 = vmatpush1.bf16.xpose.msra.mxu0 %v1488
      %1501 = vmatprep.subr.bf16.mxu0 0
      %1502 = vmatpush1.bf16.xpose.msra.mxu0 %v1491
      %1503 = vmatprep.subr.bf16.mxu0 0
      %1504 = vmatpush1.bf16.xpose.msra.mxu0 %v1494
      %1505 = vmatprep.subr.bf16.mxu0 0
      %1506 = vmatpush1.bf16.xpose.msra.mxu0 %v1497
      %1507 = vmatprep.subr.bf16.mxu0 0
      %1508 = vmatpush1.bf16.xpose.msra.mxu0 0
      %1509 = vmatprep.subr.bf16.mxu0 0
      %1510 = vmatpush1.bf16.xpose.msra.mxu0 0
      %1511 = vmatprep.subr.bf16.mxu0 0
      %1512 = vmatpush1.bf16.xpose.msra.mxu0 0
      %1513 = vmatprep.subr.bf16.mxu0 0
      %1514 = vmatpush1.bf16.xpose.msra.mxu0 0
      %1515 = vmatprep.subr.bf16.mxu0 0
      %1516 = vmatpush1.bf16.xpose.msra.mxu0 0
      %1517 = vmatprep.subr.bf16.mxu0 0
      %1518 = vmatpush1.bf16.xpose.msra.mxu0 0
      %1519 = vmatprep.subr.bf16.mxu0 0
      %1520 = vmatpush1.bf16.xpose.msra.mxu0 0
      %1521 = vmatprep.subr.bf16.mxu0 0
      %1522 = vmatpush1.bf16.xpose.msra.mxu0 0
      %1523 = vmatprep.subr.bf16.mxu0 0
      %1524 = vmatpush1.bf16.xpose.msra.mxu0 0
      %1525 = vmatprep.subr.bf16.mxu0 0
      %1526 = vmatpush1.bf16.xpose.msra.mxu0 0
      %1527 = vmatprep.subr.bf16.mxu0 0
      %1528 = vmatpush1.bf16.xpose.msra.mxu0 0
      %1529 = vmatprep.subr.bf16.mxu0 0
      %1530 = vmatpush1.bf16.xpose.msra.mxu0 0
      %1531 = vmatprep.mubr.bf16.mxu0 0
      %1532 = vmatmul.mubr.bf16.gmra.mrb[0].mxu0 %v1476
      %v1533 = vpop.f32.mrb[0].mxu0
      %v1534 = vadd.f32 0.0, %v1533
      %v1535 = vpop.f32.mrb[0].mxu0
      %v1536 = vpop.f32.mrb[0].mxu0
      %v1537 = vadd.f32 0.0, %v1536
      %v1538 = vpop.f32.mrb[0].mxu0
      %1539 = vmatprep.mubr.bf16.mxu0 0
      %1540 = vmatmul.mubr.bf16.gmra.mrb[0].mxu0 %v1479
      %v1541 = vpop.f32.mrb[0].mxu0
      %v1542 = vadd.f32 0.0, %v1541
      %v1543 = vpop.f32.mrb[0].mxu0
      %v1544 = vpop.f32.mrb[0].mxu0
      %v1545 = vadd.f32 0.0, %v1544
      %v1546 = vpop.f32.mrb[0].mxu0
      %1547 = vmatprep.mubr.bf16.mxu0 0
      %1548 = vmatmul.mubr.bf16.gmra.mrb[0].mxu0 %v1482
      %v1549 = vpop.f32.mrb[0].mxu0
      %v1550 = vadd.f32 0.0, %v1549
      %v1551 = vpop.f32.mrb[0].mxu0
      %v1552 = vpop.f32.mrb[0].mxu0
      %v1553 = vadd.f32 0.0, %v1552
      %v1554 = vpop.f32.mrb[0].mxu0
      %1555 = vmatprep.mubr.bf16.mxu0 0
      %1556 = vmatmul.mubr.bf16.gmra.mrb[0].mxu0 %v1485
      %v1557 = vpop.f32.mrb[0].mxu0
      %v1558 = vadd.f32 0.0, %v1557
      %v1559 = vpop.f32.mrb[0].mxu0
      %v1560 = vpop.f32.mrb[0].mxu0
      %v1561 = vadd.f32 0.0, %v1560
      %v1562 = vpop.f32.mrb[0].mxu0
      %1563 = vdwg.mxu0
      %v1564 = vsel %vm404, %v1534, -inf
      %1565 = vmax.xlane.f32.xlu0 %v1564
      %v1566 = vpop.xlane.xlu0 %1565
      %v1567 = vsel %vm404, %v1537, -inf
      %1568 = vmax.xlane.f32.xlu0 %v1567
      %v1569 = vpop.xlane.xlu0 %1568
      %v1570 = vsel %vm404, %v1542, -inf
      %1571 = vmax.xlane.f32.xlu0 %v1570
      %v1572 = vpop.xlane.xlu0 %1571
      %v1573 = vsel %vm404, %v1545, -inf
      %1574 = vmax.xlane.f32.xlu0 %v1573
      %v1575 = vpop.xlane.xlu0 %1574
      %v1576 = vsel %vm404, %v1550, -inf
      %1577 = vmax.xlane.f32.xlu0 %v1576
      %v1578 = vpop.xlane.xlu0 %1577
      %v1579 = vsel %vm404, %v1553, -inf
      %1580 = vmax.xlane.f32.xlu0 %v1579
      %v1581 = vpop.xlane.xlu0 %1580
      %v1582 = vsel %vm404, %v1558, -inf
      %1583 = vmax.xlane.f32.xlu0 %v1582
      %v1584 = vpop.xlane.xlu0 %1583
      %v1585 = vsel %vm404, %v1561, -inf
      %1586 = vmax.xlane.f32.xlu0 %v1585
      %v1587 = vpop.xlane.xlu0 %1586
      %v1588 = vsub.f32 %v1534, %v1566
      %v1589 = vsub.f32 %v1537, %v1569
      %v1590 = vsub.f32 %v1542, %v1572
      %v1591 = vsub.f32 %v1545, %v1575
      %v1592 = vsub.f32 %v1550, %v1578
      %v1593 = vsub.f32 %v1553, %v1581
      %v1594 = vsub.f32 %v1558, %v1584
      %v1595 = vsub.f32 %v1561, %v1587
      %v1596 = vmul.f32 %v1588, 1.442695
      %v1597 = vpow.pop %v1596
      %v1598 = vmul.f32 %v1589, 1.442695
      %v1599 = vpow.pop %v1598
      %v1600 = vmul.f32 %v1590, 1.442695
      %v1601 = vpow.pop %v1600
      %v1602 = vmul.f32 %v1591, 1.442695
      %v1603 = vpow.pop %v1602
      %v1604 = vmul.f32 %v1592, 1.442695
      %v1605 = vpow.pop %v1604
      %v1606 = vmul.f32 %v1593, 1.442695
      %v1607 = vpow.pop %v1606
      %v1608 = vmul.f32 %v1594, 1.442695
      %v1609 = vpow.pop %v1608
      %v1610 = vmul.f32 %v1595, 1.442695
      %v1611 = vpow.pop %v1610
      %v1612 = vsel %vm404, %v1597, 0.0
      %1613 = vadd.xlane.f32.xlu0 %v1612
      %v1614 = vpop.xlane.xlu0 %1613
      %v1615 = vsel %vm404, %v1599, 0.0
      %1616 = vadd.xlane.f32.xlu0 %v1615
      %v1617 = vpop.xlane.xlu0 %1616
      %v1618 = vsel %vm404, %v1601, 0.0
      %1619 = vadd.xlane.f32.xlu0 %v1618
      %v1620 = vpop.xlane.xlu0 %1619
      %v1621 = vsel %vm404, %v1603, 0.0
      %1622 = vadd.xlane.f32.xlu0 %v1621
      %v1623 = vpop.xlane.xlu0 %1622
      %v1624 = vsel %vm404, %v1605, 0.0
      %1625 = vadd.xlane.f32.xlu0 %v1624
      %v1626 = vpop.xlane.xlu0 %1625
      %v1627 = vsel %vm404, %v1607, 0.0
      %1628 = vadd.xlane.f32.xlu0 %v1627
      %v1629 = vpop.xlane.xlu0 %1628
      %v1630 = vsel %vm404, %v1609, 0.0
      %1631 = vadd.xlane.f32.xlu0 %v1630
      %v1632 = vpop.xlane.xlu0 %1631
      %v1633 = vsel %vm404, %v1611, 0.0
      %1634 = vadd.xlane.f32.xlu0 %v1633
      %v1635 = vpop.xlane.xlu0 %1634
      %v1636 = vpack.c.bf16 %v1599, %v1597
      %v1637 = vpack.c.bf16 %v1603, %v1601
      %v1638 = vpack.c.bf16 %v1607, %v1605
      %v1639 = vpack.c.bf16 %v1611, %v1609
      %1640 = vrot.lane.b32.xlu0 %v497, 80
      %v1641 = vpop.permute.xlu0 %1640
      %1642 = vrot.lane.b32.xlu0 %v498, 80
      %v1643 = vpop.permute.xlu0 %1642
      %1644 = vrot.lane.b32.xlu0 %v499, 80
      %v1645 = vpop.permute.xlu0 %1644
      %1646 = vrot.lane.b32.xlu0 %v500, 80
      %v1647 = vpop.permute.xlu0 %1646
      %v1653 = vsel %vm404, %v1636, 0
      %v1656 = vsel %vm404, %v1637, 0
      %v1659 = vsel %vm404, %v1638, 0
      %v1662 = vsel %vm404, %v1639, 0
      %1664 = vmatprep.subr.bf16.mxu0 0
      %1665 = vmatpush1.bf16.msra.mxu0 %v1641
      %1666 = vmatprep.subr.bf16.mxu0 0
      %1667 = vmatpush1.bf16.msra.mxu0 %v1643
      %1668 = vmatprep.subr.bf16.mxu0 0
      %1669 = vmatpush1.bf16.msra.mxu0 %v1645
      %1670 = vmatprep.subr.bf16.mxu0 0
      %1671 = vmatpush1.bf16.msra.mxu0 %v1647
      %1672 = vmatprep.subr.bf16.mxu0 0
      %1673 = vmatpush1.bf16.msra.mxu0 0
      %1674 = vmatprep.subr.bf16.mxu0 0
      %1675 = vmatpush1.bf16.msra.mxu0 0
      %1676 = vmatprep.subr.bf16.mxu0 0
      %1677 = vmatpush1.bf16.msra.mxu0 0
      %1678 = vmatprep.subr.bf16.mxu0 0
      %1679 = vmatpush1.bf16.msra.mxu0 0
      %1680 = vmatprep.subr.bf16.mxu0 0
      %1681 = vmatpush1.bf16.msra.mxu0 0
      %1682 = vmatprep.subr.bf16.mxu0 0
      %1683 = vmatpush1.bf16.msra.mxu0 0
      %1684 = vmatprep.subr.bf16.mxu0 0
      %1685 = vmatpush1.bf16.msra.mxu0 0
      %1686 = vmatprep.subr.bf16.mxu0 0
      %1687 = vmatpush1.bf16.msra.mxu0 0
      %1688 = vmatprep.subr.bf16.mxu0 0
      %1689 = vmatpush1.bf16.msra.mxu0 0
      %1690 = vmatprep.subr.bf16.mxu0 0
      %1691 = vmatpush1.bf16.msra.mxu0 0
      %1692 = vmatprep.subr.bf16.mxu0 0
      %1693 = vmatpush1.bf16.msra.mxu0 0
      %1694 = vmatprep.subr.bf16.mxu0 0
      %1695 = vmatpush1.bf16.msra.mxu0 0
      %1696 = vmatprep.mubr.bf16.mxu0 0
      %1697 = vmatmul.mubr.bf16.gmra.mrb[0].mxu0 %v1653
      %v1698 = vpop.f32.mrb[0].mxu0
      %v1699 = vadd.f32 0.0, %v1698
      %v1700 = vpop.f32.mrb[0].mxu0
      %v1701 = vpop.f32.mrb[0].mxu0
      %v1702 = vadd.f32 0.0, %v1701
      %v1703 = vpop.f32.mrb[0].mxu0
      %1704 = vmatprep.mubr.bf16.mxu0 0
      %1705 = vmatmul.mubr.bf16.gmra.mrb[0].mxu0 %v1656
      %v1706 = vpop.f32.mrb[0].mxu0
      %v1707 = vadd.f32 0.0, %v1706
      %v1708 = vpop.f32.mrb[0].mxu0
      %v1709 = vpop.f32.mrb[0].mxu0
      %v1710 = vadd.f32 0.0, %v1709
      %v1711 = vpop.f32.mrb[0].mxu0
      %1712 = vmatprep.mubr.bf16.mxu0 0
      %1713 = vmatmul.mubr.bf16.gmra.mrb[0].mxu0 %v1659
      %v1714 = vpop.f32.mrb[0].mxu0
      %v1715 = vadd.f32 0.0, %v1714
      %v1716 = vpop.f32.mrb[0].mxu0
      %v1717 = vpop.f32.mrb[0].mxu0
      %v1718 = vadd.f32 0.0, %v1717
      %v1719 = vpop.f32.mrb[0].mxu0
      %1720 = vmatprep.mubr.bf16.mxu0 0
      %1721 = vmatmul.mubr.bf16.gmra.mrb[0].mxu0 %v1662
      %v1722 = vpop.f32.mrb[0].mxu0
      %v1723 = vadd.f32 0.0, %v1722
      %v1724 = vpop.f32.mrb[0].mxu0
      %v1725 = vpop.f32.mrb[0].mxu0
      %v1726 = vadd.f32 0.0, %v1725
      %v1727 = vpop.f32.mrb[0].mxu0
      %1728 = vdwg.mxu0
      %v1729 = vrcp.pop %v1614
      %v1730 = vrcp.pop %v1617
      %v1731 = vrcp.pop %v1620
      %v1732 = vrcp.pop %v1623
      %v1733 = vrcp.pop %v1626
      %v1734 = vrcp.pop %v1629
      %v1735 = vrcp.pop %v1632
      %v1736 = vrcp.pop %v1635
      %v1737 = vmul.f32 %v1699, %v1729
      %v1738 = vmul.f32 %v1702, %v1730
      %v1739 = vmul.f32 %v1707, %v1731
      %v1740 = vmul.f32 %v1710, %v1732
      %v1741 = vmul.f32 %v1715, %v1733
      %v1742 = vmul.f32 %v1718, %v1734
      %v1743 = vmul.f32 %v1723, %v1735
      %v1744 = vmul.f32 %v1726, %v1736
      %v1745 = vpack.c.bf16 %v1738, %v1737
      %v1746 = vpack.c.bf16 %v1740, %v1739
      %v1747 = vpack.c.bf16 %v1742, %v1741
      %v1748 = vpack.c.bf16 %v1744, %v1743
      %v1751 = vunpack.c.l.b16 %v241
      %v1752 = vunpack.c.l.b16 %v242
      %v1753 = vpack.c.b16 %v1752, %v1751
      %v1756 = vsel %vm314, %v1745, 0
      %v1759 = vsel %vm314, %v1746, 0
      %v1762 = vsel %vm314, %v1747, 0
      %v1765 = vsel %vm314, %v1748, 0
      %1767 = vmatprep.subr.bf16.mxu0 0
      %1768 = vmatpush1.bf16.msra.mxu0 %v1753
      %1769 = vmatprep.subr.bf16.mxu0 0
      %1770 = vmatpush1.bf16.msra.mxu0 0
      %1771 = vmatprep.subr.bf16.mxu0 0
      %1772 = vmatpush1.bf16.msra.mxu0 0
      %1773 = vmatprep.subr.bf16.mxu0 0
      %1774 = vmatpush1.bf16.msra.mxu0 0
      %1775 = vmatprep.subr.bf16.mxu0 0
      %1776 = vmatpush1.bf16.msra.mxu0 0
      %1777 = vmatprep.subr.bf16.mxu0 0
      %1778 = vmatpush1.bf16.msra.mxu0 0
      %1779 = vmatprep.subr.bf16.mxu0 0
      %1780 = vmatpush1.bf16.msra.mxu0 0
      %1781 = vmatprep.subr.bf16.mxu0 0
      %1782 = vmatpush1.bf16.msra.mxu0 0
      %1783 = vmatprep.subr.bf16.mxu0 0
      %1784 = vmatpush1.bf16.msra.mxu0 0
      %1785 = vmatprep.subr.bf16.mxu0 0
      %1786 = vmatpush1.bf16.msra.mxu0 0
      %1787 = vmatprep.subr.bf16.mxu0 0
      %1788 = vmatpush1.bf16.msra.mxu0 0
      %1789 = vmatprep.subr.bf16.mxu0 0
      %1790 = vmatpush1.bf16.msra.mxu0 0
      %1791 = vmatprep.subr.bf16.mxu0 0
      %1792 = vmatpush1.bf16.msra.mxu0 0
      %1793 = vmatprep.subr.bf16.mxu0 0
      %1794 = vmatpush1.bf16.msra.mxu0 0
      %1795 = vmatprep.subr.bf16.mxu0 0
      %1796 = vmatpush1.bf16.msra.mxu0 0
      %1797 = vmatprep.subr.bf16.mxu0 0
      %1798 = vmatpush1.bf16.msra.mxu0 0
      %1799 = vmatprep.mubr.bf16.mxu0 0
      %1800 = vmatmul.mubr.bf16.gmra.mrb[0].mxu0 %v1756
      %v1801 = vpop.f32.mrb[0].mxu0
      %v1802 = vadd.f32 0.0, %v1801
      %v1803 = vpop.f32.mrb[0].mxu0
      %v1804 = vpop.f32.mrb[0].mxu0
      %v1805 = vadd.f32 0.0, %v1804
      %v1806 = vpop.f32.mrb[0].mxu0
      %1807 = vmatprep.mubr.bf16.mxu0 0
      %1808 = vmatmul.mubr.bf16.gmra.mrb[0].mxu0 %v1759
      %v1809 = vpop.f32.mrb[0].mxu0
      %v1810 = vadd.f32 0.0, %v1809
      %v1811 = vpop.f32.mrb[0].mxu0
      %v1812 = vpop.f32.mrb[0].mxu0
      %v1813 = vadd.f32 0.0, %v1812
      %v1814 = vpop.f32.mrb[0].mxu0
      %1815 = vmatprep.mubr.bf16.mxu0 0
      %1816 = vmatmul.mubr.bf16.gmra.mrb[0].mxu0 %v1762
      %v1817 = vpop.f32.mrb[0].mxu0
      %v1818 = vadd.f32 0.0, %v1817
      %v1819 = vpop.f32.mrb[0].mxu0
      %v1820 = vpop.f32.mrb[0].mxu0
      %v1821 = vadd.f32 0.0, %v1820
      %v1822 = vpop.f32.mrb[0].mxu0
      %1823 = vmatprep.mubr.bf16.mxu0 0
      %1824 = vmatmul.mubr.bf16.gmra.mrb[0].mxu0 %v1765
      %v1825 = vpop.f32.mrb[0].mxu0
      %v1826 = vadd.f32 0.0, %v1825
      %v1827 = vpop.f32.mrb[0].mxu0
      %v1828 = vpop.f32.mrb[0].mxu0
      %v1829 = vadd.f32 0.0, %v1828
      %v1830 = vpop.f32.mrb[0].mxu0
      %1831 = vdwg.mxu0
      %v1832 = vadd.f32 %v1451, %v1802
      %v1833 = vadd.f32 %v1452, %v1805
      %v1834 = vadd.f32 %v1453, %v1810
      %v1835 = vadd.f32 %v1454, %v1813
      %v1836 = vadd.f32 %v1455, %v1818
      %v1837 = vadd.f32 %v1456, %v1821
      %v1838 = vadd.f32 %v1457, %v1826
      %v1839 = vadd.f32 %v1458, %v1829
      %1840 = vrot.lane.b32.xlu0 %v290, 64
      %v1841 = vpop.permute.xlu0 %1840
      %1842 = vrot.lane.b32.xlu0 %v291, 64
      %v1843 = vpop.permute.xlu0 %1842
      %1844 = vrot.lane.b32.xlu0 %v292, 64
      %v1845 = vpop.permute.xlu0 %1844
      %1846 = vrot.lane.b32.xlu0 %v293, 64
      %v1847 = vpop.permute.xlu0 %1846
      %1848 = vrot.lane.b32.xlu0 %v310, 64
      %v1849 = vpop.permute.xlu0 %1848
      %1850 = vrot.lane.b32.xlu0 %v311, 64
      %v1851 = vpop.permute.xlu0 %1850
      %1852 = vrot.lane.b32.xlu0 %v312, 64
      %v1853 = vpop.permute.xlu0 %1852
      %1854 = vrot.lane.b32.xlu0 %v313, 64
      %v1855 = vpop.permute.xlu0 %1854
      %v1857 = vsel %vm314, %v1841, 0
      %v1860 = vsel %vm314, %v1843, 0
      %v1863 = vsel %vm314, %v1845, 0
      %v1866 = vsel %vm314, %v1847, 0
      %v1869 = vsel %vm314, %v1849, 0
      %v1872 = vsel %vm314, %v1851, 0
      %v1875 = vsel %vm314, %v1853, 0
      %v1878 = vsel %vm314, %v1855, 0
      %1880 = vmatprep.subr.bf16.mxu0 0
      %1881 = vmatpush1.bf16.xpose.msra.mxu0 %v1869
      %1882 = vmatprep.subr.bf16.mxu0 0
      %1883 = vmatpush1.bf16.xpose.msra.mxu0 %v1872
      %1884 = vmatprep.subr.bf16.mxu0 0
      %1885 = vmatpush1.bf16.xpose.msra.mxu0 %v1875
      %1886 = vmatprep.subr.bf16.mxu0 0
      %1887 = vmatpush1.bf16.xpose.msra.mxu0 %v1878
      %1888 = vmatprep.subr.bf16.mxu0 0
      %1889 = vmatpush1.bf16.xpose.msra.mxu0 0
      %1890 = vmatprep.subr.bf16.mxu0 0
      %1891 = vmatpush1.bf16.xpose.msra.mxu0 0
      %1892 = vmatprep.subr.bf16.mxu0 0
      %1893 = vmatpush1.bf16.xpose.msra.mxu0 0
      %1894 = vmatprep.subr.bf16.mxu0 0
      %1895 = vmatpush1.bf16.xpose.msra.mxu0 0
      %1896 = vmatprep.subr.bf16.mxu0 0
      %1897 = vmatpush1.bf16.xpose.msra.mxu0 0
      %1898 = vmatprep.subr.bf16.mxu0 0
      %1899 = vmatpush1.bf16.xpose.msra.mxu0 0
      %1900 = vmatprep.subr.bf16.mxu0 0
      %1901 = vmatpush1.bf16.xpose.msra.mxu0 0
      %1902 = vmatprep.subr.bf16.mxu0 0
      %1903 = vmatpush1.bf16.xpose.msra.mxu0 0
      %1904 = vmatprep.subr.bf16.mxu0 0
      %1905 = vmatpush1.bf16.xpose.msra.mxu0 0
      %1906 = vmatprep.subr.bf16.mxu0 0
      %1907 = vmatpush1.bf16.xpose.msra.mxu0 0
      %1908 = vmatprep.subr.bf16.mxu0 0
      %1909 = vmatpush1.bf16.xpose.msra.mxu0 0
      %1910 = vmatprep.subr.bf16.mxu0 0
      %1911 = vmatpush1.bf16.xpose.msra.mxu0 0
      %1912 = vmatprep.mubr.bf16.mxu0 0
      %1913 = vmatmul.mubr.bf16.gmra.mrb[0].mxu0 %v1857
      %v1914 = vpop.f32.mrb[0].mxu0
      %v1915 = vadd.f32 0.0, %v1914
      %v1916 = vpop.f32.mrb[0].mxu0
      %v1917 = vpop.f32.mrb[0].mxu0
      %v1918 = vadd.f32 0.0, %v1917
      %v1919 = vpop.f32.mrb[0].mxu0
      %1920 = vmatprep.mubr.bf16.mxu0 0
      %1921 = vmatmul.mubr.bf16.gmra.mrb[0].mxu0 %v1860
      %v1922 = vpop.f32.mrb[0].mxu0
      %v1923 = vadd.f32 0.0, %v1922
      %v1924 = vpop.f32.mrb[0].mxu0
      %v1925 = vpop.f32.mrb[0].mxu0
      %v1926 = vadd.f32 0.0, %v1925
      %v1927 = vpop.f32.mrb[0].mxu0
      %1928 = vmatprep.mubr.bf16.mxu0 0
      %1929 = vmatmul.mubr.bf16.gmra.mrb[0].mxu0 %v1863
      %v1930 = vpop.f32.mrb[0].mxu0
      %v1931 = vadd.f32 0.0, %v1930
      %v1932 = vpop.f32.mrb[0].mxu0
      %v1933 = vpop.f32.mrb[0].mxu0
      %v1934 = vadd.f32 0.0, %v1933
      %v1935 = vpop.f32.mrb[0].mxu0
      %1936 = vmatprep.mubr.bf16.mxu0 0
      %1937 = vmatmul.mubr.bf16.gmra.mrb[0].mxu0 %v1866
      %v1938 = vpop.f32.mrb[0].mxu0
      %v1939 = vadd.f32 0.0, %v1938
      %v1940 = vpop.f32.mrb[0].mxu0
      %v1941 = vpop.f32.mrb[0].mxu0
      %v1942 = vadd.f32 0.0, %v1941
      %v1943 = vpop.f32.mrb[0].mxu0
      %1944 = vdwg.mxu0
      %v1945 = vsel %vm404, %v1915, -inf
      %1946 = vmax.xlane.f32.xlu0 %v1945
      %v1947 = vpop.xlane.xlu0 %1946
      %v1948 = vsel %vm404, %v1918, -inf
      %1949 = vmax.xlane.f32.xlu0 %v1948
      %v1950 = vpop.xlane.xlu0 %1949
      %v1951 = vsel %vm404, %v1923, -inf
      %1952 = vmax.xlane.f32.xlu0 %v1951
      %v1953 = vpop.xlane.xlu0 %1952
      %v1954 = vsel %vm404, %v1926, -inf
      %1955 = vmax.xlane.f32.xlu0 %v1954
      %v1956 = vpop.xlane.xlu0 %1955
      %v1957 = vsel %vm404, %v1931, -inf
      %1958 = vmax.xlane.f32.xlu0 %v1957
      %v1959 = vpop.xlane.xlu0 %1958
      %v1960 = vsel %vm404, %v1934, -inf
      %1961 = vmax.xlane.f32.xlu0 %v1960
      %v1962 = vpop.xlane.xlu0 %1961
      %v1963 = vsel %vm404, %v1939, -inf
      %1964 = vmax.xlane.f32.xlu0 %v1963
      %v1965 = vpop.xlane.xlu0 %1964
      %v1966 = vsel %vm404, %v1942, -inf
      %1967 = vmax.xlane.f32.xlu0 %v1966
      %v1968 = vpop.xlane.xlu0 %1967
      %v1969 = vsub.f32 %v1915, %v1947
      %v1970 = vsub.f32 %v1918, %v1950
      %v1971 = vsub.f32 %v1923, %v1953
      %v1972 = vsub.f32 %v1926, %v1956
      %v1973 = vsub.f32 %v1931, %v1959
      %v1974 = vsub.f32 %v1934, %v1962
      %v1975 = vsub.f32 %v1939, %v1965
      %v1976 = vsub.f32 %v1942, %v1968
      %v1977 = vmul.f32 %v1969, 1.442695
      %v1978 = vpow.pop %v1977
      %v1979 = vmul.f32 %v1970, 1.442695
      %v1980 = vpow.pop %v1979
      %v1981 = vmul.f32 %v1971, 1.442695
      %v1982 = vpow.pop %v1981
      %v1983 = vmul.f32 %v1972, 1.442695
      %v1984 = vpow.pop %v1983
      %v1985 = vmul.f32 %v1973, 1.442695
      %v1986 = vpow.pop %v1985
      %v1987 = vmul.f32 %v1974, 1.442695
      %v1988 = vpow.pop %v1987
      %v1989 = vmul.f32 %v1975, 1.442695
      %v1990 = vpow.pop %v1989
      %v1991 = vmul.f32 %v1976, 1.442695
      %v1992 = vpow.pop %v1991
      %v1993 = vsel %vm404, %v1978, 0.0
      %1994 = vadd.xlane.f32.xlu0 %v1993
      %v1995 = vpop.xlane.xlu0 %1994
      %v1996 = vsel %vm404, %v1980, 0.0
      %1997 = vadd.xlane.f32.xlu0 %v1996
      %v1998 = vpop.xlane.xlu0 %1997
      %v1999 = vsel %vm404, %v1982, 0.0
      %2000 = vadd.xlane.f32.xlu0 %v1999
      %v2001 = vpop.xlane.xlu0 %2000
      %v2002 = vsel %vm404, %v1984, 0.0
      %2003 = vadd.xlane.f32.xlu0 %v2002
      %v2004 = vpop.xlane.xlu0 %2003
      %v2005 = vsel %vm404, %v1986, 0.0
      %2006 = vadd.xlane.f32.xlu0 %v2005
      %v2007 = vpop.xlane.xlu0 %2006
      %v2008 = vsel %vm404, %v1988, 0.0
      %2009 = vadd.xlane.f32.xlu0 %v2008
      %v2010 = vpop.xlane.xlu0 %2009
      %v2011 = vsel %vm404, %v1990, 0.0
      %2012 = vadd.xlane.f32.xlu0 %v2011
      %v2013 = vpop.xlane.xlu0 %2012
      %v2014 = vsel %vm404, %v1992, 0.0
      %2015 = vadd.xlane.f32.xlu0 %v2014
      %v2016 = vpop.xlane.xlu0 %2015
      %v2017 = vpack.c.bf16 %v1980, %v1978
      %v2018 = vpack.c.bf16 %v1984, %v1982
      %v2019 = vpack.c.bf16 %v1988, %v1986
      %v2020 = vpack.c.bf16 %v1992, %v1990
      %2021 = vrot.lane.b32.xlu0 %v497, 64
      %v2022 = vpop.permute.xlu0 %2021
      %2023 = vrot.lane.b32.xlu0 %v498, 64
      %v2024 = vpop.permute.xlu0 %2023
      %2025 = vrot.lane.b32.xlu0 %v499, 64
      %v2026 = vpop.permute.xlu0 %2025
      %2027 = vrot.lane.b32.xlu0 %v500, 64
      %v2028 = vpop.permute.xlu0 %2027
      %v2034 = vsel %vm404, %v2017, 0
      %v2037 = vsel %vm404, %v2018, 0
      %v2040 = vsel %vm404, %v2019, 0
      %v2043 = vsel %vm404, %v2020, 0
      %2045 = vmatprep.subr.bf16.mxu0 0
      %2046 = vmatpush1.bf16.msra.mxu0 %v2022
      %2047 = vmatprep.subr.bf16.mxu0 0
      %2048 = vmatpush1.bf16.msra.mxu0 %v2024
      %2049 = vmatprep.subr.bf16.mxu0 0
      %2050 = vmatpush1.bf16.msra.mxu0 %v2026
      %2051 = vmatprep.subr.bf16.mxu0 0
      %2052 = vmatpush1.bf16.msra.mxu0 %v2028
      %2053 = vmatprep.subr.bf16.mxu0 0
      %2054 = vmatpush1.bf16.msra.mxu0 0
      %2055 = vmatprep.subr.bf16.mxu0 0
      %2056 = vmatpush1.bf16.msra.mxu0 0
      %2057 = vmatprep.subr.bf16.mxu0 0
      %2058 = vmatpush1.bf16.msra.mxu0 0
      %2059 = vmatprep.subr.bf16.mxu0 0
      %2060 = vmatpush1.bf16.msra.mxu0 0
      %2061 = vmatprep.subr.bf16.mxu0 0
      %2062 = vmatpush1.bf16.msra.mxu0 0
      %2063 = vmatprep.subr.bf16.mxu0 0
      %2064 = vmatpush1.bf16.msra.mxu0 0
      %2065 = vmatprep.subr.bf16.mxu0 0
      %2066 = vmatpush1.bf16.msra.mxu0 0
      %2067 = vmatprep.subr.bf16.mxu0 0
      %2068 = vmatpush1.bf16.msra.mxu0 0
      %2069 = vmatprep.subr.bf16.mxu0 0
      %2070 = vmatpush1.bf16.msra.mxu0 0
      %2071 = vmatprep.subr.bf16.mxu0 0
      %2072 = vmatpush1.bf16.msra.mxu0 0
      %2073 = vmatprep.subr.bf16.mxu0 0
      %2074 = vmatpush1.bf16.msra.mxu0 0
      %2075 = vmatprep.subr.bf16.mxu0 0
      %2076 = vmatpush1.bf16.msra.mxu0 0
      %2077 = vmatprep.mubr.bf16.mxu0 0
      %2078 = vmatmul.mubr.bf16.gmra.mrb[0].mxu0 %v2034
      %v2079 = vpop.f32.mrb[0].mxu0
      %v2080 = vadd.f32 0.0, %v2079
      %v2081 = vpop.f32.mrb[0].mxu0
      %v2082 = vpop.f32.mrb[0].mxu0
      %v2083 = vadd.f32 0.0, %v2082
      %v2084 = vpop.f32.mrb[0].mxu0
      %2085 = vmatprep.mubr.bf16.mxu0 0
      %2086 = vmatmul.mubr.bf16.gmra.mrb[0].mxu0 %v2037
      %v2087 = vpop.f32.mrb[0].mxu0
      %v2088 = vadd.f32 0.0, %v2087
      %v2089 = vpop.f32.mrb[0].mxu0
      %v2090 = vpop.f32.mrb[0].mxu0
      %v2091 = vadd.f32 0.0, %v2090
      %v2092 = vpop.f32.mrb[0].mxu0
      %2093 = vmatprep.mubr.bf16.mxu0 0
      %2094 = vmatmul.mubr.bf16.gmra.mrb[0].mxu0 %v2040
      %v2095 = vpop.f32.mrb[0].mxu0
      %v2096 = vadd.f32 0.0, %v2095
      %v2097 = vpop.f32.mrb[0].mxu0
      %v2098 = vpop.f32.mrb[0].mxu0
      %v2099 = vadd.f32 0.0, %v2098
      %v2100 = vpop.f32.mrb[0].mxu0
      %2101 = vmatprep.mubr.bf16.mxu0 0
      %2102 = vmatmul.mubr.bf16.gmra.mrb[0].mxu0 %v2043
      %v2103 = vpop.f32.mrb[0].mxu0
      %v2104 = vadd.f32 0.0, %v2103
      %v2105 = vpop.f32.mrb[0].mxu0
      %v2106 = vpop.f32.mrb[0].mxu0
      %v2107 = vadd.f32 0.0, %v2106
      %v2108 = vpop.f32.mrb[0].mxu0
      %2109 = vdwg.mxu0
      %v2110 = vrcp.pop %v1995
      %v2111 = vrcp.pop %v1998
      %v2112 = vrcp.pop %v2001
      %v2113 = vrcp.pop %v2004
      %v2114 = vrcp.pop %v2007
      %v2115 = vrcp.pop %v2010
      %v2116 = vrcp.pop %v2013
      %v2117 = vrcp.pop %v2016
      %v2118 = vmul.f32 %v2080, %v2110
      %v2119 = vmul.f32 %v2083, %v2111
      %v2120 = vmul.f32 %v2088, %v2112
      %v2121 = vmul.f32 %v2091, %v2113
      %v2122 = vmul.f32 %v2096, %v2114
      %v2123 = vmul.f32 %v2099, %v2115
      %v2124 = vmul.f32 %v2104, %v2116
      %v2125 = vmul.f32 %v2107, %v2117
      %v2126 = vpack.c.bf16 %v2119, %v2118
      %v2127 = vpack.c.bf16 %v2121, %v2120
      %v2128 = vpack.c.bf16 %v2123, %v2122
      %v2129 = vpack.c.bf16 %v2125, %v2124
      %v2132 = vunpack.c.l.b16 %v243
      %v2133 = vunpack.c.l.b16 %v244
      %v2134 = vpack.c.b16 %v2133, %v2132
      %v2137 = vsel %vm314, %v2126, 0
      %v2140 = vsel %vm314, %v2127, 0
      %v2143 = vsel %vm314, %v2128, 0
      %v2146 = vsel %vm314, %v2129, 0
      %2148 = vmatprep.subr.bf16.mxu0 0
      %2149 = vmatpush1.bf16.msra.mxu0 %v2134
      %2150 = vmatprep.subr.bf16.mxu0 0
      %2151 = vmatpush1.bf16.msra.mxu0 0
      %2152 = vmatprep.subr.bf16.mxu0 0
      %2153 = vmatpush1.bf16.msra.mxu0 0
      %2154 = vmatprep.subr.bf16.mxu0 0
      %2155 = vmatpush1.bf16.msra.mxu0 0
      %2156 = vmatprep.subr.bf16.mxu0 0
      %2157 = vmatpush1.bf16.msra.mxu0 0
      %2158 = vmatprep.subr.bf16.mxu0 0
      %2159 = vmatpush1.bf16.msra.mxu0 0
      %2160 = vmatprep.subr.bf16.mxu0 0
      %2161 = vmatpush1.bf16.msra.mxu0 0
      %2162 = vmatprep.subr.bf16.mxu0 0
      %2163 = vmatpush1.bf16.msra.mxu0 0
      %2164 = vmatprep.subr.bf16.mxu0 0
      %2165 = vmatpush1.bf16.msra.mxu0 0
      %2166 = vmatprep.subr.bf16.mxu0 0
      %2167 = vmatpush1.bf16.msra.mxu0 0
      %2168 = vmatprep.subr.bf16.mxu0 0
      %2169 = vmatpush1.bf16.msra.mxu0 0
      %2170 = vmatprep.subr.bf16.mxu0 0
      %2171 = vmatpush1.bf16.msra.mxu0 0
      %2172 = vmatprep.subr.bf16.mxu0 0
      %2173 = vmatpush1.bf16.msra.mxu0 0
      %2174 = vmatprep.subr.bf16.mxu0 0
      %2175 = vmatpush1.bf16.msra.mxu0 0
      %2176 = vmatprep.subr.bf16.mxu0 0
      %2177 = vmatpush1.bf16.msra.mxu0 0
      %2178 = vmatprep.subr.bf16.mxu0 0
      %2179 = vmatpush1.bf16.msra.mxu0 0
      %2180 = vmatprep.mubr.bf16.mxu0 0
      %2181 = vmatmul.mubr.bf16.gmra.mrb[0].mxu0 %v2137
      %v2182 = vpop.f32.mrb[0].mxu0
      %v2183 = vadd.f32 0.0, %v2182
      %v2184 = vpop.f32.mrb[0].mxu0
      %v2185 = vpop.f32.mrb[0].mxu0
      %v2186 = vadd.f32 0.0, %v2185
      %v2187 = vpop.f32.mrb[0].mxu0
      %2188 = vmatprep.mubr.bf16.mxu0 0
      %2189 = vmatmul.mubr.bf16.gmra.mrb[0].mxu0 %v2140
      %v2190 = vpop.f32.mrb[0].mxu0
      %v2191 = vadd.f32 0.0, %v2190
      %v2192 = vpop.f32.mrb[0].mxu0
      %v2193 = vpop.f32.mrb[0].mxu0
      %v2194 = vadd.f32 0.0, %v2193
      %v2195 = vpop.f32.mrb[0].mxu0
      %2196 = vmatprep.mubr.bf16.mxu0 0
      %2197 = vmatmul.mubr.bf16.gmra.mrb[0].mxu0 %v2143
      %v2198 = vpop.f32.mrb[0].mxu0
      %v2199 = vadd.f32 0.0, %v2198
      %v2200 = vpop.f32.mrb[0].mxu0
      %v2201 = vpop.f32.mrb[0].mxu0
      %v2202 = vadd.f32 0.0, %v2201
      %v2203 = vpop.f32.mrb[0].mxu0
      %2204 = vmatprep.mubr.bf16.mxu0 0
      %2205 = vmatmul.mubr.bf16.gmra.mrb[0].mxu0 %v2146
      %v2206 = vpop.f32.mrb[0].mxu0
      %v2207 = vadd.f32 0.0, %v2206
      %v2208 = vpop.f32.mrb[0].mxu0
      %v2209 = vpop.f32.mrb[0].mxu0
      %v2210 = vadd.f32 0.0, %v2209
      %v2211 = vpop.f32.mrb[0].mxu0
      %2212 = vdwg.mxu0
      %v2213 = vadd.f32 %v1832, %v2183
      %v2214 = vadd.f32 %v1833, %v2186
      %v2215 = vadd.f32 %v1834, %v2191
      %v2216 = vadd.f32 %v1835, %v2194
      %v2217 = vadd.f32 %v1836, %v2199
      %v2218 = vadd.f32 %v1837, %v2202
      %v2219 = vadd.f32 %v1838, %v2207
      %v2220 = vadd.f32 %v1839, %v2210
      %2221 = vrot.lane.b32.xlu0 %v290, 48
      %v2222 = vpop.permute.xlu0 %2221
      %2223 = vrot.lane.b32.xlu0 %v291, 48
      %v2224 = vpop.permute.xlu0 %2223
      %2225 = vrot.lane.b32.xlu0 %v292, 48
      %v2226 = vpop.permute.xlu0 %2225
      %2227 = vrot.lane.b32.xlu0 %v293, 48
      %v2228 = vpop.permute.xlu0 %2227
      %2229 = vrot.lane.b32.xlu0 %v310, 48
      %v2230 = vpop.permute.xlu0 %2229
      %2231 = vrot.lane.b32.xlu0 %v311, 48
      %v2232 = vpop.permute.xlu0 %2231
      %2233 = vrot.lane.b32.xlu0 %v312, 48
      %v2234 = vpop.permute.xlu0 %2233
      %2235 = vrot.lane.b32.xlu0 %v313, 48
      %v2236 = vpop.permute.xlu0 %2235
      %v2238 = vsel %vm314, %v2222, 0
      %v2241 = vsel %vm314, %v2224, 0
      %v2244 = vsel %vm314, %v2226, 0
      %v2247 = vsel %vm314, %v2228, 0
      %v2250 = vsel %vm314, %v2230, 0
      %v2253 = vsel %vm314, %v2232, 0
      %v2256 = vsel %vm314, %v2234, 0
      %v2259 = vsel %vm314, %v2236, 0
      %2261 = vmatprep.subr.bf16.mxu0 0
      %2262 = vmatpush1.bf16.xpose.msra.mxu0 %v2250
      %2263 = vmatprep.subr.bf16.mxu0 0
      %2264 = vmatpush1.bf16.xpose.msra.mxu0 %v2253
      %2265 = vmatprep.subr.bf16.mxu0 0
      %2266 = vmatpush1.bf16.xpose.msra.mxu0 %v2256
      %2267 = vmatprep.subr.bf16.mxu0 0
      %2268 = vmatpush1.bf16.xpose.msra.mxu0 %v2259
      %2269 = vmatprep.subr.bf16.mxu0 0
      %2270 = vmatpush1.bf16.xpose.msra.mxu0 0
      %2271 = vmatprep.subr.bf16.mxu0 0
      %2272 = vmatpush1.bf16.xpose.msra.mxu0 0
      %2273 = vmatprep.subr.bf16.mxu0 0
      %2274 = vmatpush1.bf16.xpose.msra.mxu0 0
      %2275 = vmatprep.subr.bf16.mxu0 0
      %2276 = vmatpush1.bf16.xpose.msra.mxu0 0
      %2277 = vmatprep.subr.bf16.mxu0 0
      %2278 = vmatpush1.bf16.xpose.msra.mxu0 0
      %2279 = vmatprep.subr.bf16.mxu0 0
      %2280 = vmatpush1.bf16.xpose.msra.mxu0 0
      %2281 = vmatprep.subr.bf16.mxu0 0
      %2282 = vmatpush1.bf16.xpose.msra.mxu0 0
      %2283 = vmatprep.subr.bf16.mxu0 0
      %2284 = vmatpush1.bf16.xpose.msra.mxu0 0
      %2285 = vmatprep.subr.bf16.mxu0 0
      %2286 = vmatpush1.bf16.xpose.msra.mxu0 0
      %2287 = vmatprep.subr.bf16.mxu0 0
      %2288 = vmatpush1.bf16.xpose.msra.mxu0 0
      %2289 = vmatprep.subr.bf16.mxu0 0
      %2290 = vmatpush1.bf16.xpose.msra.mxu0 0
      %2291 = vmatprep.subr.bf16.mxu0 0
      %2292 = vmatpush1.bf16.xpose.msra.mxu0 0
      %2293 = vmatprep.mubr.bf16.mxu0 0
      %2294 = vmatmul.mubr.bf16.gmra.mrb[0].mxu0 %v2238
      %v2295 = vpop.f32.mrb[0].mxu0
      %v2296 = vadd.f32 0.0, %v2295
      %v2297 = vpop.f32.mrb[0].mxu0
      %v2298 = vpop.f32.mrb[0].mxu0
      %v2299 = vadd.f32 0.0, %v2298
      %v2300 = vpop.f32.mrb[0].mxu0
      %2301 = vmatprep.mubr.bf16.mxu0 0
      %2302 = vmatmul.mubr.bf16.gmra.mrb[0].mxu0 %v2241
      %v2303 = vpop.f32.mrb[0].mxu0
      %v2304 = vadd.f32 0.0, %v2303
      %v2305 = vpop.f32.mrb[0].mxu0
      %v2306 = vpop.f32.mrb[0].mxu0
      %v2307 = vadd.f32 0.0, %v2306
      %v2308 = vpop.f32.mrb[0].mxu0
      %2309 = vmatprep.mubr.bf16.mxu0 0
      %2310 = vmatmul.mubr.bf16.gmra.mrb[0].mxu0 %v2244
      %v2311 = vpop.f32.mrb[0].mxu0
      %v2312 = vadd.f32 0.0, %v2311
      %v2313 = vpop.f32.mrb[0].mxu0
      %v2314 = vpop.f32.mrb[0].mxu0
      %v2315 = vadd.f32 0.0, %v2314
      %v2316 = vpop.f32.mrb[0].mxu0
      %2317 = vmatprep.mubr.bf16.mxu0 0
      %2318 = vmatmul.mubr.bf16.gmra.mrb[0].mxu0 %v2247
      %v2319 = vpop.f32.mrb[0].mxu0
      %v2320 = vadd.f32 0.0, %v2319
      %v2321 = vpop.f32.mrb[0].mxu0
      %v2322 = vpop.f32.mrb[0].mxu0
      %v2323 = vadd.f32 0.0, %v2322
      %v2324 = vpop.f32.mrb[0].mxu0
      %2325 = vdwg.mxu0
      %v2326 = vsel %vm404, %v2296, -inf
      %2327 = vmax.xlane.f32.xlu0 %v2326
      %v2328 = vpop.xlane.xlu0 %2327
      %v2329 = vsel %vm404, %v2299, -inf
      %2330 = vmax.xlane.f32.xlu0 %v2329
      %v2331 = vpop.xlane.xlu0 %2330
      %v2332 = vsel %vm404, %v2304, -inf
      %2333 = vmax.xlane.f32.xlu0 %v2332
      %v2334 = vpop.xlane.xlu0 %2333
      %v2335 = vsel %vm404, %v2307, -inf
      %2336 = vmax.xlane.f32.xlu0 %v2335
      %v2337 = vpop.xlane.xlu0 %2336
      %v2338 = vsel %vm404, %v2312, -inf
      %2339 = vmax.xlane.f32.xlu0 %v2338
      %v2340 = vpop.xlane.xlu0 %2339
      %v2341 = vsel %vm404, %v2315, -inf
      %2342 = vmax.xlane.f32.xlu0 %v2341
      %v2343 = vpop.xlane.xlu0 %2342
      %v2344 = vsel %vm404, %v2320, -inf
      %2345 = vmax.xlane.f32.xlu0 %v2344
      %v2346 = vpop.xlane.xlu0 %2345
      %v2347 = vsel %vm404, %v2323, -inf
      %2348 = vmax.xlane.f32.xlu0 %v2347
      %v2349 = vpop.xlane.xlu0 %2348
      %v2350 = vsub.f32 %v2296, %v2328
      %v2351 = vsub.f32 %v2299, %v2331
      %v2352 = vsub.f32 %v2304, %v2334
      %v2353 = vsub.f32 %v2307, %v2337
      %v2354 = vsub.f32 %v2312, %v2340
      %v2355 = vsub.f32 %v2315, %v2343
      %v2356 = vsub.f32 %v2320, %v2346
      %v2357 = vsub.f32 %v2323, %v2349
      %v2358 = vmul.f32 %v2350, 1.442695
      %v2359 = vpow.pop %v2358
      %v2360 = vmul.f32 %v2351, 1.442695
      %v2361 = vpow.pop %v2360
      %v2362 = vmul.f32 %v2352, 1.442695
      %v2363 = vpow.pop %v2362
      %v2364 = vmul.f32 %v2353, 1.442695
      %v2365 = vpow.pop %v2364
      %v2366 = vmul.f32 %v2354, 1.442695
      %v2367 = vpow.pop %v2366
      %v2368 = vmul.f32 %v2355, 1.442695
      %v2369 = vpow.pop %v2368
      %v2370 = vmul.f32 %v2356, 1.442695
      %v2371 = vpow.pop %v2370
      %v2372 = vmul.f32 %v2357, 1.442695
      %v2373 = vpow.pop %v2372
      %v2374 = vsel %vm404, %v2359, 0.0
      %2375 = vadd.xlane.f32.xlu0 %v2374
      %v2376 = vpop.xlane.xlu0 %2375
      %v2377 = vsel %vm404, %v2361, 0.0
      %2378 = vadd.xlane.f32.xlu0 %v2377
      %v2379 = vpop.xlane.xlu0 %2378
      %v2380 = vsel %vm404, %v2363, 0.0
      %2381 = vadd.xlane.f32.xlu0 %v2380
      %v2382 = vpop.xlane.xlu0 %2381
      %v2383 = vsel %vm404, %v2365, 0.0
      %2384 = vadd.xlane.f32.xlu0 %v2383
      %v2385 = vpop.xlane.xlu0 %2384
      %v2386 = vsel %vm404, %v2367, 0.0
      %2387 = vadd.xlane.f32.xlu0 %v2386
      %v2388 = vpop.xlane.xlu0 %2387
      %v2389 = vsel %vm404, %v2369, 0.0
      %2390 = vadd.xlane.f32.xlu0 %v2389
      %v2391 = vpop.xlane.xlu0 %2390
      %v2392 = vsel %vm404, %v2371, 0.0
      %2393 = vadd.xlane.f32.xlu0 %v2392
      %v2394 = vpop.xlane.xlu0 %2393
      %v2395 = vsel %vm404, %v2373, 0.0
      %2396 = vadd.xlane.f32.xlu0 %v2395
      %v2397 = vpop.xlane.xlu0 %2396
      %v2398 = vpack.c.bf16 %v2361, %v2359
      %v2399 = vpack.c.bf16 %v2365, %v2363
      %v2400 = vpack.c.bf16 %v2369, %v2367
      %v2401 = vpack.c.bf16 %v2373, %v2371
      %2402 = vrot.lane.b32.xlu0 %v497, 48
      %v2403 = vpop.permute.xlu0 %2402
      %2404 = vrot.lane.b32.xlu0 %v498, 48
      %v2405 = vpop.permute.xlu0 %2404
      %2406 = vrot.lane.b32.xlu0 %v499, 48
      %v2407 = vpop.permute.xlu0 %2406
      %2408 = vrot.lane.b32.xlu0 %v500, 48
      %v2409 = vpop.permute.xlu0 %2408
      %v2415 = vsel %vm404, %v2398, 0
      %v2418 = vsel %vm404, %v2399, 0
      %v2421 = vsel %vm404, %v2400, 0
      %v2424 = vsel %vm404, %v2401, 0
      %2426 = vmatprep.subr.bf16.mxu0 0
      %2427 = vmatpush1.bf16.msra.mxu0 %v2403
      %2428 = vmatprep.subr.bf16.mxu0 0
      %2429 = vmatpush1.bf16.msra.mxu0 %v2405
      %2430 = vmatprep.subr.bf16.mxu0 0
      %2431 = vmatpush1.bf16.msra.mxu0 %v2407
      %2432 = vmatprep.subr.bf16.mxu0 0
      %2433 = vmatpush1.bf16.msra.mxu0 %v2409
      %2434 = vmatprep.subr.bf16.mxu0 0
      %2435 = vmatpush1.bf16.msra.mxu0 0
      %2436 = vmatprep.subr.bf16.mxu0 0
      %2437 = vmatpush1.bf16.msra.mxu0 0
      %2438 = vmatprep.subr.bf16.mxu0 0
      %2439 = vmatpush1.bf16.msra.mxu0 0
      %2440 = vmatprep.subr.bf16.mxu0 0
      %2441 = vmatpush1.bf16.msra.mxu0 0
      %2442 = vmatprep.subr.bf16.mxu0 0
      %2443 = vmatpush1.bf16.msra.mxu0 0
      %2444 = vmatprep.subr.bf16.mxu0 0
      %2445 = vmatpush1.bf16.msra.mxu0 0
      %2446 = vmatprep.subr.bf16.mxu0 0
      %2447 = vmatpush1.bf16.msra.mxu0 0
      %2448 = vmatprep.subr.bf16.mxu0 0
      %2449 = vmatpush1.bf16.msra.mxu0 0
      %2450 = vmatprep.subr.bf16.mxu0 0
      %2451 = vmatpush1.bf16.msra.mxu0 0
      %2452 = vmatprep.subr.bf16.mxu0 0
      %2453 = vmatpush1.bf16.msra.mxu0 0
      %2454 = vmatprep.subr.bf16.mxu0 0
      %2455 = vmatpush1.bf16.msra.mxu0 0
      %2456 = vmatprep.subr.bf16.mxu0 0
      %2457 = vmatpush1.bf16.msra.mxu0 0
      %2458 = vmatprep.mubr.bf16.mxu0 0
      %2459 = vmatmul.mubr.bf16.gmra.mrb[0].mxu0 %v2415
      %v2460 = vpop.f32.mrb[0].mxu0
      %v2461 = vadd.f32 0.0, %v2460
      %v2462 = vpop.f32.mrb[0].mxu0
      %v2463 = vpop.f32.mrb[0].mxu0
      %v2464 = vadd.f32 0.0, %v2463
      %v2465 = vpop.f32.mrb[0].mxu0
      %2466 = vmatprep.mubr.bf16.mxu0 0
      %2467 = vmatmul.mubr.bf16.gmra.mrb[0].mxu0 %v2418
      %v2468 = vpop.f32.mrb[0].mxu0
      %v2469 = vadd.f32 0.0, %v2468
      %v2470 = vpop.f32.mrb[0].mxu0
      %v2471 = vpop.f32.mrb[0].mxu0
      %v2472 = vadd.f32 0.0, %v2471
      %v2473 = vpop.f32.mrb[0].mxu0
      %2474 = vmatprep.mubr.bf16.mxu0 0
      %2475 = vmatmul.mubr.bf16.gmra.mrb[0].mxu0 %v2421
      %v2476 = vpop.f32.mrb[0].mxu0
      %v2477 = vadd.f32 0.0, %v2476
      %v2478 = vpop.f32.mrb[0].mxu0
      %v2479 = vpop.f32.mrb[0].mxu0
      %v2480 = vadd.f32 0.0, %v2479
      %v2481 = vpop.f32.mrb[0].mxu0
      %2482 = vmatprep.mubr.bf16.mxu0 0
      %2483 = vmatmul.mubr.bf16.gmra.mrb[0].mxu0 %v2424
      %v2484 = vpop.f32.mrb[0].mxu0
      %v2485 = vadd.f32 0.0, %v2484
      %v2486 = vpop.f32.mrb[0].mxu0
      %v2487 = vpop.f32.mrb[0].mxu0
      %v2488 = vadd.f32 0.0, %v2487
      %v2489 = vpop.f32.mrb[0].mxu0
      %2490 = vdwg.mxu0
      %v2491 = vrcp.pop %v2376
      %v2492 = vrcp.pop %v2379
      %v2493 = vrcp.pop %v2382
      %v2494 = vrcp.pop %v2385
      %v2495 = vrcp.pop %v2388
      %v2496 = vrcp.pop %v2391
      %v2497 = vrcp.pop %v2394
      %v2498 = vrcp.pop %v2397
      %v2499 = vmul.f32 %v2461, %v2491
      %v2500 = vmul.f32 %v2464, %v2492
      %v2501 = vmul.f32 %v2469, %v2493
      %v2502 = vmul.f32 %v2472, %v2494
      %v2503 = vmul.f32 %v2477, %v2495
      %v2504 = vmul.f32 %v2480, %v2496
      %v2505 = vmul.f32 %v2485, %v2497
      %v2506 = vmul.f32 %v2488, %v2498
      %v2507 = vpack.c.bf16 %v2500, %v2499
      %v2508 = vpack.c.bf16 %v2502, %v2501
      %v2509 = vpack.c.bf16 %v2504, %v2503
      %v2510 = vpack.c.bf16 %v2506, %v2505
      %v2513 = vunpack.c.l.b16 %v245
      %v2514 = vunpack.c.l.b16 %v246
      %v2515 = vpack.c.b16 %v2514, %v2513
      %v2518 = vsel %vm314, %v2507, 0
      %v2521 = vsel %vm314, %v2508, 0
      %v2524 = vsel %vm314, %v2509, 0
      %v2527 = vsel %vm314, %v2510, 0
      %2529 = vmatprep.subr.bf16.mxu0 0
      %2530 = vmatpush1.bf16.msra.mxu0 %v2515
      %2531 = vmatprep.subr.bf16.mxu0 0
      %2532 = vmatpush1.bf16.msra.mxu0 0
      %2533 = vmatprep.subr.bf16.mxu0 0
      %2534 = vmatpush1.bf16.msra.mxu0 0
      %2535 = vmatprep.subr.bf16.mxu0 0
      %2536 = vmatpush1.bf16.msra.mxu0 0
      %2537 = vmatprep.subr.bf16.mxu0 0
      %2538 = vmatpush1.bf16.msra.mxu0 0
      %2539 = vmatprep.subr.bf16.mxu0 0
      %2540 = vmatpush1.bf16.msra.mxu0 0
      %2541 = vmatprep.subr.bf16.mxu0 0
      %2542 = vmatpush1.bf16.msra.mxu0 0
      %2543 = vmatprep.subr.bf16.mxu0 0
      %2544 = vmatpush1.bf16.msra.mxu0 0
      %2545 = vmatprep.subr.bf16.mxu0 0
      %2546 = vmatpush1.bf16.msra.mxu0 0
      %2547 = vmatprep.subr.bf16.mxu0 0
      %2548 = vmatpush1.bf16.msra.mxu0 0
      %2549 = vmatprep.subr.bf16.mxu0 0
      %2550 = vmatpush1.bf16.msra.mxu0 0
      %2551 = vmatprep.subr.bf16.mxu0 0
      %2552 = vmatpush1.bf16.msra.mxu0 0
      %2553 = vmatprep.subr.bf16.mxu0 0
      %2554 = vmatpush1.bf16.msra.mxu0 0
      %2555 = vmatprep.subr.bf16.mxu0 0
      %2556 = vmatpush1.bf16.msra.mxu0 0
      %2557 = vmatprep.subr.bf16.mxu0 0
      %2558 = vmatpush1.bf16.msra.mxu0 0
      %2559 = vmatprep.subr.bf16.mxu0 0
      %2560 = vmatpush1.bf16.msra.mxu0 0
      %2561 = vmatprep.mubr.bf16.mxu0 0
      %2562 = vmatmul.mubr.bf16.gmra.mrb[0].mxu0 %v2518
      %v2563 = vpop.f32.mrb[0].mxu0
      %v2564 = vadd.f32 0.0, %v2563
      %v2565 = vpop.f32.mrb[0].mxu0
      %v2566 = vpop.f32.mrb[0].mxu0
      %v2567 = vadd.f32 0.0, %v2566
      %v2568 = vpop.f32.mrb[0].mxu0
      %2569 = vmatprep.mubr.bf16.mxu0 0
      %2570 = vmatmul.mubr.bf16.gmra.mrb[0].mxu0 %v2521
      %v2571 = vpop.f32.mrb[0].mxu0
      %v2572 = vadd.f32 0.0, %v2571
      %v2573 = vpop.f32.mrb[0].mxu0
      %v2574 = vpop.f32.mrb[0].mxu0
      %v2575 = vadd.f32 0.0, %v2574
      %v2576 = vpop.f32.mrb[0].mxu0
      %2577 = vmatprep.mubr.bf16.mxu0 0
      %2578 = vmatmul.mubr.bf16.gmra.mrb[0].mxu0 %v2524
      %v2579 = vpop.f32.mrb[0].mxu0
      %v2580 = vadd.f32 0.0, %v2579
      %v2581 = vpop.f32.mrb[0].mxu0
      %v2582 = vpop.f32.mrb[0].mxu0
      %v2583 = vadd.f32 0.0, %v2582
      %v2584 = vpop.f32.mrb[0].mxu0
      %2585 = vmatprep.mubr.bf16.mxu0 0
      %2586 = vmatmul.mubr.bf16.gmra.mrb[0].mxu0 %v2527
      %v2587 = vpop.f32.mrb[0].mxu0
      %v2588 = vadd.f32 0.0, %v2587
      %v2589 = vpop.f32.mrb[0].mxu0
      %v2590 = vpop.f32.mrb[0].mxu0
      %v2591 = vadd.f32 0.0, %v2590
      %v2592 = vpop.f32.mrb[0].mxu0
      %2593 = vdwg.mxu0
      %v2594 = vadd.f32 %v2213, %v2564
      %v2595 = vadd.f32 %v2214, %v2567
      %v2596 = vadd.f32 %v2215, %v2572
      %v2597 = vadd.f32 %v2216, %v2575
      %v2598 = vadd.f32 %v2217, %v2580
      %v2599 = vadd.f32 %v2218, %v2583
      %v2600 = vadd.f32 %v2219, %v2588
      %v2601 = vadd.f32 %v2220, %v2591
      %2602 = vrot.lane.b32.xlu0 %v290, 32
      %v2603 = vpop.permute.xlu0 %2602
      %2604 = vrot.lane.b32.xlu0 %v291, 32
      %v2605 = vpop.permute.xlu0 %2604
      %2606 = vrot.lane.b32.xlu0 %v292, 32
      %v2607 = vpop.permute.xlu0 %2606
      %2608 = vrot.lane.b32.xlu0 %v293, 32
      %v2609 = vpop.permute.xlu0 %2608
      %2610 = vrot.lane.b32.xlu0 %v310, 32
      %v2611 = vpop.permute.xlu0 %2610
      %2612 = vrot.lane.b32.xlu0 %v311, 32
      %v2613 = vpop.permute.xlu0 %2612
      %2614 = vrot.lane.b32.xlu0 %v312, 32
      %v2615 = vpop.permute.xlu0 %2614
      %2616 = vrot.lane.b32.xlu0 %v313, 32
      %v2617 = vpop.permute.xlu0 %2616
      %v2619 = vsel %vm314, %v2603, 0
      %v2622 = vsel %vm314, %v2605, 0
      %v2625 = vsel %vm314, %v2607, 0
      %v2628 = vsel %vm314, %v2609, 0
      %v2631 = vsel %vm314, %v2611, 0
      %v2634 = vsel %vm314, %v2613, 0
      %v2637 = vsel %vm314, %v2615, 0
      %v2640 = vsel %vm314, %v2617, 0
      %2642 = vmatprep.subr.bf16.mxu0 0
      %2643 = vmatpush1.bf16.xpose.msra.mxu0 %v2631
      %2644 = vmatprep.subr.bf16.mxu0 0
      %2645 = vmatpush1.bf16.xpose.msra.mxu0 %v2634
      %2646 = vmatprep.subr.bf16.mxu0 0
      %2647 = vmatpush1.bf16.xpose.msra.mxu0 %v2637
      %2648 = vmatprep.subr.bf16.mxu0 0
      %2649 = vmatpush1.bf16.xpose.msra.mxu0 %v2640
      %2650 = vmatprep.subr.bf16.mxu0 0
      %2651 = vmatpush1.bf16.xpose.msra.mxu0 0
      %2652 = vmatprep.subr.bf16.mxu0 0
      %2653 = vmatpush1.bf16.xpose.msra.mxu0 0
      %2654 = vmatprep.subr.bf16.mxu0 0
      %2655 = vmatpush1.bf16.xpose.msra.mxu0 0
      %2656 = vmatprep.subr.bf16.mxu0 0
      %2657 = vmatpush1.bf16.xpose.msra.mxu0 0
      %2658 = vmatprep.subr.bf16.mxu0 0
      %2659 = vmatpush1.bf16.xpose.msra.mxu0 0
      %2660 = vmatprep.subr.bf16.mxu0 0
      %2661 = vmatpush1.bf16.xpose.msra.mxu0 0
      %2662 = vmatprep.subr.bf16.mxu0 0
      %2663 = vmatpush1.bf16.xpose.msra.mxu0 0
      %2664 = vmatprep.subr.bf16.mxu0 0
      %2665 = vmatpush1.bf16.xpose.msra.mxu0 0
      %2666 = vmatprep.subr.bf16.mxu0 0
      %2667 = vmatpush1.bf16.xpose.msra.mxu0 0
      %2668 = vmatprep.subr.bf16.mxu0 0
      %2669 = vmatpush1.bf16.xpose.msra.mxu0 0
      %2670 = vmatprep.subr.bf16.mxu0 0
      %2671 = vmatpush1.bf16.xpose.msra.mxu0 0
      %2672 = vmatprep.subr.bf16.mxu0 0
      %2673 = vmatpush1.bf16.xpose.msra.mxu0 0
      %2674 = vmatprep.mubr.bf16.mxu0 0
      %2675 = vmatmul.mubr.bf16.gmra.mrb[0].mxu0 %v2619
      %v2676 = vpop.f32.mrb[0].mxu0
      %v2677 = vadd.f32 0.0, %v2676
      %v2678 = vpop.f32.mrb[0].mxu0
      %v2679 = vpop.f32.mrb[0].mxu0
      %v2680 = vadd.f32 0.0, %v2679
      %v2681 = vpop.f32.mrb[0].mxu0
      %2682 = vmatprep.mubr.bf16.mxu0 0
      %2683 = vmatmul.mubr.bf16.gmra.mrb[0].mxu0 %v2622
      %v2684 = vpop.f32.mrb[0].mxu0
      %v2685 = vadd.f32 0.0, %v2684
      %v2686 = vpop.f32.mrb[0].mxu0
      %v2687 = vpop.f32.mrb[0].mxu0
      %v2688 = vadd.f32 0.0, %v2687
      %v2689 = vpop.f32.mrb[0].mxu0
      %2690 = vmatprep.mubr.bf16.mxu0 0
      %2691 = vmatmul.mubr.bf16.gmra.mrb[0].mxu0 %v2625
      %v2692 = vpop.f32.mrb[0].mxu0
      %v2693 = vadd.f32 0.0, %v2692
      %v2694 = vpop.f32.mrb[0].mxu0
      %v2695 = vpop.f32.mrb[0].mxu0
      %v2696 = vadd.f32 0.0, %v2695
      %v2697 = vpop.f32.mrb[0].mxu0
      %2698 = vmatprep.mubr.bf16.mxu0 0
      %2699 = vmatmul.mubr.bf16.gmra.mrb[0].mxu0 %v2628
      %v2700 = vpop.f32.mrb[0].mxu0
      %v2701 = vadd.f32 0.0, %v2700
      %v2702 = vpop.f32.mrb[0].mxu0
      %v2703 = vpop.f32.mrb[0].mxu0
      %v2704 = vadd.f32 0.0, %v2703
      %v2705 = vpop.f32.mrb[0].mxu0
      %2706 = vdwg.mxu0
      %v2707 = vsel %vm404, %v2677, -inf
      %2708 = vmax.xlane.f32.xlu0 %v2707
      %v2709 = vpop.xlane.xlu0 %2708
      %v2710 = vsel %vm404, %v2680, -inf
      %2711 = vmax.xlane.f32.xlu0 %v2710
      %v2712 = vpop.xlane.xlu0 %2711
      %v2713 = vsel %vm404, %v2685, -inf
      %2714 = vmax.xlane.f32.xlu0 %v2713
      %v2715 = vpop.xlane.xlu0 %2714
      %v2716 = vsel %vm404, %v2688, -inf
      %2717 = vmax.xlane.f32.xlu0 %v2716
      %v2718 = vpop.xlane.xlu0 %2717
      %v2719 = vsel %vm404, %v2693, -inf
      %2720 = vmax.xlane.f32.xlu0 %v2719
      %v2721 = vpop.xlane.xlu0 %2720
      %v2722 = vsel %vm404, %v2696, -inf
      %2723 = vmax.xlane.f32.xlu0 %v2722
      %v2724 = vpop.xlane.xlu0 %2723
      %v2725 = vsel %vm404, %v2701, -inf
      %2726 = vmax.xlane.f32.xlu0 %v2725
      %v2727 = vpop.xlane.xlu0 %2726
      %v2728 = vsel %vm404, %v2704, -inf
      %2729 = vmax.xlane.f32.xlu0 %v2728
      %v2730 = vpop.xlane.xlu0 %2729
      %v2731 = vsub.f32 %v2677, %v2709
      %v2732 = vsub.f32 %v2680, %v2712
      %v2733 = vsub.f32 %v2685, %v2715
      %v2734 = vsub.f32 %v2688, %v2718
      %v2735 = vsub.f32 %v2693, %v2721
      %v2736 = vsub.f32 %v2696, %v2724
      %v2737 = vsub.f32 %v2701, %v2727
      %v2738 = vsub.f32 %v2704, %v2730
      %v2739 = vmul.f32 %v2731, 1.442695
      %v2740 = vpow.pop %v2739
      %v2741 = vmul.f32 %v2732, 1.442695
      %v2742 = vpow.pop %v2741
      %v2743 = vmul.f32 %v2733, 1.442695
      %v2744 = vpow.pop %v2743
      %v2745 = vmul.f32 %v2734, 1.442695
      %v2746 = vpow.pop %v2745
      %v2747 = vmul.f32 %v2735, 1.442695
      %v2748 = vpow.pop %v2747
      %v2749 = vmul.f32 %v2736, 1.442695
      %v2750 = vpow.pop %v2749
      %v2751 = vmul.f32 %v2737, 1.442695
      %v2752 = vpow.pop %v2751
      %v2753 = vmul.f32 %v2738, 1.442695
      %v2754 = vpow.pop %v2753
      %v2755 = vsel %vm404, %v2740, 0.0
      %2756 = vadd.xlane.f32.xlu0 %v2755
      %v2757 = vpop.xlane.xlu0 %2756
      %v2758 = vsel %vm404, %v2742, 0.0
      %2759 = vadd.xlane.f32.xlu0 %v2758
      %v2760 = vpop.xlane.xlu0 %2759
      %v2761 = vsel %vm404, %v2744, 0.0
      %2762 = vadd.xlane.f32.xlu0 %v2761
      %v2763 = vpop.xlane.xlu0 %2762
      %v2764 = vsel %vm404, %v2746, 0.0
      %2765 = vadd.xlane.f32.xlu0 %v2764
      %v2766 = vpop.xlane.xlu0 %2765
      %v2767 = vsel %vm404, %v2748, 0.0
      %2768 = vadd.xlane.f32.xlu0 %v2767
      %v2769 = vpop.xlane.xlu0 %2768
      %v2770 = vsel %vm404, %v2750, 0.0
      %2771 = vadd.xlane.f32.xlu0 %v2770
      %v2772 = vpop.xlane.xlu0 %2771
      %v2773 = vsel %vm404, %v2752, 0.0
      %2774 = vadd.xlane.f32.xlu0 %v2773
      %v2775 = vpop.xlane.xlu0 %2774
      %v2776 = vsel %vm404, %v2754, 0.0
      %2777 = vadd.xlane.f32.xlu0 %v2776
      %v2778 = vpop.xlane.xlu0 %2777
      %v2779 = vpack.c.bf16 %v2742, %v2740
      %v2780 = vpack.c.bf16 %v2746, %v2744
      %v2781 = vpack.c.bf16 %v2750, %v2748
      %v2782 = vpack.c.bf16 %v2754, %v2752
      %2783 = vrot.lane.b32.xlu0 %v497, 32
      %v2784 = vpop.permute.xlu0 %2783
      %2785 = vrot.lane.b32.xlu0 %v498, 32
      %v2786 = vpop.permute.xlu0 %2785
      %2787 = vrot.lane.b32.xlu0 %v499, 32
      %v2788 = vpop.permute.xlu0 %2787
      %2789 = vrot.lane.b32.xlu0 %v500, 32
      %v2790 = vpop.permute.xlu0 %2789
      %v2796 = vsel %vm404, %v2779, 0
      %v2799 = vsel %vm404, %v2780, 0
      %v2802 = vsel %vm404, %v2781, 0
      %v2805 = vsel %vm404, %v2782, 0
      %2807 = vmatprep.subr.bf16.mxu0 0
      %2808 = vmatpush1.bf16.msra.mxu0 %v2784
      %2809 = vmatprep.subr.bf16.mxu0 0
      %2810 = vmatpush1.bf16.msra.mxu0 %v2786
      %2811 = vmatprep.subr.bf16.mxu0 0
      %2812 = vmatpush1.bf16.msra.mxu0 %v2788
      %2813 = vmatprep.subr.bf16.mxu0 0
      %2814 = vmatpush1.bf16.msra.mxu0 %v2790
      %2815 = vmatprep.subr.bf16.mxu0 0
      %2816 = vmatpush1.bf16.msra.mxu0 0
      %2817 = vmatprep.subr.bf16.mxu0 0
      %2818 = vmatpush1.bf16.msra.mxu0 0
      %2819 = vmatprep.subr.bf16.mxu0 0
      %2820 = vmatpush1.bf16.msra.mxu0 0
      %2821 = vmatprep.subr.bf16.mxu0 0
      %2822 = vmatpush1.bf16.msra.mxu0 0
      %2823 = vmatprep.subr.bf16.mxu0 0
      %2824 = vmatpush1.bf16.msra.mxu0 0
      %2825 = vmatprep.subr.bf16.mxu0 0
      %2826 = vmatpush1.bf16.msra.mxu0 0
      %2827 = vmatprep.subr.bf16.mxu0 0
      %2828 = vmatpush1.bf16.msra.mxu0 0
      %2829 = vmatprep.subr.bf16.mxu0 0
      %2830 = vmatpush1.bf16.msra.mxu0 0
      %2831 = vmatprep.subr.bf16.mxu0 0
      %2832 = vmatpush1.bf16.msra.mxu0 0
      %2833 = vmatprep.subr.bf16.mxu0 0
      %2834 = vmatpush1.bf16.msra.mxu0 0
      %2835 = vmatprep.subr.bf16.mxu0 0
      %2836 = vmatpush1.bf16.msra.mxu0 0
      %2837 = vmatprep.subr.bf16.mxu0 0
      %2838 = vmatpush1.bf16.msra.mxu0 0
      %2839 = vmatprep.mubr.bf16.mxu0 0
      %2840 = vmatmul.mubr.bf16.gmra.mrb[0].mxu0 %v2796
      %v2841 = vpop.f32.mrb[0].mxu0
      %v2842 = vadd.f32 0.0, %v2841
      %v2843 = vpop.f32.mrb[0].mxu0
      %v2844 = vpop.f32.mrb[0].mxu0
      %v2845 = vadd.f32 0.0, %v2844
      %v2846 = vpop.f32.mrb[0].mxu0
      %2847 = vmatprep.mubr.bf16.mxu0 0
      %2848 = vmatmul.mubr.bf16.gmra.mrb[0].mxu0 %v2799
      %v2849 = vpop.f32.mrb[0].mxu0
      %v2850 = vadd.f32 0.0, %v2849
      %v2851 = vpop.f32.mrb[0].mxu0
      %v2852 = vpop.f32.mrb[0].mxu0
      %v2853 = vadd.f32 0.0, %v2852
      %v2854 = vpop.f32.mrb[0].mxu0
      %2855 = vmatprep.mubr.bf16.mxu0 0
      %2856 = vmatmul.mubr.bf16.gmra.mrb[0].mxu0 %v2802
      %v2857 = vpop.f32.mrb[0].mxu0
      %v2858 = vadd.f32 0.0, %v2857
      %v2859 = vpop.f32.mrb[0].mxu0
      %v2860 = vpop.f32.mrb[0].mxu0
      %v2861 = vadd.f32 0.0, %v2860
      %v2862 = vpop.f32.mrb[0].mxu0
      %2863 = vmatprep.mubr.bf16.mxu0 0
      %2864 = vmatmul.mubr.bf16.gmra.mrb[0].mxu0 %v2805
      %v2865 = vpop.f32.mrb[0].mxu0
      %v2866 = vadd.f32 0.0, %v2865
      %v2867 = vpop.f32.mrb[0].mxu0
      %v2868 = vpop.f32.mrb[0].mxu0
      %v2869 = vadd.f32 0.0, %v2868
      %v2870 = vpop.f32.mrb[0].mxu0
      %2871 = vdwg.mxu0
      %v2872 = vrcp.pop %v2757
      %v2873 = vrcp.pop %v2760
      %v2874 = vrcp.pop %v2763
      %v2875 = vrcp.pop %v2766
      %v2876 = vrcp.pop %v2769
      %v2877 = vrcp.pop %v2772
      %v2878 = vrcp.pop %v2775
      %v2879 = vrcp.pop %v2778
      %v2880 = vmul.f32 %v2842, %v2872
      %v2881 = vmul.f32 %v2845, %v2873
      %v2882 = vmul.f32 %v2850, %v2874
      %v2883 = vmul.f32 %v2853, %v2875
      %v2884 = vmul.f32 %v2858, %v2876
      %v2885 = vmul.f32 %v2861, %v2877
      %v2886 = vmul.f32 %v2866, %v2878
      %v2887 = vmul.f32 %v2869, %v2879
      %v2888 = vpack.c.bf16 %v2881, %v2880
      %v2889 = vpack.c.bf16 %v2883, %v2882
      %v2890 = vpack.c.bf16 %v2885, %v2884
      %v2891 = vpack.c.bf16 %v2887, %v2886
      %v2894 = vunpack.c.l.b16 %v247
      %v2895 = vunpack.c.l.b16 %v248
      %v2896 = vpack.c.b16 %v2895, %v2894
      %v2899 = vsel %vm314, %v2888, 0
      %v2902 = vsel %vm314, %v2889, 0
      %v2905 = vsel %vm314, %v2890, 0
      %v2908 = vsel %vm314, %v2891, 0
      %2910 = vmatprep.subr.bf16.mxu0 0
      %2911 = vmatpush1.bf16.msra.mxu0 %v2896
      %2912 = vmatprep.subr.bf16.mxu0 0
      %2913 = vmatpush1.bf16.msra.mxu0 0
      %2914 = vmatprep.subr.bf16.mxu0 0
      %2915 = vmatpush1.bf16.msra.mxu0 0
      %2916 = vmatprep.subr.bf16.mxu0 0
      %2917 = vmatpush1.bf16.msra.mxu0 0
      %2918 = vmatprep.subr.bf16.mxu0 0
      %2919 = vmatpush1.bf16.msra.mxu0 0
      %2920 = vmatprep.subr.bf16.mxu0 0
      %2921 = vmatpush1.bf16.msra.mxu0 0
      %2922 = vmatprep.subr.bf16.mxu0 0
      %2923 = vmatpush1.bf16.msra.mxu0 0
      %2924 = vmatprep.subr.bf16.mxu0 0
      %2925 = vmatpush1.bf16.msra.mxu0 0
      %2926 = vmatprep.subr.bf16.mxu0 0
      %2927 = vmatpush1.bf16.msra.mxu0 0
      %2928 = vmatprep.subr.bf16.mxu0 0
      %2929 = vmatpush1.bf16.msra.mxu0 0
      %2930 = vmatprep.subr.bf16.mxu0 0
      %2931 = vmatpush1.bf16.msra.mxu0 0
      %2932 = vmatprep.subr.bf16.mxu0 0
      %2933 = vmatpush1.bf16.msra.mxu0 0
      %2934 = vmatprep.subr.bf16.mxu0 0
      %2935 = vmatpush1.bf16.msra.mxu0 0
      %2936 = vmatprep.subr.bf16.mxu0 0
      %2937 = vmatpush1.bf16.msra.mxu0 0
      %2938 = vmatprep.subr.bf16.mxu0 0
      %2939 = vmatpush1.bf16.msra.mxu0 0
      %2940 = vmatprep.subr.bf16.mxu0 0
      %2941 = vmatpush1.bf16.msra.mxu0 0
      %2942 = vmatprep.mubr.bf16.mxu0 0
      %2943 = vmatmul.mubr.bf16.gmra.mrb[0].mxu0 %v2899
      %v2944 = vpop.f32.mrb[0].mxu0
      %v2945 = vadd.f32 0.0, %v2944
      %v2946 = vpop.f32.mrb[0].mxu0
      %v2947 = vpop.f32.mrb[0].mxu0
      %v2948 = vadd.f32 0.0, %v2947
      %v2949 = vpop.f32.mrb[0].mxu0
      %2950 = vmatprep.mubr.bf16.mxu0 0
      %2951 = vmatmul.mubr.bf16.gmra.mrb[0].mxu0 %v2902
      %v2952 = vpop.f32.mrb[0].mxu0
      %v2953 = vadd.f32 0.0, %v2952
      %v2954 = vpop.f32.mrb[0].mxu0
      %v2955 = vpop.f32.mrb[0].mxu0
      %v2956 = vadd.f32 0.0, %v2955
      %v2957 = vpop.f32.mrb[0].mxu0
      %2958 = vmatprep.mubr.bf16.mxu0 0
      %2959 = vmatmul.mubr.bf16.gmra.mrb[0].mxu0 %v2905
      %v2960 = vpop.f32.mrb[0].mxu0
      %v2961 = vadd.f32 0.0, %v2960
      %v2962 = vpop.f32.mrb[0].mxu0
      %v2963 = vpop.f32.mrb[0].mxu0
      %v2964 = vadd.f32 0.0, %v2963
      %v2965 = vpop.f32.mrb[0].mxu0
      %2966 = vmatprep.mubr.bf16.mxu0 0
      %2967 = vmatmul.mubr.bf16.gmra.mrb[0].mxu0 %v2908
      %v2968 = vpop.f32.mrb[0].mxu0
      %v2969 = vadd.f32 0.0, %v2968
      %v2970 = vpop.f32.mrb[0].mxu0
      %v2971 = vpop.f32.mrb[0].mxu0
      %v2972 = vadd.f32 0.0, %v2971
      %v2973 = vpop.f32.mrb[0].mxu0
      %2974 = vdwg.mxu0
      %v2975 = vadd.f32 %v2594, %v2945
      %v2976 = vadd.f32 %v2595, %v2948
      %v2977 = vadd.f32 %v2596, %v2953
      %v2978 = vadd.f32 %v2597, %v2956
      %v2979 = vadd.f32 %v2598, %v2961
      %v2980 = vadd.f32 %v2599, %v2964
      %v2981 = vadd.f32 %v2600, %v2969
      %v2982 = vadd.f32 %v2601, %v2972
      %2983 = vrot.lane.b32.xlu0 %v290, 16
      %v2984 = vpop.permute.xlu0 %2983
      %2985 = vrot.lane.b32.xlu0 %v291, 16
      %v2986 = vpop.permute.xlu0 %2985
      %2987 = vrot.lane.b32.xlu0 %v292, 16
      %v2988 = vpop.permute.xlu0 %2987
      %2989 = vrot.lane.b32.xlu0 %v293, 16
      %v2990 = vpop.permute.xlu0 %2989
      %2991 = vrot.lane.b32.xlu0 %v310, 16
      %v2992 = vpop.permute.xlu0 %2991
      %2993 = vrot.lane.b32.xlu0 %v311, 16
      %v2994 = vpop.permute.xlu0 %2993
      %2995 = vrot.lane.b32.xlu0 %v312, 16
      %v2996 = vpop.permute.xlu0 %2995
      %2997 = vrot.lane.b32.xlu0 %v313, 16
      %v2998 = vpop.permute.xlu0 %2997
      %v3000 = vsel %vm314, %v2984, 0
      %v3003 = vsel %vm314, %v2986, 0
      %v3006 = vsel %vm314, %v2988, 0
      %v3009 = vsel %vm314, %v2990, 0
      %v3012 = vsel %vm314, %v2992, 0
      %v3015 = vsel %vm314, %v2994, 0
      %v3018 = vsel %vm314, %v2996, 0
      %v3021 = vsel %vm314, %v2998, 0
      %3023 = vmatprep.subr.bf16.mxu0 0
      %3024 = vmatpush1.bf16.xpose.msra.mxu0 %v3012
      %3025 = vmatprep.subr.bf16.mxu0 0
      %3026 = vmatpush1.bf16.xpose.msra.mxu0 %v3015
      %3027 = vmatprep.subr.bf16.mxu0 0
      %3028 = vmatpush1.bf16.xpose.msra.mxu0 %v3018
      %3029 = vmatprep.subr.bf16.mxu0 0
      %3030 = vmatpush1.bf16.xpose.msra.mxu0 %v3021
      %3031 = vmatprep.subr.bf16.mxu0 0
      %3032 = vmatpush1.bf16.xpose.msra.mxu0 0
      %3033 = vmatprep.subr.bf16.mxu0 0
      %3034 = vmatpush1.bf16.xpose.msra.mxu0 0
      %3035 = vmatprep.subr.bf16.mxu0 0
      %3036 = vmatpush1.bf16.xpose.msra.mxu0 0
      %3037 = vmatprep.subr.bf16.mxu0 0
      %3038 = vmatpush1.bf16.xpose.msra.mxu0 0
      %3039 = vmatprep.subr.bf16.mxu0 0
      %3040 = vmatpush1.bf16.xpose.msra.mxu0 0
      %3041 = vmatprep.subr.bf16.mxu0 0
      %3042 = vmatpush1.bf16.xpose.msra.mxu0 0
      %3043 = vmatprep.subr.bf16.mxu0 0
      %3044 = vmatpush1.bf16.xpose.msra.mxu0 0
      %3045 = vmatprep.subr.bf16.mxu0 0
      %3046 = vmatpush1.bf16.xpose.msra.mxu0 0
      %3047 = vmatprep.subr.bf16.mxu0 0
      %3048 = vmatpush1.bf16.xpose.msra.mxu0 0
      %3049 = vmatprep.subr.bf16.mxu0 0
      %3050 = vmatpush1.bf16.xpose.msra.mxu0 0
      %3051 = vmatprep.subr.bf16.mxu0 0
      %3052 = vmatpush1.bf16.xpose.msra.mxu0 0
      %3053 = vmatprep.subr.bf16.mxu0 0
      %3054 = vmatpush1.bf16.xpose.msra.mxu0 0
      %3055 = vmatprep.mubr.bf16.mxu0 0
      %3056 = vmatmul.mubr.bf16.gmra.mrb[0].mxu0 %v3000
      %v3057 = vpop.f32.mrb[0].mxu0
      %v3058 = vadd.f32 0.0, %v3057
      %v3059 = vpop.f32.mrb[0].mxu0
      %v3060 = vpop.f32.mrb[0].mxu0
      %v3061 = vadd.f32 0.0, %v3060
      %v3062 = vpop.f32.mrb[0].mxu0
      %3063 = vmatprep.mubr.bf16.mxu0 0
      %3064 = vmatmul.mubr.bf16.gmra.mrb[0].mxu0 %v3003
      %v3065 = vpop.f32.mrb[0].mxu0
      %v3066 = vadd.f32 0.0, %v3065
      %v3067 = vpop.f32.mrb[0].mxu0
      %v3068 = vpop.f32.mrb[0].mxu0
      %v3069 = vadd.f32 0.0, %v3068
      %v3070 = vpop.f32.mrb[0].mxu0
      %3071 = vmatprep.mubr.bf16.mxu0 0
      %3072 = vmatmul.mubr.bf16.gmra.mrb[0].mxu0 %v3006
      %v3073 = vpop.f32.mrb[0].mxu0
      %v3074 = vadd.f32 0.0, %v3073
      %v3075 = vpop.f32.mrb[0].mxu0
      %v3076 = vpop.f32.mrb[0].mxu0
      %v3077 = vadd.f32 0.0, %v3076
      %v3078 = vpop.f32.mrb[0].mxu0
      %3079 = vmatprep.mubr.bf16.mxu0 0
      %3080 = vmatmul.mubr.bf16.gmra.mrb[0].mxu0 %v3009
      %v3081 = vpop.f32.mrb[0].mxu0
      %v3082 = vadd.f32 0.0, %v3081
      %v3083 = vpop.f32.mrb[0].mxu0
      %v3084 = vpop.f32.mrb[0].mxu0
      %v3085 = vadd.f32 0.0, %v3084
      %v3086 = vpop.f32.mrb[0].mxu0
      %3087 = vdwg.mxu0
      %v3088 = vsel %vm404, %v3058, -inf
      %3089 = vmax.xlane.f32.xlu0 %v3088
      %v3090 = vpop.xlane.xlu0 %3089
      %v3091 = vsel %vm404, %v3061, -inf
      %3092 = vmax.xlane.f32.xlu0 %v3091
      %v3093 = vpop.xlane.xlu0 %3092
      %v3094 = vsel %vm404, %v3066, -inf
      %3095 = vmax.xlane.f32.xlu0 %v3094
      %v3096 = vpop.xlane.xlu0 %3095
      %v3097 = vsel %vm404, %v3069, -inf
      %3098 = vmax.xlane.f32.xlu0 %v3097
      %v3099 = vpop.xlane.xlu0 %3098
      %v3100 = vsel %vm404, %v3074, -inf
      %3101 = vmax.xlane.f32.xlu0 %v3100
      %v3102 = vpop.xlane.xlu0 %3101
      %v3103 = vsel %vm404, %v3077, -inf
      %3104 = vmax.xlane.f32.xlu0 %v3103
      %v3105 = vpop.xlane.xlu0 %3104
      %v3106 = vsel %vm404, %v3082, -inf
      %3107 = vmax.xlane.f32.xlu0 %v3106
      %v3108 = vpop.xlane.xlu0 %3107
      %v3109 = vsel %vm404, %v3085, -inf
      %3110 = vmax.xlane.f32.xlu0 %v3109
      %v3111 = vpop.xlane.xlu0 %3110
      %v3112 = vsub.f32 %v3058, %v3090
      %v3113 = vsub.f32 %v3061, %v3093
      %v3114 = vsub.f32 %v3066, %v3096
      %v3115 = vsub.f32 %v3069, %v3099
      %v3116 = vsub.f32 %v3074, %v3102
      %v3117 = vsub.f32 %v3077, %v3105
      %v3118 = vsub.f32 %v3082, %v3108
      %v3119 = vsub.f32 %v3085, %v3111
      %v3120 = vmul.f32 %v3112, 1.442695
      %v3121 = vpow.pop %v3120
      %v3122 = vmul.f32 %v3113, 1.442695
      %v3123 = vpow.pop %v3122
      %v3124 = vmul.f32 %v3114, 1.442695
      %v3125 = vpow.pop %v3124
      %v3126 = vmul.f32 %v3115, 1.442695
      %v3127 = vpow.pop %v3126
      %v3128 = vmul.f32 %v3116, 1.442695
      %v3129 = vpow.pop %v3128
      %v3130 = vmul.f32 %v3117, 1.442695
      %v3131 = vpow.pop %v3130
      %v3132 = vmul.f32 %v3118, 1.442695
      %v3133 = vpow.pop %v3132
      %v3134 = vmul.f32 %v3119, 1.442695
      %v3135 = vpow.pop %v3134
      %v3136 = vsel %vm404, %v3121, 0.0
      %3137 = vadd.xlane.f32.xlu0 %v3136
      %v3138 = vpop.xlane.xlu0 %3137
      %v3139 = vsel %vm404, %v3123, 0.0
      %3140 = vadd.xlane.f32.xlu0 %v3139
      %v3141 = vpop.xlane.xlu0 %3140
      %v3142 = vsel %vm404, %v3125, 0.0
      %3143 = vadd.xlane.f32.xlu0 %v3142
      %v3144 = vpop.xlane.xlu0 %3143
      %v3145 = vsel %vm404, %v3127, 0.0
      %3146 = vadd.xlane.f32.xlu0 %v3145
      %v3147 = vpop.xlane.xlu0 %3146
      %v3148 = vsel %vm404, %v3129, 0.0
      %3149 = vadd.xlane.f32.xlu0 %v3148
      %v3150 = vpop.xlane.xlu0 %3149
      %v3151 = vsel %vm404, %v3131, 0.0
      %3152 = vadd.xlane.f32.xlu0 %v3151
      %v3153 = vpop.xlane.xlu0 %3152
      %v3154 = vsel %vm404, %v3133, 0.0
      %3155 = vadd.xlane.f32.xlu0 %v3154
      %v3156 = vpop.xlane.xlu0 %3155
      %v3157 = vsel %vm404, %v3135, 0.0
      %3158 = vadd.xlane.f32.xlu0 %v3157
      %v3159 = vpop.xlane.xlu0 %3158
      %v3160 = vpack.c.bf16 %v3123, %v3121
      %v3161 = vpack.c.bf16 %v3127, %v3125
      %v3162 = vpack.c.bf16 %v3131, %v3129
      %v3163 = vpack.c.bf16 %v3135, %v3133
      %3164 = vrot.lane.b32.xlu0 %v497, 16
      %v3165 = vpop.permute.xlu0 %3164
      %3166 = vrot.lane.b32.xlu0 %v498, 16
      %v3167 = vpop.permute.xlu0 %3166
      %3168 = vrot.lane.b32.xlu0 %v499, 16
      %v3169 = vpop.permute.xlu0 %3168
      %3170 = vrot.lane.b32.xlu0 %v500, 16
      %v3171 = vpop.permute.xlu0 %3170
      %v3177 = vsel %vm404, %v3160, 0
      %v3180 = vsel %vm404, %v3161, 0
      %v3183 = vsel %vm404, %v3162, 0
      %v3186 = vsel %vm404, %v3163, 0
      %3188 = vmatprep.subr.bf16.mxu0 0
      %3189 = vmatpush1.bf16.msra.mxu0 %v3165
      %3190 = vmatprep.subr.bf16.mxu0 0
      %3191 = vmatpush1.bf16.msra.mxu0 %v3167
      %3192 = vmatprep.subr.bf16.mxu0 0
      %3193 = vmatpush1.bf16.msra.mxu0 %v3169
      %3194 = vmatprep.subr.bf16.mxu0 0
      %3195 = vmatpush1.bf16.msra.mxu0 %v3171
      %3196 = vmatprep.subr.bf16.mxu0 0
      %3197 = vmatpush1.bf16.msra.mxu0 0
      %3198 = vmatprep.subr.bf16.mxu0 0
      %3199 = vmatpush1.bf16.msra.mxu0 0
      %3200 = vmatprep.subr.bf16.mxu0 0
      %3201 = vmatpush1.bf16.msra.mxu0 0
      %3202 = vmatprep.subr.bf16.mxu0 0
      %3203 = vmatpush1.bf16.msra.mxu0 0
      %3204 = vmatprep.subr.bf16.mxu0 0
      %3205 = vmatpush1.bf16.msra.mxu0 0
      %3206 = vmatprep.subr.bf16.mxu0 0
      %3207 = vmatpush1.bf16.msra.mxu0 0
      %3208 = vmatprep.subr.bf16.mxu0 0
      %3209 = vmatpush1.bf16.msra.mxu0 0
      %3210 = vmatprep.subr.bf16.mxu0 0
      %3211 = vmatpush1.bf16.msra.mxu0 0
      %3212 = vmatprep.subr.bf16.mxu0 0
      %3213 = vmatpush1.bf16.msra.mxu0 0
      %3214 = vmatprep.subr.bf16.mxu0 0
      %3215 = vmatpush1.bf16.msra.mxu0 0
      %3216 = vmatprep.subr.bf16.mxu0 0
      %3217 = vmatpush1.bf16.msra.mxu0 0
      %3218 = vmatprep.subr.bf16.mxu0 0
      %3219 = vmatpush1.bf16.msra.mxu0 0
      %3220 = vmatprep.mubr.bf16.mxu0 0
      %3221 = vmatmul.mubr.bf16.gmra.mrb[0].mxu0 %v3177
      %v3222 = vpop.f32.mrb[0].mxu0
      %v3223 = vadd.f32 0.0, %v3222
      %v3224 = vpop.f32.mrb[0].mxu0
      %v3225 = vpop.f32.mrb[0].mxu0
      %v3226 = vadd.f32 0.0, %v3225
      %v3227 = vpop.f32.mrb[0].mxu0
      %3228 = vmatprep.mubr.bf16.mxu0 0
      %3229 = vmatmul.mubr.bf16.gmra.mrb[0].mxu0 %v3180
      %v3230 = vpop.f32.mrb[0].mxu0
      %v3231 = vadd.f32 0.0, %v3230
      %v3232 = vpop.f32.mrb[0].mxu0
      %v3233 = vpop.f32.mrb[0].mxu0
      %v3234 = vadd.f32 0.0, %v3233
      %v3235 = vpop.f32.mrb[0].mxu0
      %3236 = vmatprep.mubr.bf16.mxu0 0
      %3237 = vmatmul.mubr.bf16.gmra.mrb[0].mxu0 %v3183
      %v3238 = vpop.f32.mrb[0].mxu0
      %v3239 = vadd.f32 0.0, %v3238
      %v3240 = vpop.f32.mrb[0].mxu0
      %v3241 = vpop.f32.mrb[0].mxu0
      %v3242 = vadd.f32 0.0, %v3241
      %v3243 = vpop.f32.mrb[0].mxu0
      %3244 = vmatprep.mubr.bf16.mxu0 0
      %3245 = vmatmul.mubr.bf16.gmra.mrb[0].mxu0 %v3186
      %v3246 = vpop.f32.mrb[0].mxu0
      %v3247 = vadd.f32 0.0, %v3246
      %v3248 = vpop.f32.mrb[0].mxu0
      %v3249 = vpop.f32.mrb[0].mxu0
      %v3250 = vadd.f32 0.0, %v3249
      %v3251 = vpop.f32.mrb[0].mxu0
      %3252 = vdwg.mxu0
      %v3253 = vrcp.pop %v3138
      %v3254 = vrcp.pop %v3141
      %v3255 = vrcp.pop %v3144
      %v3256 = vrcp.pop %v3147
      %v3257 = vrcp.pop %v3150
      %v3258 = vrcp.pop %v3153
      %v3259 = vrcp.pop %v3156
      %v3260 = vrcp.pop %v3159
      %v3261 = vmul.f32 %v3223, %v3253
      %v3262 = vmul.f32 %v3226, %v3254
      %v3263 = vmul.f32 %v3231, %v3255
      %v3264 = vmul.f32 %v3234, %v3256
      %v3265 = vmul.f32 %v3239, %v3257
      %v3266 = vmul.f32 %v3242, %v3258
      %v3267 = vmul.f32 %v3247, %v3259
      %v3268 = vmul.f32 %v3250, %v3260
      %v3269 = vpack.c.bf16 %v3262, %v3261
      %v3270 = vpack.c.bf16 %v3264, %v3263
      %v3271 = vpack.c.bf16 %v3266, %v3265
      %v3272 = vpack.c.bf16 %v3268, %v3267
      %v3275 = vunpack.c.l.b16 %v249
      %v3276 = vunpack.c.l.b16 %v250
      %v3277 = vpack.c.b16 %v3276, %v3275
      %v3280 = vsel %vm314, %v3269, 0
      %v3283 = vsel %vm314, %v3270, 0
      %v3286 = vsel %vm314, %v3271, 0
      %v3289 = vsel %vm314, %v3272, 0
      %3291 = vmatprep.subr.bf16.mxu0 0
      %3292 = vmatpush1.bf16.msra.mxu0 %v3277
      %3293 = vmatprep.subr.bf16.mxu0 0
      %3294 = vmatpush1.bf16.msra.mxu0 0
      %3295 = vmatprep.subr.bf16.mxu0 0
      %3296 = vmatpush1.bf16.msra.mxu0 0
      %3297 = vmatprep.subr.bf16.mxu0 0
      %3298 = vmatpush1.bf16.msra.mxu0 0
      %3299 = vmatprep.subr.bf16.mxu0 0
      %3300 = vmatpush1.bf16.msra.mxu0 0
      %3301 = vmatprep.subr.bf16.mxu0 0
      %3302 = vmatpush1.bf16.msra.mxu0 0
      %3303 = vmatprep.subr.bf16.mxu0 0
      %3304 = vmatpush1.bf16.msra.mxu0 0
      %3305 = vmatprep.subr.bf16.mxu0 0
      %3306 = vmatpush1.bf16.msra.mxu0 0
      %3307 = vmatprep.subr.bf16.mxu0 0
      %3308 = vmatpush1.bf16.msra.mxu0 0
      %3309 = vmatprep.subr.bf16.mxu0 0
      %3310 = vmatpush1.bf16.msra.mxu0 0
      %3311 = vmatprep.subr.bf16.mxu0 0
      %3312 = vmatpush1.bf16.msra.mxu0 0
      %3313 = vmatprep.subr.bf16.mxu0 0
      %3314 = vmatpush1.bf16.msra.mxu0 0
      %3315 = vmatprep.subr.bf16.mxu0 0
      %3316 = vmatpush1.bf16.msra.mxu0 0
      %3317 = vmatprep.subr.bf16.mxu0 0
      %3318 = vmatpush1.bf16.msra.mxu0 0
      %3319 = vmatprep.subr.bf16.mxu0 0
      %3320 = vmatpush1.bf16.msra.mxu0 0
      %3321 = vmatprep.subr.bf16.mxu0 0
      %3322 = vmatpush1.bf16.msra.mxu0 0
      %3323 = vmatprep.mubr.bf16.mxu0 0
      %3324 = vmatmul.mubr.bf16.gmra.mrb[0].mxu0 %v3280
      %v3325 = vpop.f32.mrb[0].mxu0
      %v3326 = vadd.f32 0.0, %v3325
      %v3327 = vpop.f32.mrb[0].mxu0
      %v3328 = vpop.f32.mrb[0].mxu0
      %v3329 = vadd.f32 0.0, %v3328
      %v3330 = vpop.f32.mrb[0].mxu0
      %3331 = vmatprep.mubr.bf16.mxu0 0
      %3332 = vmatmul.mubr.bf16.gmra.mrb[0].mxu0 %v3283
      %v3333 = vpop.f32.mrb[0].mxu0
      %v3334 = vadd.f32 0.0, %v3333
      %v3335 = vpop.f32.mrb[0].mxu0
      %v3336 = vpop.f32.mrb[0].mxu0
      %v3337 = vadd.f32 0.0, %v3336
      %v3338 = vpop.f32.mrb[0].mxu0
      %3339 = vmatprep.mubr.bf16.mxu0 0
      %3340 = vmatmul.mubr.bf16.gmra.mrb[0].mxu0 %v3286
      %v3341 = vpop.f32.mrb[0].mxu0
      %v3342 = vadd.f32 0.0, %v3341
      %v3343 = vpop.f32.mrb[0].mxu0
      %v3344 = vpop.f32.mrb[0].mxu0
      %v3345 = vadd.f32 0.0, %v3344
      %v3346 = vpop.f32.mrb[0].mxu0
      %3347 = vmatprep.mubr.bf16.mxu0 0
      %3348 = vmatmul.mubr.bf16.gmra.mrb[0].mxu0 %v3289
      %v3349 = vpop.f32.mrb[0].mxu0
      %v3350 = vadd.f32 0.0, %v3349
      %v3351 = vpop.f32.mrb[0].mxu0
      %v3352 = vpop.f32.mrb[0].mxu0
      %v3353 = vadd.f32 0.0, %v3352
      %v3354 = vpop.f32.mrb[0].mxu0
      %3355 = vdwg.mxu0
      %v3356 = vadd.f32 %v2975, %v3326
      %v3357 = vadd.f32 %v2976, %v3329
      %v3358 = vadd.f32 %v2977, %v3334
      %v3359 = vadd.f32 %v2978, %v3337
      %v3360 = vadd.f32 %v2979, %v3342
      %v3361 = vadd.f32 %v2980, %v3345
      %v3362 = vadd.f32 %v2981, %v3350
      %v3363 = vadd.f32 %v2982, %v3353
      %3364 = vst [vmem:[%s217] sm:$0xff] %v3356
      %3365 = vst [vmem:[%s217 + $0x8] sm:$0xff] %v3357
      %3366 = vst [vmem:[%s217 + $0x10] sm:$0xff] %v3358
      %3367 = vst [vmem:[%s217 + $0x18] sm:$0xff] %v3359
      %3368 = vst [vmem:[%s217 + $0x20] sm:$0xff] %v3360
      %3369 = vst [vmem:[%s217 + $0x28] sm:$0xff] %v3361
      %3370 = vst [vmem:[%s217 + $0x30] sm:$0xff] %v3362
      %3371 = vst [vmem:[%s217 + $0x38] sm:$0xff] %v3363
      %p3372 = scmp.lt.s32.totalorder %s15, 1
      %s3373 = scalar_select %p3372, %s15, 1
      %s3374 = smul.addr %s3373, 8
      %s3375 = smul.addr %s3374, 8
      %s3376 = scalar_lea.vmem %s4, %s3375
      // Predicated region
      $region37: #{global_attention_block.4} parent=35 // pred_check
        %p3377 = pneg %p127
      $region38: #{global_attention_block.4} parent=35 // pred_check_branch
        %3379 = sbr.rel (%p3377) target = $region40
      $region39: #{global_attention_block.4} parent=35 // pred_region
        _
      $region40: #{global_attention_block.4} parent=35 // pred_fallthru
        _
    $region36: #{global_attention_block.4} parent=5 // pred_fallthru
      _
    %p3380 = scmp.le.s32.totalorder 2, %s10
    // Predicated region
    $region41: #{global_attention_block.4} parent=5 // pred_check
      %p3381 = pneg %p3380
    $region42: #{global_attention_block.4} parent=5 // pred_check_branch
      %3383 = sbr.rel (%p3381) target = $region44
    $region43: #{global_attention_block.4} parent=5 // pred_region
      %s3384 = ssub.s32 %s10, 2
      // Predicated region
      $region45: #{global_attention_block.4} parent=43 // pred_check
        %p3385 = pneg %p133
      $region46: #{global_attention_block.4} parent=43 // pred_check_branch
        %3387 = sbr.rel (%p3385) target = $region48
      $region47: #{global_attention_block.4} parent=43 // pred_region
        %p3388 = scmp.lt.s32.totalorder %s16, 1
        %s3389 = scalar_select %p3388, %s16, 1
        %s3390 = smul.addr %s3389, 8
        %s3391 = smul.addr %s3390, 8
        %s3392 = scalar_lea.vmem %s4, %s3391
      $region48: #{global_attention_block.4} parent=43 // pred_fallthru
        _
    $region44: #{global_attention_block.4} parent=5 // pred_fallthru
      _
  $region6: #{global_attention_block.4} parent=0 // loop_footer
    %s14 = sadd.s32 1, %s10
  $region7: #{global_attention_block.4} parent=0 // loop_footer_branch
    %9 = sbr.rel target = $region3
  $region8: #{global_attention_block.4} parent=0 // loop_exit
    _

</llo_original>
